<compile_context>
chip_gen: v7x
topology: tpu7x:2x2x1
jax: 0.10.0
libtpu: 0.0.40
codegen_flags: <defaults>
</compile_context>

<pallas_src>
import functools

import jax
import jax.numpy as jnp
from jax.experimental import pallas as pl
from jax.experimental.pallas import tpu as pltpu


def _cdiv(a, b):
    return -(-a // b)


def _round_up(x, m):
    return _cdiv(x, m) * m


# ---------------------------------------------------------------------------
# Pallas kernel 1: tiled matmul + bias + ReLU (conv1 / conv2 im2col matmuls)
# ---------------------------------------------------------------------------
def _mm_bias_act_kernel(x_ref, w_ref, b_ref, o_ref, *, relu):
    y = jnp.dot(x_ref[...], w_ref[...], preferred_element_type=jnp.float32)
    y = y + b_ref[...]
    if relu:
        y = jnp.maximum(y, 0.0)
    o_ref[...] = y.astype(o_ref.dtype)


def _pick_m_tiles(M, tm_target):
    """Pick (nt, tm, needs_pad): tm multiple of 16, prefer exact divisor of M."""
    nt0 = max(1, _cdiv(M, tm_target))
    if M >= 1024:
        nt0 = max(nt0, 2)  # >=2 parallel blocks so both v7x TensorCores work
    for nt in range(nt0, nt0 + 17):
        tm = M // nt
        if tm > 0 and tm * nt == M and tm % 16 == 0:
            return nt, tm, False
    nt = nt0
    tm = _round_up(_cdiv(M, nt), 16)
    return nt, tm, True


def matmul_bias_relu(x, w, b, *, relu=True, out_dtype=jnp.bfloat16, tm_target=2048):
    """x: (M, K) bf16, w: (K, N) bf16, b: (1, N) f32 -> (M, N) out_dtype.

    M is tiled into tm-row blocks (multiple of 16, ~<=2048, preferring an exact
    divisor of M so no HBM pad/copy is needed) on a 1-D "parallel" grid;
    weights/bias stay VMEM-resident across the grid.
    """
    M, K = x.shape
    N = w.shape[1]
    nt, tm, needs_pad = _pick_m_tiles(M, tm_target)
    mp = nt * tm
    if needs_pad and mp != M:
        x = jnp.pad(x, ((0, mp - M), (0, 0)))
    kernel = functools.partial(_mm_bias_act_kernel, relu=relu)
    out = pl.pallas_call(
        kernel,
        out_shape=jax.ShapeDtypeStruct((mp, N), out_dtype),
        grid=(nt,),
        in_specs=[
            pl.BlockSpec((tm, K), lambda i: (i, 0)),
            pl.BlockSpec((K, N), lambda i: (0, 0)),
            pl.BlockSpec((1, N), lambda i: (0, 0)),
        ],
        out_specs=pl.BlockSpec((tm, N), lambda i: (i, 0)),
        compiler_params=pltpu.CompilerParams(
            dimension_semantics=("parallel",),
            vmem_limit_bytes=32 * 1024 * 1024,
        ),
    )(x, w, b)
    return out if mp == M else out[:M]


# ---------------------------------------------------------------------------
# Pallas kernel 2: fused head = conv3(3x3,s1) + Linear(3136,512)+ReLU + Linear
#
# Grid = (batch_tiles, 7 groups of 7 conv3 output positions). Per group g:
#   for i in 0..6:  h3_i = relu(patch_{g*7+i} @ W3 + b3)          # (TB, 64)
#   h3 = concat(h3_0..h3_6)                                       # (TB, 448)
#   acc += h3 @ W4[g]                # fat K=448 matmul, f32 VMEM accumulator
# last group:
#   q = relu(acc + b4) @ W5 + b5                                  # (TB, 128)
# W4 is packed as (7, 448, 512) and kept fully VMEM-resident (constant index
# map); the NHWC conv3 path never needs a flatten/transpose of activations.
# ---------------------------------------------------------------------------
_GROUP = 7


def _head_kernel(p3_ref, w3_ref, b3_ref, w4_ref, b4_ref, w5_ref, b5_ref,
                 o_ref, acc_ref, *, group):
    g = pl.program_id(1)

    @pl.when(g == 0)
    def _():
        acc_ref[...] = jnp.zeros_like(acc_ref)

    # conv3 for this group's `group` positions (K=576 matmuls), then assemble
    # a lane-concatenated (TB, group*64) activation for the fat W4 contraction.
    parts = []
    for i in range(group):
        h = jnp.dot(p3_ref[i], w3_ref[...], preferred_element_type=jnp.float32)
        h = jnp.maximum(h + b3_ref[...], 0.0).astype(jnp.bfloat16)
        parts.append(h)
    h3 = jnp.concatenate(parts, axis=-1)                     # (TB, group*64)

    # Partial Linear(3136, 512): one (TB, 448) @ (448, 512) matmul with the
    # VMEM-resident W4 slab for this group (dynamic leading-dim index).
    acc_ref[...] += jnp.dot(h3, w4_ref[g], preferred_element_type=jnp.float32)

    @pl.when(g == pl.num_programs(1) - 1)
    def _():
        h4 = jnp.maximum(acc_ref[...] + b4_ref[...], 0.0).astype(jnp.bfloat16)
        q = jnp.dot(h4, w5_ref[...], preferred_element_type=jnp.float32)
        o_ref[...] = q + b5_ref[...]


def _pick_tb(B):
    if B >= 32:
        return min(256, _round_up(_cdiv(B, 2), 16))  # >=2 parallel batch tiles
    return _round_up(max(B, 1), 16)


def fused_head(p3, pp):
    """p3: (49, B, 576) bf16 conv3 im2col patches -> (B, 128) f32 Q (padded)."""
    P, B, K3 = p3.shape
    assert P % _GROUP == 0
    n_groups = P // _GROUP
    TB = _pick_tb(B)
    Bp = _round_up(B, TB)
    if Bp != B:
        p3 = jnp.pad(p3, ((0, 0), (0, Bp - B), (0, 0)))
    Np = pp["w5"].shape[1]                                   # 128 (padded)
    hid = pp["w4"].shape[2]                                  # 512
    kernel = functools.partial(_head_kernel, group=_GROUP)
    out = pl.pallas_call(
        kernel,
        out_shape=jax.ShapeDtypeStruct((Bp, Np), jnp.float32),
        grid=(Bp // TB, n_groups),
        in_specs=[
            pl.BlockSpec((_GROUP, TB, K3), lambda bi, g: (g, bi, 0)),
            pl.BlockSpec((K3, 64), lambda bi, g: (0, 0)),
            pl.BlockSpec((1, 64), lambda bi, g: (0, 0)),
            # Entire W4 resident in VMEM (constant block index -> one DMA).
            pl.BlockSpec((n_groups, _GROUP * 64, hid), lambda bi, g: (0, 0, 0)),
            pl.BlockSpec((1, hid), lambda bi, g: (0, 0)),
            pl.BlockSpec((hid, Np), lambda bi, g: (0, 0)),
            pl.BlockSpec((1, Np), lambda bi, g: (0, 0)),
        ],
        out_specs=pl.BlockSpec((TB, Np), lambda bi, g: (bi, 0)),
        scratch_shapes=[pltpu.VMEM((TB, hid), jnp.float32)],
        compiler_params=pltpu.CompilerParams(
            dimension_semantics=("parallel", "arbitrary"),
            vmem_limit_bytes=32 * 1024 * 1024,
        ),
    )(p3, pp["w3"], pp["b3"], pp["w4"], pp["b4"], pp["w5"], pp["b5"])
    return out[:B]


# ---------------------------------------------------------------------------
# im2col glue (plain JAX)
#   layout="bk" : (B*OH*OW, KH*KW*Cin)          -> conv1 / conv2 matmuls
#   layout="pbk": (OH*OW, B, KH*KW*Cin)         -> fused head (position-major,
#                 built directly in this order; no extra transpose pass)
# ---------------------------------------------------------------------------
def _im2col(x_nhwc, kh, kw, stride, *, layout="bk"):
    B, H, W, C = x_nhwc.shape
    oh = (H - kh) // stride + 1
    ow = (W - kw) // stride + 1
    cols = []
    for i in range(kh):
        for j in range(kw):
            cols.append(
                jax.lax.slice(
                    x_nhwc,
                    (0, i, j, 0),
                    (B, i + stride * (oh - 1) + 1, j + stride * (ow - 1) + 1, C),
                    (1, stride, stride, 1),
                )
            )
    p = jnp.stack(cols, axis=3)                              # (B, oh, ow, kh*kw, C)
    if layout == "bk":
        return p.reshape(B * oh * ow, kh * kw * C), oh, ow
    p = jnp.transpose(p, (1, 2, 0, 3, 4))                    # (oh, ow, B, kh*kw, C)
    return p.reshape(oh * ow, B, kh * kw * C), oh, ow


# ---------------------------------------------------------------------------
# QNetwork forward (equivalent to the PyTorch nn.Sequential)
# ---------------------------------------------------------------------------
def qnetwork_forward(x_nchw, pp, *, n_actions):
    B = x_nchw.shape[0]
    # Cast to bf16 BEFORE the NCHW -> NHWC transpose (/255 folded into w1).
    x = jnp.transpose(x_nchw.astype(jnp.bfloat16), (0, 2, 3, 1))

    # conv1: 8x8 stride 4, ReLU
    p1, oh1, ow1 = _im2col(x, 8, 8, 4)                       # (B*400, 256)
    h1 = matmul_bias_relu(p1, pp["w1"], pp["b1"])
    h1 = h1.reshape(B, oh1, ow1, 32)

    # conv2: 4x4 stride 2, ReLU
    p2, oh2, ow2 = _im2col(h1, 4, 4, 2)                      # (B*81, 512)
    h2 = matmul_bias_relu(p2, pp["w2"], pp["b2"])
    h2 = h2.reshape(B, oh2, ow2, 64)

    # conv3 + Flatten + Linear(3136,512) + ReLU + Linear(512,A): fused kernel
    p3, _, _ = _im2col(h2, 3, 3, 1, layout="pbk")            # (49, B, 576)
    q = fused_head(p3, pp)                                   # (B, 128) f32
    return q[:, :n_actions]


# ---------------------------------------------------------------------------
# One-time weight packing (PyTorch layout -> kernel layout)
# ---------------------------------------------------------------------------
def pack_params(p):
    def conv_pack(w):  # (Cout, Cin, KH, KW) -> (KH*KW*Cin, Cout)
        cout, cin, kh, kw = w.shape
        return jnp.transpose(w, (2, 3, 1, 0)).reshape(kh * kw * cin, cout)

    packed = {}
    # /255 normalization folded into conv1 weights (x/255 . W == x . (W/255)).
    packed["w1"] = (conv_pack(p["w1"]) / 255.0).astype(jnp.bfloat16)
    packed["b1"] = p["b1"].reshape(1, -1).astype(jnp.float32)
    packed["w2"] = conv_pack(p["w2"]).astype(jnp.bfloat16)
    packed["b2"] = p["b2"].reshape(1, -1).astype(jnp.float32)
    packed["w3"] = conv_pack(p["w3"]).astype(jnp.bfloat16)
    packed["b3"] = p["b3"].reshape(1, -1).astype(jnp.float32)
    # Linear(3136, 512): torch flatten index is c*49 + p (NCHW), p = oy*7+ox.
    # Re-index to (group g=oy, i=ox within group, c, n) -> (7, 448, 512) so the
    # head's lane-concatenated [pos-major, channel-minor] activation matches.
    w4 = p["w4"].reshape(512, 64, 49)                        # [n, c, p]
    w4 = jnp.transpose(w4, (2, 1, 0))                        # (49, 64, 512) [p, c, n]
    packed["w4"] = (
        w4.reshape(7, 7, 64, 512).reshape(7, 7 * 64, 512).astype(jnp.bfloat16)
    )
    packed["b4"] = p["b4"].reshape(1, -1).astype(jnp.float32)
    # Final linear padded to 128 output lanes (lane-dense stores).
    n_act = p["w5"].shape[0]
    npad = _round_up(n_act, 128)
    w5 = jnp.zeros((512, npad), jnp.float32).at[:, :n_act].set(p["w5"].T)
    packed["w5"] = w5.astype(jnp.bfloat16)
    packed["b5"] = jnp.zeros((1, npad), jnp.float32).at[0, :n_act].set(p["b5"])
    return packed


# ---------------------------------------------------------------------------
# Deterministic parameter init (PyTorch-default-style uniform(-1/sqrt(fan_in)))
# ---------------------------------------------------------------------------
def _uniform(key, shape, fan_in):
    bound = 1.0 / jnp.sqrt(jnp.float32(fan_in))
    return jax.random.uniform(key, shape, jnp.float32, -bound, bound)


def init_params(key, n_actions):
    ks = jax.random.split(key, 10)
    p = {}
    p["w1"] = _uniform(ks[0], (32, 4, 8, 8), 4 * 8 * 8)
    p["b1"] = _uniform(ks[1], (32,), 4 * 8 * 8)
    p["w2"] = _uniform(ks[2], (64, 32, 4, 4), 32 * 4 * 4)
    p["b2"] = _uniform(ks[3], (64,), 32 * 4 * 4)
    p["w3"] = _uniform(ks[4], (64, 64, 3, 3), 64 * 3 * 3)
    p["b3"] = _uniform(ks[5], (64,), 64 * 3 * 3)
    p["w4"] = _uniform(ks[6], (512, 3136), 3136)             # PyTorch Linear: (out, in)
    p["b4"] = _uniform(ks[7], (512,), 3136)
    p["w5"] = _uniform(ks[8], (n_actions, 512), 512)
    p["b5"] = _uniform(ks[9], (n_actions,), 512)
    return p


# ---------------------------------------------------------------------------
# Pure-JAX f32 reference (sanity check against the Pallas bf16 path)
# ---------------------------------------------------------------------------
def qnetwork_reference(x_nchw, params):
    dn = jax.lax.conv_dimension_numbers(x_nchw.shape, params["w1"].shape,
                                        ("NCHW", "OIHW", "NCHW"))
    h = x_nchw / 255.0
    h = jax.lax.conv_general_dilated(h, params["w1"], (4, 4), "VALID",
                                     dimension_numbers=dn,
                                     precision=jax.lax.Precision.HIGHEST)
    h = jax.nn.relu(h + params["b1"][None, :, None, None])
    h = jax.lax.conv_general_dilated(h, params["w2"], (2, 2), "VALID",
                                     dimension_numbers=dn,
                                     precision=jax.lax.Precision.HIGHEST)
    h = jax.nn.relu(h + params["b2"][None, :, None, None])
    h = jax.lax.conv_general_dilated(h, params["w3"], (1, 1), "VALID",
                                     dimension_numbers=dn,
                                     precision=jax.lax.Precision.HIGHEST)
    h = jax.nn.relu(h + params["b3"][None, :, None, None])
    h = h.reshape(h.shape[0], -1)
    h = jax.nn.relu(h @ params["w4"].T + params["b4"])
    return h @ params["w5"].T + params["b5"]


if __name__ == "__main__":
    n_actions = 6
    batch = 2
    # Forward implies 84x84 inputs (Linear(3136, 512) == 64*7*7 after the convs).
    x = jax.random.uniform(jax.random.PRNGKey(0), (batch, 4, 84, 84),
                           dtype=jnp.float32, minval=0.0, maxval=255.0)
    params = init_params(jax.random.PRNGKey(42), n_actions)
    packed = pack_params(params)   # one-time packing (bf16, /255 folded, W4 regrouped)

    fwd = jax.jit(functools.partial(qnetwork_forward, n_actions=n_actions))
    q = jax.block_until_ready(fwd(x, packed))
    assert q.shape == (batch, n_actions), q.shape

    # Precision note: the Pallas path uses bf16 operands with f32 MXU
    # accumulation (h3/h4 re-quantized to bf16 between matmuls); compared
    # against an f32 HIGHEST-precision reference.
    q_ref = jax.block_until_ready(jax.jit(qnetwork_reference)(x, params))
    assert jnp.allclose(q, q_ref, rtol=5e-2, atol=5e-2), (q, q_ref)

    print("KERNEL_OK")
</pallas_src>

<mosaic_0001>
module attributes {stable_mosaic.version = 11 : i64} {
  func.func @_mm_bias_act_kernel(%arg0: i32, %arg1: memref<800x256xbf16, #tpu.memory_space<vmem>>, %arg2: memref<256x32xbf16, #tpu.memory_space<vmem>>, %arg3: memref<1x32xf32, #tpu.memory_space<vmem>>, %arg4: memref<800x32xbf16, #tpu.memory_space<vmem>>) attributes {dimension_semantics = [#tpu.dimension_semantics<parallel>], iteration_bounds = array<i64: 1>, scalar_prefetch = 0 : i64, scratch_operands = 0 : i64, tpu.core_type = #tpu.core_type<tc>, window_params = [{transform_indices = @transform_0, window_bounds = array<i64: 800, 256>}, {pipeline_mode = #tpu.pipeline_mode<synchronous>, transform_indices = @transform_1, window_bounds = array<i64: 256, 32>}, {pipeline_mode = #tpu.pipeline_mode<synchronous>, transform_indices = @transform_2, window_bounds = array<i64: 1, 32>}, {transform_indices = @transform_3, window_bounds = array<i64: 800, 32>}]} {
    %c0 = arith.constant 0 : index
    %c0_0 = arith.constant 0 : index
    %0 = vector.load %arg1[%c0, %c0_0] : memref<800x256xbf16, #tpu.memory_space<vmem>>, vector<800x256xbf16>
    %c0_1 = arith.constant 0 : index
    %c0_2 = arith.constant 0 : index
    %1 = vector.load %arg2[%c0_1, %c0_2] : memref<256x32xbf16, #tpu.memory_space<vmem>>, vector<256x32xbf16>
    %cst = arith.constant dense<0.000000e+00> : vector<800x32xf32>
    %2 = tpu.matmul %0, %1, %cst {dimension_numbers = #tpu.dot_dimension_numbers<[1], [0], [0], [1], [0, 0, 1, 1], [], []>} : vector<800x256xbf16>, vector<256x32xbf16>, vector<800x32xf32> -> vector<800x32xf32>
    %c0_3 = arith.constant 0 : index
    %c0_4 = arith.constant 0 : index
    %3 = vector.load %arg3[%c0_3, %c0_4] : memref<1x32xf32, #tpu.memory_space<vmem>>, vector<1x32xf32>
    %4 = vector.broadcast %3 : vector<1x32xf32> to vector<800x32xf32>
    %5 = arith.addf %2, %4 : vector<800x32xf32>
    %cst_5 = arith.constant 0.000000e+00 : f32
    %6 = vector.broadcast %cst_5 : f32 to vector<800x32xf32>
    %7 = arith.maximumf %5, %6 : vector<800x32xf32>
    %8 = arith.truncf %7 : vector<800x32xf32> to vector<800x32xbf16>
    %c0_6 = arith.constant 0 : index
    %c0_7 = arith.constant 0 : index
    %9 = vector.load %arg4[%c0_6, %c0_7] : memref<800x32xbf16, #tpu.memory_space<vmem>>, vector<800x32xbf16>
    tpu.vector_store %arg4[%c0_6, %c0_7], %8 {strides = array<i32>} : memref<800x32xbf16, #tpu.memory_space<vmem>>, vector<800x32xbf16>,
    return
  }
  func.func @transform_0(%arg0: i32) -> (i32, i32) {
    %c0_i32 = arith.constant 0 : i32
    %c0_i32_0 = arith.constant 0 : i32
    return %arg0, %c0_i32 : i32, i32
  }
  func.func @transform_1(%arg0: i32) -> (i32, i32) {
    %c0_i32 = arith.constant 0 : i32
    %c0_i32_0 = arith.constant 0 : i32
    %c0_i32_1 = arith.constant 0 : i32
    return %c0_i32, %c0_i32_0 : i32, i32
  }
  func.func @transform_2(%arg0: i32) -> (i32, i32) {
    %c0_i32 = arith.constant 0 : i32
    %c0_i32_0 = arith.constant 0 : i32
    %c0_i32_1 = arith.constant 0 : i32
    return %c0_i32, %c0_i32_0 : i32, i32
  }
  func.func @transform_3(%arg0: i32) -> (i32, i32) {
    %c0_i32 = arith.constant 0 : i32
    %c0_i32_0 = arith.constant 0 : i32
    return %arg0, %c0_i32 : i32, i32
  }
}

module attributes {stable_mosaic.version = 11 : i64} {
  func.func @_mm_bias_act_kernel(%arg0: i32, %arg1: memref<176x512xbf16, #tpu.memory_space<vmem>>, %arg2: memref<512x64xbf16, #tpu.memory_space<vmem>>, %arg3: memref<1x64xf32, #tpu.memory_space<vmem>>, %arg4: memref<176x64xbf16, #tpu.memory_space<vmem>>) attributes {dimension_semantics = [#tpu.dimension_semantics<parallel>], iteration_bounds = array<i64: 1>, scalar_prefetch = 0 : i64, scratch_operands = 0 : i64, tpu.core_type = #tpu.core_type<tc>, window_params = [{transform_indices = @transform_0, window_bounds = array<i64: 176, 512>}, {pipeline_mode = #tpu.pipeline_mode<synchronous>, transform_indices = @transform_1, window_bounds = array<i64: 512, 64>}, {pipeline_mode = #tpu.pipeline_mode<synchronous>, transform_indices = @transform_2, window_bounds = array<i64: 1, 64>}, {transform_indices = @transform_3, window_bounds = array<i64: 176, 64>}]} {
    %c0 = arith.constant 0 : index
    %c0_0 = arith.constant 0 : index
    %0 = vector.load %arg1[%c0, %c0_0] : memref<176x512xbf16, #tpu.memory_space<vmem>>, vector<176x512xbf16>
    %c0_1 = arith.constant 0 : index
    %c0_2 = arith.constant 0 : index
    %1 = vector.load %arg2[%c0_1, %c0_2] : memref<512x64xbf16, #tpu.memory_space<vmem>>, vector<512x64xbf16>
    %cst = arith.constant dense<0.000000e+00> : vector<176x64xf32>
    %2 = tpu.matmul %0, %1, %cst {dimension_numbers = #tpu.dot_dimension_numbers<[1], [0], [0], [1], [0, 0, 1, 1], [], []>} : vector<176x512xbf16>, vector<512x64xbf16>, vector<176x64xf32> -> vector<176x64xf32>
    %c0_3 = arith.constant 0 : index
    %c0_4 = arith.constant 0 : index
    %3 = vector.load %arg3[%c0_3, %c0_4] : memref<1x64xf32, #tpu.memory_space<vmem>>, vector<1x64xf32>
    %4 = vector.broadcast %3 : vector<1x64xf32> to vector<176x64xf32>
    %5 = arith.addf %2, %4 : vector<176x64xf32>
    %cst_5 = arith.constant 0.000000e+00 : f32
    %6 = vector.broadcast %cst_5 : f32 to vector<176x64xf32>
    %7 = arith.maximumf %5, %6 : vector<176x64xf32>
    %8 = arith.truncf %7 : vector<176x64xf32> to vector<176x64xbf16>
    %c0_6 = arith.constant 0 : index
    %c0_7 = arith.constant 0 : index
    %9 = vector.load %arg4[%c0_6, %c0_7] : memref<176x64xbf16, #tpu.memory_space<vmem>>, vector<176x64xbf16>
    tpu.vector_store %arg4[%c0_6, %c0_7], %8 {strides = array<i32>} : memref<176x64xbf16, #tpu.memory_space<vmem>>, vector<176x64xbf16>,
    return
  }
  func.func @transform_0(%arg0: i32) -> (i32, i32) {
    %c0_i32 = arith.constant 0 : i32
    %c0_i32_0 = arith.constant 0 : i32
    return %arg0, %c0_i32 : i32, i32
  }
  func.func @transform_1(%arg0: i32) -> (i32, i32) {
    %c0_i32 = arith.constant 0 : i32
    %c0_i32_0 = arith.constant 0 : i32
    %c0_i32_1 = arith.constant 0 : i32
    return %c0_i32, %c0_i32_0 : i32, i32
  }
  func.func @transform_2(%arg0: i32) -> (i32, i32) {
    %c0_i32 = arith.constant 0 : i32
    %c0_i32_0 = arith.constant 0 : i32
    %c0_i32_1 = arith.constant 0 : i32
    return %c0_i32, %c0_i32_0 : i32, i32
  }
  func.func @transform_3(%arg0: i32) -> (i32, i32) {
    %c0_i32 = arith.constant 0 : i32
    %c0_i32_0 = arith.constant 0 : i32
    return %arg0, %c0_i32 : i32, i32
  }
}

module attributes {stable_mosaic.version = 11 : i64} {
  func.func @_head_kernel(%arg0: i32, %arg1: i32, %arg2: memref<7x16x576xbf16, #tpu.memory_space<vmem>>, %arg3: memref<576x64xbf16, #tpu.memory_space<vmem>>, %arg4: memref<1x64xf32, #tpu.memory_space<vmem>>, %arg5: memref<7x448x512xbf16, #tpu.memory_space<vmem>>, %arg6: memref<1x512xf32, #tpu.memory_space<vmem>>, %arg7: memref<512x128xbf16, #tpu.memory_space<vmem>>, %arg8: memref<1x128xf32, #tpu.memory_space<vmem>>, %arg9: memref<16x128xf32, #tpu.memory_space<vmem>>, %arg10: memref<16x512xf32, #tpu.memory_space<vmem>>) attributes {dimension_semantics = [#tpu.dimension_semantics<parallel>, #tpu.dimension_semantics<arbitrary>], iteration_bounds = array<i64: 1, 7>, scalar_prefetch = 0 : i64, scratch_operands = 1 : i64, tpu.core_type = #tpu.core_type<tc>, window_params = [{transform_indices = @transform_0, window_bounds = array<i64: 7, 16, 576>}, {pipeline_mode = #tpu.pipeline_mode<synchronous>, transform_indices = @transform_1, window_bounds = array<i64: 576, 64>}, {pipeline_mode = #tpu.pipeline_mode<synchronous>, transform_indices = @transform_2, window_bounds = array<i64: 1, 64>}, {pipeline_mode = #tpu.pipeline_mode<synchronous>, transform_indices = @transform_3, window_bounds = array<i64: 7, 448, 512>}, {pipeline_mode = #tpu.pipeline_mode<synchronous>, transform_indices = @transform_4, window_bounds = array<i64: 1, 512>}, {pipeline_mode = #tpu.pipeline_mode<synchronous>, transform_indices = @transform_5, window_bounds = array<i64: 512, 128>}, {pipeline_mode = #tpu.pipeline_mode<synchronous>, transform_indices = @transform_6, window_bounds = array<i64: 1, 128>}, {transform_indices = @transform_7, window_bounds = array<i64: 16, 128>}]} {
    %c0_i32 = arith.constant 0 : i32
    %0 = arith.cmpi eq, %arg1, %c0_i32 : i32
    %1 = arith.extui %0 : i1 to i32
    %c0_i32_0 = arith.constant 0 : i32
    %2 = arith.cmpi ne, %1, %c0_i32_0 : i32
    scf.if %2 {
      %cst_64 = arith.constant 0.000000e+00 : f32
      %84 = vector.broadcast %cst_64 : f32 to vector<16x512xf32>
      %c0_65 = arith.constant 0 : index
      %c0_66 = arith.constant 0 : index
      %85 = vector.load %arg10[%c0_65, %c0_66] : memref<16x512xf32, #tpu.memory_space<vmem>>, vector<16x512xf32>
      tpu.vector_store %arg10[%c0_65, %c0_66], %84 {strides = array<i32>} : memref<16x512xf32, #tpu.memory_space<vmem>>, vector<16x512xf32>,
    } else {
    }
    %c0 = arith.constant 0 : index
    %c0_1 = arith.constant 0 : index
    %c0_2 = arith.constant 0 : index
    %3 = vector.load %arg2[%c0, %c0_1, %c0_2] : memref<7x16x576xbf16, #tpu.memory_space<vmem>>, vector<1x16x576xbf16>
    %4 = vector.shape_cast %3 : vector<1x16x576xbf16> to vector<16x576xbf16>
    %c0_3 = arith.constant 0 : index
    %c0_4 = arith.constant 0 : index
    %5 = vector.load %arg3[%c0_3, %c0_4] : memref<576x64xbf16, #tpu.memory_space<vmem>>, vector<576x64xbf16>
    %cst = arith.constant dense<0.000000e+00> : vector<16x64xf32>
    %6 = tpu.matmul %4, %5, %cst {dimension_numbers = #tpu.dot_dimension_numbers<[1], [0], [0], [1], [0, 0, 1, 1], [], []>} : vector<16x576xbf16>, vector<576x64xbf16>, vector<16x64xf32> -> vector<16x64xf32>
    %c0_5 = arith.constant 0 : index
    %c0_6 = arith.constant 0 : index
    %7 = vector.load %arg4[%c0_5, %c0_6] : memref<1x64xf32, #tpu.memory_space<vmem>>, vector<1x64xf32>
    %8 = vector.broadcast %7 : vector<1x64xf32> to vector<16x64xf32>
    %9 = arith.addf %6, %8 : vector<16x64xf32>
    %cst_7 = arith.constant 0.000000e+00 : f32
    %10 = vector.broadcast %cst_7 : f32 to vector<16x64xf32>
    %11 = arith.maximumf %9, %10 : vector<16x64xf32>
    %12 = arith.truncf %11 : vector<16x64xf32> to vector<16x64xbf16>
    %c1 = arith.constant 1 : index
    %c0_8 = arith.constant 0 : index
    %c0_9 = arith.constant 0 : index
    %13 = vector.load %arg2[%c1, %c0_8, %c0_9] : memref<7x16x576xbf16, #tpu.memory_space<vmem>>, vector<1x16x576xbf16>
    %14 = vector.shape_cast %13 : vector<1x16x576xbf16> to vector<16x576xbf16>
    %c0_10 = arith.constant 0 : index
    %c0_11 = arith.constant 0 : index
    %15 = vector.load %arg3[%c0_10, %c0_11] : memref<576x64xbf16, #tpu.memory_space<vmem>>, vector<576x64xbf16>
    %cst_12 = arith.constant dense<0.000000e+00> : vector<16x64xf32>
    %16 = tpu.matmul %14, %15, %cst_12 {dimension_numbers = #tpu.dot_dimension_numbers<[1], [0], [0], [1], [0, 0, 1, 1], [], []>} : vector<16x576xbf16>, vector<576x64xbf16>, vector<16x64xf32> -> vector<16x64xf32>
    %c0_13 = arith.constant 0 : index
    %c0_14 = arith.constant 0 : index
    %17 = vector.load %arg4[%c0_13, %c0_14] : memref<1x64xf32, #tpu.memory_space<vmem>>, vector<1x64xf32>
    %18 = vector.broadcast %17 : vector<1x64xf32> to vector<16x64xf32>
    %19 = arith.addf %16, %18 : vector<16x64xf32>
    %cst_15 = arith.constant 0.000000e+00 : f32
    %20 = vector.broadcast %cst_15 : f32 to vector<16x64xf32>
    %21 = arith.maximumf %19, %20 : vector<16x64xf32>
    %22 = arith.truncf %21 : vector<16x64xf32> to vector<16x64xbf16>
    %c2 = arith.constant 2 : index
    %c0_16 = arith.constant 0 : index
    %c0_17 = arith.constant 0 : index
    %23 = vector.load %arg2[%c2, %c0_16, %c0_17] : memref<7x16x576xbf16, #tpu.memory_space<vmem>>, vector<1x16x576xbf16>
    %24 = vector.shape_cast %23 : vector<1x16x576xbf16> to vector<16x576xbf16>
    %c0_18 = arith.constant 0 : index
    %c0_19 = arith.constant 0 : index
    %25 = vector.load %arg3[%c0_18, %c0_19] : memref<576x64xbf16, #tpu.memory_space<vmem>>, vector<576x64xbf16>
    %cst_20 = arith.constant dense<0.000000e+00> : vector<16x64xf32>
    %26 = tpu.matmul %24, %25, %cst_20 {dimension_numbers = #tpu.dot_dimension_numbers<[1], [0], [0], [1], [0, 0, 1, 1], [], []>} : vector<16x576xbf16>, vector<576x64xbf16>, vector<16x64xf32> -> vector<16x64xf32>
    %c0_21 = arith.constant 0 : index
    %c0_22 = arith.constant 0 : index
    %27 = vector.load %arg4[%c0_21, %c0_22] : memref<1x64xf32, #tpu.memory_space<vmem>>, vector<1x64xf32>
    %28 = vector.broadcast %27 : vector<1x64xf32> to vector<16x64xf32>
    %29 = arith.addf %26, %28 : vector<16x64xf32>
    %cst_23 = arith.constant 0.000000e+00 : f32
    %30 = vector.broadcast %cst_23 : f32 to vector<16x64xf32>
    %31 = arith.maximumf %29, %30 : vector<16x64xf32>
    %32 = arith.truncf %31 : vector<16x64xf32> to vector<16x64xbf16>
    %c3 = arith.constant 3 : index
    %c0_24 = arith.constant 0 : index
    %c0_25 = arith.constant 0 : index
    %33 = vector.load %arg2[%c3, %c0_24, %c0_25] : memref<7x16x576xbf16, #tpu.memory_space<vmem>>, vector<1x16x576xbf16>
    %34 = vector.shape_cast %33 : vector<1x16x576xbf16> to vector<16x576xbf16>
    %c0_26 = arith.constant 0 : index
    %c0_27 = arith.constant 0 : index
    %35 = vector.load %arg3[%c0_26, %c0_27] : memref<576x64xbf16, #tpu.memory_space<vmem>>, vector<576x64xbf16>
    %cst_28 = arith.constant dense<0.000000e+00> : vector<16x64xf32>
    %36 = tpu.matmul %34, %35, %cst_28 {dimension_numbers = #tpu.dot_dimension_numbers<[1], [0], [0], [1], [0, 0, 1, 1], [], []>} : vector<16x576xbf16>, vector<576x64xbf16>, vector<16x64xf32> -> vector<16x64xf32>
    %c0_29 = arith.constant 0 : index
    %c0_30 = arith.constant 0 : index
    %37 = vector.load %arg4[%c0_29, %c0_30] : memref<1x64xf32, #tpu.memory_space<vmem>>, vector<1x64xf32>
    %38 = vector.broadcast %37 : vector<1x64xf32> to vector<16x64xf32>
    %39 = arith.addf %36, %38 : vector<16x64xf32>
    %cst_31 = arith.constant 0.000000e+00 : f32
    %40 = vector.broadcast %cst_31 : f32 to vector<16x64xf32>
    %41 = arith.maximumf %39, %40 : vector<16x64xf32>
    %42 = arith.truncf %41 : vector<16x64xf32> to vector<16x64xbf16>
    %c4 = arith.constant 4 : index
    %c0_32 = arith.constant 0 : index
    %c0_33 = arith.constant 0 : index
    %43 = vector.load %arg2[%c4, %c0_32, %c0_33] : memref<7x16x576xbf16, #tpu.memory_space<vmem>>, vector<1x16x576xbf16>
    %44 = vector.shape_cast %43 : vector<1x16x576xbf16> to vector<16x576xbf16>
    %c0_34 = arith.constant 0 : index
    %c0_35 = arith.constant 0 : index
    %45 = vector.load %arg3[%c0_34, %c0_35] : memref<576x64xbf16, #tpu.memory_space<vmem>>, vector<576x64xbf16>
    %cst_36 = arith.constant dense<0.000000e+00> : vector<16x64xf32>
    %46 = tpu.matmul %44, %45, %cst_36 {dimension_numbers = #tpu.dot_dimension_numbers<[1], [0], [0], [1], [0, 0, 1, 1], [], []>} : vector<16x576xbf16>, vector<576x64xbf16>, vector<16x64xf32> -> vector<16x64xf32>
    %c0_37 = arith.constant 0 : index
    %c0_38 = arith.constant 0 : index
    %47 = vector.load %arg4[%c0_37, %c0_38] : memref<1x64xf32, #tpu.memory_space<vmem>>, vector<1x64xf32>
    %48 = vector.broadcast %47 : vector<1x64xf32> to vector<16x64xf32>
    %49 = arith.addf %46, %48 : vector<16x64xf32>
    %cst_39 = arith.constant 0.000000e+00 : f32
    %50 = vector.broadcast %cst_39 : f32 to vector<16x64xf32>
    %51 = arith.maximumf %49, %50 : vector<16x64xf32>
    %52 = arith.truncf %51 : vector<16x64xf32> to vector<16x64xbf16>
    %c5 = arith.constant 5 : index
    %c0_40 = arith.constant 0 : index
    %c0_41 = arith.constant 0 : index
    %53 = vector.load %arg2[%c5, %c0_40, %c0_41] : memref<7x16x576xbf16, #tpu.memory_space<vmem>>, vector<1x16x576xbf16>
    %54 = vector.shape_cast %53 : vector<1x16x576xbf16> to vector<16x576xbf16>
    %c0_42 = arith.constant 0 : index
    %c0_43 = arith.constant 0 : index
    %55 = vector.load %arg3[%c0_42, %c0_43] : memref<576x64xbf16, #tpu.memory_space<vmem>>, vector<576x64xbf16>
    %cst_44 = arith.constant dense<0.000000e+00> : vector<16x64xf32>
    %56 = tpu.matmul %54, %55, %cst_44 {dimension_numbers = #tpu.dot_dimension_numbers<[1], [0], [0], [1], [0, 0, 1, 1], [], []>} : vector<16x576xbf16>, vector<576x64xbf16>, vector<16x64xf32> -> vector<16x64xf32>
    %c0_45 = arith.constant 0 : index
    %c0_46 = arith.constant 0 : index
    %57 = vector.load %arg4[%c0_45, %c0_46] : memref<1x64xf32, #tpu.memory_space<vmem>>, vector<1x64xf32>
    %58 = vector.broadcast %57 : vector<1x64xf32> to vector<16x64xf32>
    %59 = arith.addf %56, %58 : vector<16x64xf32>
    %cst_47 = arith.constant 0.000000e+00 : f32
    %60 = vector.broadcast %cst_47 : f32 to vector<16x64xf32>
    %61 = arith.maximumf %59, %60 : vector<16x64xf32>
    %62 = arith.truncf %61 : vector<16x64xf32> to vector<16x64xbf16>
    %c6 = arith.constant 6 : index
    %c0_48 = arith.constant 0 : index
    %c0_49 = arith.constant 0 : index
    %63 = vector.load %arg2[%c6, %c0_48, %c0_49] : memref<7x16x576xbf16, #tpu.memory_space<vmem>>, vector<1x16x576xbf16>
    %64 = vector.shape_cast %63 : vector<1x16x576xbf16> to vector<16x576xbf16>
    %c0_50 = arith.constant 0 : index
    %c0_51 = arith.constant 0 : index
    %65 = vector.load %arg3[%c0_50, %c0_51] : memref<576x64xbf16, #tpu.memory_space<vmem>>, vector<576x64xbf16>
    %cst_52 = arith.constant dense<0.000000e+00> : vector<16x64xf32>
    %66 = tpu.matmul %64, %65, %cst_52 {dimension_numbers = #tpu.dot_dimension_numbers<[1], [0], [0], [1], [0, 0, 1, 1], [], []>} : vector<16x576xbf16>, vector<576x64xbf16>, vector<16x64xf32> -> vector<16x64xf32>
    %c0_53 = arith.constant 0 : index
    %c0_54 = arith.constant 0 : index
    %67 = vector.load %arg4[%c0_53, %c0_54] : memref<1x64xf32, #tpu.memory_space<vmem>>, vector<1x64xf32>
    %68 = vector.broadcast %67 : vector<1x64xf32> to vector<16x64xf32>
    %69 = arith.addf %66, %68 : vector<16x64xf32>
    %cst_55 = arith.constant 0.000000e+00 : f32
    %70 = vector.broadcast %cst_55 : f32 to vector<16x64xf32>
    %71 = arith.maximumf %69, %70 : vector<16x64xf32>
    %72 = arith.truncf %71 : vector<16x64xf32> to vector<16x64xbf16>
    %73 = tpu.concatenate %12, %22, %32, %42, %52, %62, %72 in 1 : vector<16x64xbf16>, vector<16x64xbf16>, vector<16x64xbf16>, vector<16x64xbf16>, vector<16x64xbf16>, vector<16x64xbf16>, vector<16x64xbf16> -> vector<16x448xbf16>
    %c0_56 = arith.constant 0 : index
    %c0_57 = arith.constant 0 : index
    %74 = vector.load %arg10[%c0_56, %c0_57] : memref<16x512xf32, #tpu.memory_space<vmem>>, vector<16x512xf32>
    %75 = arith.index_cast %arg1 : i32 to index
    %c0_58 = arith.constant 0 : index
    %c0_59 = arith.constant 0 : index
    %76 = vector.load %arg5[%75, %c0_58, %c0_59] : memref<7x448x512xbf16, #tpu.memory_space<vmem>>, vector<1x448x512xbf16>
    %77 = vector.shape_cast %76 : vector<1x448x512xbf16> to vector<448x512xbf16>
    %cst_60 = arith.constant dense<0.000000e+00> : vector<16x512xf32>
    %78 = tpu.matmul %73, %77, %cst_60 {dimension_numbers = #tpu.dot_dimension_numbers<[1], [0], [0], [1], [0, 0, 1, 1], [], []>} : vector<16x448xbf16>, vector<448x512xbf16>, vector<16x512xf32> -> vector<16x512xf32>
    %79 = arith.addf %74, %78 : vector<16x512xf32>
    %c0_61 = arith.constant 0 : index
    %c0_62 = arith.constant 0 : index
    %80 = vector.load %arg10[%c0_61, %c0_62] : memref<16x512xf32, #tpu.memory_space<vmem>>, vector<16x512xf32>
    tpu.vector_store %arg10[%c0_61, %c0_62], %79 {strides = array<i32>} : memref<16x512xf32, #tpu.memory_space<vmem>>, vector<16x512xf32>,
    %c6_i32 = arith.constant 6 : i32
    %81 = arith.cmpi eq, %arg1, %c6_i32 : i32
    %82 = arith.extui %81 : i1 to i32
    %c0_i32_63 = arith.constant 0 : i32
    %83 = arith.cmpi ne, %82, %c0_i32_63 : i32
    scf.if %83 {
      %c0_64 = arith.constant 0 : index
      %c0_65 = arith.constant 0 : index
      %84 = vector.load %arg10[%c0_64, %c0_65] : memref<16x512xf32, #tpu.memory_space<vmem>>, vector<16x512xf32>
      %c0_66 = arith.constant 0 : index
      %c0_67 = arith.constant 0 : index
      %85 = vector.load %arg6[%c0_66, %c0_67] : memref<1x512xf32, #tpu.memory_space<vmem>>, vector<1x512xf32>
      %86 = vector.broadcast %85 : vector<1x512xf32> to vector<16x512xf32>
      %87 = arith.addf %84, %86 : vector<16x512xf32>
      %cst_68 = arith.constant 0.000000e+00 : f32
      %88 = vector.broadcast %cst_68 : f32 to vector<16x512xf32>
      %89 = arith.maximumf %87, %88 : vector<16x512xf32>
      %90 = arith.truncf %89 : vector<16x512xf32> to vector<16x512xbf16>
      %c0_69 = arith.constant 0 : index
      %c0_70 = arith.constant 0 : index
      %91 = vector.load %arg7[%c0_69, %c0_70] : memref<512x128xbf16, #tpu.memory_space<vmem>>, vector<512x128xbf16>
      %cst_71 = arith.constant dense<0.000000e+00> : vector<16x128xf32>
      %92 = tpu.matmul %90, %91, %cst_71 {dimension_numbers = #tpu.dot_dimension_numbers<[1], [0], [0], [1], [0, 0, 1, 1], [], []>} : vector<16x512xbf16>, vector<512x128xbf16>, vector<16x128xf32> -> vector<16x128xf32>
      %c0_72 = arith.constant 0 : index
      %c0_73 = arith.constant 0 : index
      %93 = vector.load %arg8[%c0_72, %c0_73] : memref<1x128xf32, #tpu.memory_space<vmem>>, vector<1x128xf32>
      %94 = vector.broadcast %93 : vector<1x128xf32> to vector<16x128xf32>
      %95 = arith.addf %92, %94 : vector<16x128xf32>
      %c0_74 = arith.constant 0 : index
      %c0_75 = arith.constant 0 : index
      %96 = vector.load %arg9[%c0_74, %c0_75] : memref<16x128xf32, #tpu.memory_space<vmem>>, vector<16x128xf32>
      tpu.vector_store %arg9[%c0_74, %c0_75], %95 {strides = array<i32>} : memref<16x128xf32, #tpu.memory_space<vmem>>, vector<16x128xf32>,
    } else {
    }
    return
  }
  func.func @transform_0(%arg0: i32, %arg1: i32) -> (i32, i32, i32) {
    %c0_i32 = arith.constant 0 : i32
    %c0_i32_0 = arith.constant 0 : i32
    return %arg1, %arg0, %c0_i32 : i32, i32, i32
  }
  func.func @transform_1(%arg0: i32, %arg1: i32) -> (i32, i32) {
    %c0_i32 = arith.constant 0 : i32
    %c0_i32_0 = arith.constant 0 : i32
    %c0_i32_1 = arith.constant 0 : i32
    return %c0_i32, %c0_i32_0 : i32, i32
  }
  func.func @transform_2(%arg0: i32, %arg1: i32) -> (i32, i32) {
    %c0_i32 = arith.constant 0 : i32
    %c0_i32_0 = arith.constant 0 : i32
    %c0_i32_1 = arith.constant 0 : i32
    return %c0_i32, %c0_i32_0 : i32, i32
  }
  func.func @transform_3(%arg0: i32, %arg1: i32) -> (i32, i32, i32) {
    %c0_i32 = arith.constant 0 : i32
    %c0_i32_0 = arith.constant 0 : i32
    %c0_i32_1 = arith.constant 0 : i32
    %c0_i32_2 = arith.constant 0 : i32
    return %c0_i32, %c0_i32_0, %c0_i32_1 : i32, i32, i32
  }
  func.func @transform_4(%arg0: i32, %arg1: i32) -> (i32, i32) {
    %c0_i32 = arith.constant 0 : i32
    %c0_i32_0 = arith.constant 0 : i32
    %c0_i32_1 = arith.constant 0 : i32
    return %c0_i32, %c0_i32_0 : i32, i32
  }
  func.func @transform_5(%arg0: i32, %arg1: i32) -> (i32, i32) {
    %c0_i32 = arith.constant 0 : i32
    %c0_i32_0 = arith.constant 0 : i32
    %c0_i32_1 = arith.constant 0 : i32
    return %c0_i32, %c0_i32_0 : i32, i32
  }
  func.func @transform_6(%arg0: i32, %arg1: i32) -> (i32, i32) {
    %c0_i32 = arith.constant 0 : i32
    %c0_i32_0 = arith.constant 0 : i32
    %c0_i32_1 = arith.constant 0 : i32
    return %c0_i32, %c0_i32_0 : i32, i32
  }
  func.func @transform_7(%arg0: i32, %arg1: i32) -> (i32, i32) {
    %c0_i32 = arith.constant 0 : i32
    %c0_i32_0 = arith.constant 0 : i32
    return %arg0, %c0_i32 : i32, i32
  }
}

</mosaic_0001>

<llo_original>
// kernel: qnetwork_forward.3
$region0: #{qnetwork_forward.3}
  #allocation0 [shape = 'u32[]', space=smem, size = 0x4, offset = 0x4, fixed_abs, tag = 'smem constant byte address 0x4 - core index']
  #allocation1 [shape = 'u32[144,128]{1,0:T(1,128)}', space=vmem, size = 0x12000, scoped, tag = 'internal scratch']
  %s0 = inlined_call_operand.vmem [shape: bf16[800,256], index: 0, kind: input, shape index: {}]
  %s1 = inlined_call_operand.vmem [shape: bf16[256,32], index: 1, kind: input, shape index: {}]
  %s2 = inlined_call_operand.vmem [shape: f32[1,32], index: 2, kind: input, shape index: {}]
  %s3 = inlined_call_operand.vmem [shape: bf16[800,32], index: 3, kind: output, shape index: {}]
  %s4 = sld [smem:[#allocation0]]
  $region22: #{qnetwork_forward.3} parent=0
    _
  %s6 = ssub.s32 1, %s4
  %s7 = scalar_select 0, %s6, %s4
  // Predicated region
  $region2: #{qnetwork_forward.3} parent=0 // pred_check
    _
  $region3: #{qnetwork_forward.3} parent=0 // pred_check_branch
    %9 = sbr.rel (0) target = $region5
  $region4: #{qnetwork_forward.3} parent=0 // pred_region
    _
  $region5: #{qnetwork_forward.3} parent=0 // pred_fallthru
    _
  // Predicated region
  $region6: #{qnetwork_forward.3} parent=0 // pred_check
    _
  $region7: #{qnetwork_forward.3} parent=0 // pred_check_branch
    %11 = sbr.rel (0) target = $region9
  $region8: #{qnetwork_forward.3} parent=0 // pred_region
    _
  $region9: #{qnetwork_forward.3} parent=0 // pred_fallthru
    _
  // Predicated region
  $region10: #{qnetwork_forward.3} parent=0 // pred_check
    _
  $region11: #{qnetwork_forward.3} parent=0 // pred_check_branch
    %13 = sbr.rel (0) target = $region13
  $region12: #{qnetwork_forward.3} parent=0 // pred_region
    _
  $region13: #{qnetwork_forward.3} parent=0 // pred_fallthru
    _
  %v15 = vld [vmem:[%s0] sm:$0xff]
  %v16 = vld [vmem:[%s0 + $0x8] sm:$0xff]
  %v17 = vld [vmem:[%s0 + $0x10] sm:$0xff]
  %v18 = vld [vmem:[%s0 + $0x18] sm:$0xff]
  %v19 = vld [vmem:[%s0 + $0x20] sm:$0xff]
  %v20 = vld [vmem:[%s0 + $0x28] sm:$0xff]
  %v21 = vld [vmem:[%s0 + $0x30] sm:$0xff]
  %v22 = vld [vmem:[%s0 + $0x38] sm:$0xff]
  %v23 = vld [vmem:[%s0 + $0x40] sm:$0xff]
  %v24 = vld [vmem:[%s0 + $0x48] sm:$0xff]
  %v25 = vld [vmem:[%s0 + $0x50] sm:$0xff]
  %v26 = vld [vmem:[%s0 + $0x58] sm:$0xff]
  %v27 = vld [vmem:[%s0 + $0x60] sm:$0xff]
  %v28 = vld [vmem:[%s0 + $0x68] sm:$0xff]
  %v29 = vld [vmem:[%s0 + $0x70] sm:$0xff]
  %v30 = vld [vmem:[%s0 + $0x78] sm:$0xff]
  %v31 = vld [vmem:[%s0 + $0x80] sm:$0xff]
  %v32 = vld [vmem:[%s0 + $0x88] sm:$0xff]
  %v33 = vld [vmem:[%s0 + $0x90] sm:$0xff]
  %v34 = vld [vmem:[%s0 + $0x98] sm:$0xff]
  %v35 = vld [vmem:[%s0 + $0xa0] sm:$0xff]
  %v36 = vld [vmem:[%s0 + $0xa8] sm:$0xff]
  %v37 = vld [vmem:[%s0 + $0xb0] sm:$0xff]
  %v38 = vld [vmem:[%s0 + $0xb8] sm:$0xff]
  %v39 = vld [vmem:[%s0 + $0xc0] sm:$0xff]
  %v40 = vld [vmem:[%s0 + $0xc8] sm:$0xff]
  %v41 = vld [vmem:[%s0 + $0xd0] sm:$0xff]
  %v42 = vld [vmem:[%s0 + $0xd8] sm:$0xff]
  %v43 = vld [vmem:[%s0 + $0xe0] sm:$0xff]
  %v44 = vld [vmem:[%s0 + $0xe8] sm:$0xff]
  %v45 = vld [vmem:[%s0 + $0xf0] sm:$0xff]
  %v46 = vld [vmem:[%s0 + $0xf8] sm:$0xff]
  %v47 = vld [vmem:[%s0 + $0x100] sm:$0xff]
  %v48 = vld [vmem:[%s0 + $0x108] sm:$0xff]
  %v49 = vld [vmem:[%s0 + $0x110] sm:$0xff]
  %v50 = vld [vmem:[%s0 + $0x118] sm:$0xff]
  %v51 = vld [vmem:[%s0 + $0x120] sm:$0xff]
  %v52 = vld [vmem:[%s0 + $0x128] sm:$0xff]
  %v53 = vld [vmem:[%s0 + $0x130] sm:$0xff]
  %v54 = vld [vmem:[%s0 + $0x138] sm:$0xff]
  %v55 = vld [vmem:[%s0 + $0x140] sm:$0xff]
  %v56 = vld [vmem:[%s0 + $0x148] sm:$0xff]
  %v57 = vld [vmem:[%s0 + $0x150] sm:$0xff]
  %v58 = vld [vmem:[%s0 + $0x158] sm:$0xff]
  %v59 = vld [vmem:[%s0 + $0x160] sm:$0xff]
  %v60 = vld [vmem:[%s0 + $0x168] sm:$0xff]
  %v61 = vld [vmem:[%s0 + $0x170] sm:$0xff]
  %v62 = vld [vmem:[%s0 + $0x178] sm:$0xff]
  %v63 = vld [vmem:[%s0 + $0x180] sm:$0xff]
  %v64 = vld [vmem:[%s0 + $0x188] sm:$0xff]
  %v65 = vld [vmem:[%s0 + $0x190] sm:$0xff]
  %v66 = vld [vmem:[%s0 + $0x198] sm:$0xff]
  %v67 = vld [vmem:[%s0 + $0x1a0] sm:$0xff]
  %v68 = vld [vmem:[%s0 + $0x1a8] sm:$0xff]
  %v69 = vld [vmem:[%s0 + $0x1b0] sm:$0xff]
  %v70 = vld [vmem:[%s0 + $0x1b8] sm:$0xff]
  %v71 = vld [vmem:[%s0 + $0x1c0] sm:$0xff]
  %v72 = vld [vmem:[%s0 + $0x1c8] sm:$0xff]
  %v73 = vld [vmem:[%s0 + $0x1d0] sm:$0xff]
  %v74 = vld [vmem:[%s0 + $0x1d8] sm:$0xff]
  %v75 = vld [vmem:[%s0 + $0x1e0] sm:$0xff]
  %v76 = vld [vmem:[%s0 + $0x1e8] sm:$0xff]
  %v77 = vld [vmem:[%s0 + $0x1f0] sm:$0xff]
  %v78 = vld [vmem:[%s0 + $0x1f8] sm:$0xff]
  %v79 = vld [vmem:[%s0 + $0x200] sm:$0xff]
  %v80 = vld [vmem:[%s0 + $0x208] sm:$0xff]
  %v81 = vld [vmem:[%s0 + $0x210] sm:$0xff]
  %v82 = vld [vmem:[%s0 + $0x218] sm:$0xff]
  %v83 = vld [vmem:[%s0 + $0x220] sm:$0xff]
  %v84 = vld [vmem:[%s0 + $0x228] sm:$0xff]
  %v85 = vld [vmem:[%s0 + $0x230] sm:$0xff]
  %v86 = vld [vmem:[%s0 + $0x238] sm:$0xff]
  %v87 = vld [vmem:[%s0 + $0x240] sm:$0xff]
  %v88 = vld [vmem:[%s0 + $0x248] sm:$0xff]
  %v89 = vld [vmem:[%s0 + $0x250] sm:$0xff]
  %v90 = vld [vmem:[%s0 + $0x258] sm:$0xff]
  %v91 = vld [vmem:[%s0 + $0x260] sm:$0xff]
  %v92 = vld [vmem:[%s0 + $0x268] sm:$0xff]
  %v93 = vld [vmem:[%s0 + $0x270] sm:$0xff]
  %v94 = vld [vmem:[%s0 + $0x278] sm:$0xff]
  %v95 = vld [vmem:[%s0 + $0x280] sm:$0xff]
  %v96 = vld [vmem:[%s0 + $0x288] sm:$0xff]
  %v97 = vld [vmem:[%s0 + $0x290] sm:$0xff]
  %v98 = vld [vmem:[%s0 + $0x298] sm:$0xff]
  %v99 = vld [vmem:[%s0 + $0x2a0] sm:$0xff]
  %v100 = vld [vmem:[%s0 + $0x2a8] sm:$0xff]
  %v101 = vld [vmem:[%s0 + $0x2b0] sm:$0xff]
  %v102 = vld [vmem:[%s0 + $0x2b8] sm:$0xff]
  %v103 = vld [vmem:[%s0 + $0x2c0] sm:$0xff]
  %v104 = vld [vmem:[%s0 + $0x2c8] sm:$0xff]
  %v105 = vld [vmem:[%s0 + $0x2d0] sm:$0xff]
  %v106 = vld [vmem:[%s0 + $0x2d8] sm:$0xff]
  %v107 = vld [vmem:[%s0 + $0x2e0] sm:$0xff]
  %v108 = vld [vmem:[%s0 + $0x2e8] sm:$0xff]
  %v109 = vld [vmem:[%s0 + $0x2f0] sm:$0xff]
  %v110 = vld [vmem:[%s0 + $0x2f8] sm:$0xff]
  %v111 = vld [vmem:[%s0 + $0x300] sm:$0xff]
  %v112 = vld [vmem:[%s0 + $0x308] sm:$0xff]
  %v113 = vld [vmem:[%s0 + $0x310] sm:$0xff]
  %v114 = vld [vmem:[%s0 + $0x318] sm:$0xff]
  %v115 = vld [vmem:[%s1] sm:$0xf]
  %v116 = vld [vmem:[%s1 + $0x4] sm:$0xf]
  %v117 = vld [vmem:[%s1 + $0x8] sm:$0xf]
  %v118 = vld [vmem:[%s1 + $0xc] sm:$0xf]
  %v119 = vld [vmem:[%s1 + $0x10] sm:$0xf]
  %v120 = vld [vmem:[%s1 + $0x14] sm:$0xf]
  %v121 = vld [vmem:[%s1 + $0x18] sm:$0xf]
  %v122 = vld [vmem:[%s1 + $0x1c] sm:$0xf]
  %v123 = vld [vmem:[%s1 + $0x20] sm:$0xf]
  %v124 = vld [vmem:[%s1 + $0x24] sm:$0xf]
  %v125 = vld [vmem:[%s1 + $0x28] sm:$0xf]
  %v126 = vld [vmem:[%s1 + $0x2c] sm:$0xf]
  %v127 = vld [vmem:[%s1 + $0x30] sm:$0xf]
  %v128 = vld [vmem:[%s1 + $0x34] sm:$0xf]
  %v129 = vld [vmem:[%s1 + $0x38] sm:$0xf]
  %v130 = vld [vmem:[%s1 + $0x3c] sm:$0xf]
  %v131 = vld [vmem:[%s1 + $0x40] sm:$0xf]
  %v132 = vld [vmem:[%s1 + $0x44] sm:$0xf]
  %v133 = vld [vmem:[%s1 + $0x48] sm:$0xf]
  %v134 = vld [vmem:[%s1 + $0x4c] sm:$0xf]
  %v135 = vld [vmem:[%s1 + $0x50] sm:$0xf]
  %v136 = vld [vmem:[%s1 + $0x54] sm:$0xf]
  %v137 = vld [vmem:[%s1 + $0x58] sm:$0xf]
  %v138 = vld [vmem:[%s1 + $0x5c] sm:$0xf]
  %v139 = vld [vmem:[%s1 + $0x60] sm:$0xf]
  %v140 = vld [vmem:[%s1 + $0x64] sm:$0xf]
  %v141 = vld [vmem:[%s1 + $0x68] sm:$0xf]
  %v142 = vld [vmem:[%s1 + $0x6c] sm:$0xf]
  %v143 = vld [vmem:[%s1 + $0x70] sm:$0xf]
  %v144 = vld [vmem:[%s1 + $0x74] sm:$0xf]
  %v145 = vld [vmem:[%s1 + $0x78] sm:$0xf]
  %v146 = vld [vmem:[%s1 + $0x7c] sm:$0xf]
  %v147 = vld [vmem:[%s2] sm:$0x1]
  %v149 = vlaneseq
  %v150 = vshrl.u32 %v149, 7
  %v151 = vsub.s32 0, %v150
  %v152 = vrot.slane %v147, %v151
  %v254 = vunpack.c.l.b16 %v15
  %v255 = vunpack.c.h.b16 %v15
  %v256 = vunpack.c.l.b16 %v16
  %v257 = vunpack.c.h.b16 %v16
  %v258 = vunpack.c.l.b16 %v17
  %v259 = vunpack.c.h.b16 %v17
  %v260 = vunpack.c.l.b16 %v18
  %v261 = vunpack.c.h.b16 %v18
  %v262 = vunpack.c.l.b16 %v19
  %v263 = vunpack.c.h.b16 %v19
  %v264 = vunpack.c.l.b16 %v20
  %v265 = vunpack.c.h.b16 %v20
  %v266 = vunpack.c.l.b16 %v21
  %v267 = vunpack.c.h.b16 %v21
  %v268 = vunpack.c.l.b16 %v22
  %v269 = vunpack.c.h.b16 %v22
  %v270 = vunpack.c.l.b16 %v23
  %v271 = vunpack.c.h.b16 %v23
  %v272 = vunpack.c.l.b16 %v24
  %v273 = vunpack.c.h.b16 %v24
  %v274 = vunpack.c.l.b16 %v25
  %v275 = vunpack.c.h.b16 %v25
  %v276 = vunpack.c.l.b16 %v26
  %v277 = vunpack.c.h.b16 %v26
  %v278 = vunpack.c.l.b16 %v27
  %v279 = vunpack.c.h.b16 %v27
  %v280 = vunpack.c.l.b16 %v28
  %v281 = vunpack.c.h.b16 %v28
  %v282 = vunpack.c.l.b16 %v29
  %v283 = vunpack.c.h.b16 %v29
  %v284 = vunpack.c.l.b16 %v30
  %v285 = vunpack.c.h.b16 %v30
  %v286 = vunpack.c.l.b16 %v31
  %v287 = vunpack.c.h.b16 %v31
  %v288 = vunpack.c.l.b16 %v32
  %v289 = vunpack.c.h.b16 %v32
  %v290 = vunpack.c.l.b16 %v33
  %v291 = vunpack.c.h.b16 %v33
  %v292 = vunpack.c.l.b16 %v34
  %v293 = vunpack.c.h.b16 %v34
  %v294 = vunpack.c.l.b16 %v35
  %v295 = vunpack.c.h.b16 %v35
  %v296 = vunpack.c.l.b16 %v36
  %v297 = vunpack.c.h.b16 %v36
  %v298 = vunpack.c.l.b16 %v37
  %v299 = vunpack.c.h.b16 %v37
  %v300 = vunpack.c.l.b16 %v38
  %v301 = vunpack.c.h.b16 %v38
  %v302 = vunpack.c.l.b16 %v39
  %v303 = vunpack.c.h.b16 %v39
  %v304 = vunpack.c.l.b16 %v40
  %v305 = vunpack.c.h.b16 %v40
  %v306 = vunpack.c.l.b16 %v41
  %v307 = vunpack.c.h.b16 %v41
  %v308 = vunpack.c.l.b16 %v42
  %v309 = vunpack.c.h.b16 %v42
  %v310 = vunpack.c.l.b16 %v43
  %v311 = vunpack.c.h.b16 %v43
  %v312 = vunpack.c.l.b16 %v44
  %v313 = vunpack.c.h.b16 %v44
  %v314 = vunpack.c.l.b16 %v45
  %v315 = vunpack.c.h.b16 %v45
  %v316 = vunpack.c.l.b16 %v46
  %v317 = vunpack.c.h.b16 %v46
  %v318 = vunpack.c.l.b16 %v47
  %v319 = vunpack.c.h.b16 %v47
  %v320 = vunpack.c.l.b16 %v48
  %v321 = vunpack.c.h.b16 %v48
  %v322 = vunpack.c.l.b16 %v49
  %v323 = vunpack.c.h.b16 %v49
  %v324 = vunpack.c.l.b16 %v50
  %v325 = vunpack.c.h.b16 %v50
  %v326 = vunpack.c.l.b16 %v51
  %v327 = vunpack.c.h.b16 %v51
  %v328 = vunpack.c.l.b16 %v52
  %v329 = vunpack.c.h.b16 %v52
  %v330 = vunpack.c.l.b16 %v53
  %v331 = vunpack.c.h.b16 %v53
  %v332 = vunpack.c.l.b16 %v54
  %v333 = vunpack.c.h.b16 %v54
  %v334 = vunpack.c.l.b16 %v55
  %v335 = vunpack.c.h.b16 %v55
  %v336 = vunpack.c.l.b16 %v56
  %v337 = vunpack.c.h.b16 %v56
  %v338 = vunpack.c.l.b16 %v57
  %v339 = vunpack.c.h.b16 %v57
  %v340 = vunpack.c.l.b16 %v58
  %v341 = vunpack.c.h.b16 %v58
  %v342 = vunpack.c.l.b16 %v59
  %v343 = vunpack.c.h.b16 %v59
  %v344 = vunpack.c.l.b16 %v60
  %v345 = vunpack.c.h.b16 %v60
  %v346 = vunpack.c.l.b16 %v61
  %v347 = vunpack.c.h.b16 %v61
  %v348 = vunpack.c.l.b16 %v62
  %v349 = vunpack.c.h.b16 %v62
  %v350 = vunpack.c.l.b16 %v63
  %v351 = vunpack.c.h.b16 %v63
  %v352 = vunpack.c.l.b16 %v64
  %v353 = vunpack.c.h.b16 %v64
  %v354 = vunpack.c.l.b16 %v65
  %v355 = vunpack.c.h.b16 %v65
  %v356 = vunpack.c.l.b16 %v66
  %v357 = vunpack.c.h.b16 %v66
  %v358 = vunpack.c.l.b16 %v67
  %v359 = vunpack.c.h.b16 %v67
  %v360 = vunpack.c.l.b16 %v68
  %v361 = vunpack.c.h.b16 %v68
  %v362 = vunpack.c.l.b16 %v69
  %v363 = vunpack.c.h.b16 %v69
  %v364 = vunpack.c.l.b16 %v70
  %v365 = vunpack.c.h.b16 %v70
  %v366 = vunpack.c.l.b16 %v71
  %v367 = vunpack.c.h.b16 %v71
  %v368 = vunpack.c.l.b16 %v72
  %v369 = vunpack.c.h.b16 %v72
  %v370 = vunpack.c.l.b16 %v73
  %v371 = vunpack.c.h.b16 %v73
  %v372 = vunpack.c.l.b16 %v74
  %v373 = vunpack.c.h.b16 %v74
  %v374 = vunpack.c.l.b16 %v75
  %v375 = vunpack.c.h.b16 %v75
  %v376 = vunpack.c.l.b16 %v76
  %v377 = vunpack.c.h.b16 %v76
  %v378 = vunpack.c.l.b16 %v77
  %v379 = vunpack.c.h.b16 %v77
  %v380 = vunpack.c.l.b16 %v78
  %v381 = vunpack.c.h.b16 %v78
  %v382 = vunpack.c.l.b16 %v79
  %v383 = vunpack.c.h.b16 %v79
  %v384 = vunpack.c.l.b16 %v80
  %v385 = vunpack.c.h.b16 %v80
  %v386 = vunpack.c.l.b16 %v81
  %v387 = vunpack.c.h.b16 %v81
  %v388 = vunpack.c.l.b16 %v82
  %v389 = vunpack.c.h.b16 %v82
  %v390 = vunpack.c.l.b16 %v83
  %v391 = vunpack.c.h.b16 %v83
  %v392 = vunpack.c.l.b16 %v84
  %v393 = vunpack.c.h.b16 %v84
  %v394 = vunpack.c.l.b16 %v85
  %v395 = vunpack.c.h.b16 %v85
  %v396 = vunpack.c.l.b16 %v86
  %v397 = vunpack.c.h.b16 %v86
  %v398 = vunpack.c.l.b16 %v87
  %v399 = vunpack.c.h.b16 %v87
  %v400 = vunpack.c.l.b16 %v88
  %v401 = vunpack.c.h.b16 %v88
  %v402 = vunpack.c.l.b16 %v89
  %v403 = vunpack.c.h.b16 %v89
  %v404 = vunpack.c.l.b16 %v90
  %v405 = vunpack.c.h.b16 %v90
  %v406 = vunpack.c.l.b16 %v91
  %v407 = vunpack.c.h.b16 %v91
  %v408 = vunpack.c.l.b16 %v92
  %v409 = vunpack.c.h.b16 %v92
  %v410 = vunpack.c.l.b16 %v93
  %v411 = vunpack.c.h.b16 %v93
  %v412 = vunpack.c.l.b16 %v94
  %v413 = vunpack.c.h.b16 %v94
  %v414 = vunpack.c.l.b16 %v95
  %v415 = vunpack.c.h.b16 %v95
  %v416 = vunpack.c.l.b16 %v96
  %v417 = vunpack.c.h.b16 %v96
  %v418 = vunpack.c.l.b16 %v97
  %v419 = vunpack.c.h.b16 %v97
  %v420 = vunpack.c.l.b16 %v98
  %v421 = vunpack.c.h.b16 %v98
  %v422 = vunpack.c.l.b16 %v99
  %v423 = vunpack.c.h.b16 %v99
  %v424 = vunpack.c.l.b16 %v100
  %v425 = vunpack.c.h.b16 %v100
  %v426 = vunpack.c.l.b16 %v101
  %v427 = vunpack.c.h.b16 %v101
  %v428 = vunpack.c.l.b16 %v102
  %v429 = vunpack.c.h.b16 %v102
  %v430 = vunpack.c.l.b16 %v103
  %v431 = vunpack.c.h.b16 %v103
  %v432 = vunpack.c.l.b16 %v104
  %v433 = vunpack.c.h.b16 %v104
  %v434 = vunpack.c.l.b16 %v105
  %v435 = vunpack.c.h.b16 %v105
  %v436 = vunpack.c.l.b16 %v106
  %v437 = vunpack.c.h.b16 %v106
  %v438 = vunpack.c.l.b16 %v107
  %v439 = vunpack.c.h.b16 %v107
  %v440 = vunpack.c.l.b16 %v108
  %v441 = vunpack.c.h.b16 %v108
  %v442 = vunpack.c.l.b16 %v109
  %v443 = vunpack.c.h.b16 %v109
  %v444 = vunpack.c.l.b16 %v110
  %v445 = vunpack.c.h.b16 %v110
  %v446 = vunpack.c.l.b16 %v111
  %v447 = vunpack.c.h.b16 %v111
  %v448 = vunpack.c.l.b16 %v112
  %v449 = vunpack.c.h.b16 %v112
  %v450 = vunpack.c.l.b16 %v113
  %v451 = vunpack.c.h.b16 %v113
  %v452 = vunpack.c.l.b16 %v114
  %v453 = vunpack.c.h.b16 %v114
  %v454 = vpack.c.b16 %v256, %v254
  %v455 = vpack.c.b16 %v257, %v255
  %v456 = vpack.c.b16 %v260, %v258
  %v457 = vpack.c.b16 %v261, %v259
  %v458 = vpack.c.b16 %v264, %v262
  %v459 = vpack.c.b16 %v265, %v263
  %v460 = vpack.c.b16 %v268, %v266
  %v461 = vpack.c.b16 %v269, %v267
  %v462 = vpack.c.b16 %v272, %v270
  %v463 = vpack.c.b16 %v273, %v271
  %v464 = vpack.c.b16 %v276, %v274
  %v465 = vpack.c.b16 %v277, %v275
  %v466 = vpack.c.b16 %v280, %v278
  %v467 = vpack.c.b16 %v281, %v279
  %v468 = vpack.c.b16 %v284, %v282
  %v469 = vpack.c.b16 %v285, %v283
  %v470 = vpack.c.b16 %v288, %v286
  %v471 = vpack.c.b16 %v289, %v287
  %v472 = vpack.c.b16 %v292, %v290
  %v473 = vpack.c.b16 %v293, %v291
  %v474 = vpack.c.b16 %v296, %v294
  %v475 = vpack.c.b16 %v297, %v295
  %v476 = vpack.c.b16 %v300, %v298
  %v477 = vpack.c.b16 %v301, %v299
  %v478 = vpack.c.b16 %v304, %v302
  %v479 = vpack.c.b16 %v305, %v303
  %v480 = vpack.c.b16 %v308, %v306
  %v481 = vpack.c.b16 %v309, %v307
  %v482 = vpack.c.b16 %v312, %v310
  %v483 = vpack.c.b16 %v313, %v311
  %v484 = vpack.c.b16 %v316, %v314
  %v485 = vpack.c.b16 %v317, %v315
  %v486 = vpack.c.b16 %v320, %v318
  %v487 = vpack.c.b16 %v321, %v319
  %v488 = vpack.c.b16 %v324, %v322
  %v489 = vpack.c.b16 %v325, %v323
  %v490 = vpack.c.b16 %v328, %v326
  %v491 = vpack.c.b16 %v329, %v327
  %v492 = vpack.c.b16 %v332, %v330
  %v493 = vpack.c.b16 %v333, %v331
  %v494 = vpack.c.b16 %v336, %v334
  %v495 = vpack.c.b16 %v337, %v335
  %v496 = vpack.c.b16 %v340, %v338
  %v497 = vpack.c.b16 %v341, %v339
  %v498 = vpack.c.b16 %v344, %v342
  %v499 = vpack.c.b16 %v345, %v343
  %v500 = vpack.c.b16 %v348, %v346
  %v501 = vpack.c.b16 %v349, %v347
  %v502 = vpack.c.b16 %v352, %v350
  %v503 = vpack.c.b16 %v353, %v351
  %v504 = vpack.c.b16 %v356, %v354
  %v505 = vpack.c.b16 %v357, %v355
  %v506 = vpack.c.b16 %v360, %v358
  %v507 = vpack.c.b16 %v361, %v359
  %v508 = vpack.c.b16 %v364, %v362
  %v509 = vpack.c.b16 %v365, %v363
  %v510 = vpack.c.b16 %v368, %v366
  %v511 = vpack.c.b16 %v369, %v367
  %v512 = vpack.c.b16 %v372, %v370
  %v513 = vpack.c.b16 %v373, %v371
  %v514 = vpack.c.b16 %v376, %v374
  %v515 = vpack.c.b16 %v377, %v375
  %v516 = vpack.c.b16 %v380, %v378
  %v517 = vpack.c.b16 %v381, %v379
  %v518 = vpack.c.b16 %v384, %v382
  %v519 = vpack.c.b16 %v385, %v383
  %v520 = vpack.c.b16 %v388, %v386
  %v521 = vpack.c.b16 %v389, %v387
  %v522 = vpack.c.b16 %v392, %v390
  %v523 = vpack.c.b16 %v393, %v391
  %v524 = vpack.c.b16 %v396, %v394
  %v525 = vpack.c.b16 %v397, %v395
  %v526 = vpack.c.b16 %v400, %v398
  %v527 = vpack.c.b16 %v401, %v399
  %v528 = vpack.c.b16 %v404, %v402
  %v529 = vpack.c.b16 %v405, %v403
  %v530 = vpack.c.b16 %v408, %v406
  %v531 = vpack.c.b16 %v409, %v407
  %v532 = vpack.c.b16 %v412, %v410
  %v533 = vpack.c.b16 %v413, %v411
  %v534 = vpack.c.b16 %v416, %v414
  %v535 = vpack.c.b16 %v417, %v415
  %v536 = vpack.c.b16 %v420, %v418
  %v537 = vpack.c.b16 %v421, %v419
  %v538 = vpack.c.b16 %v424, %v422
  %v539 = vpack.c.b16 %v425, %v423
  %v540 = vpack.c.b16 %v428, %v426
  %v541 = vpack.c.b16 %v429, %v427
  %v542 = vpack.c.b16 %v432, %v430
  %v543 = vpack.c.b16 %v433, %v431
  %v544 = vpack.c.b16 %v436, %v434
  %v545 = vpack.c.b16 %v437, %v435
  %v546 = vpack.c.b16 %v440, %v438
  %v547 = vpack.c.b16 %v441, %v439
  %v548 = vpack.c.b16 %v444, %v442
  %v549 = vpack.c.b16 %v445, %v443
  %v550 = vpack.c.b16 %v448, %v446
  %v551 = vpack.c.b16 %v449, %v447
  %v552 = vpack.c.b16 %v452, %v450
  %v553 = vpack.c.b16 %v453, %v451
  %v686 = vunpack.c.l.b16 %v115
  %v687 = vunpack.c.l.b16 %v116
  %v688 = vunpack.c.l.b16 %v117
  %v689 = vunpack.c.l.b16 %v118
  %v690 = vunpack.c.l.b16 %v119
  %v691 = vunpack.c.l.b16 %v120
  %v692 = vunpack.c.l.b16 %v121
  %v693 = vunpack.c.l.b16 %v122
  %v694 = vunpack.c.l.b16 %v123
  %v695 = vunpack.c.l.b16 %v124
  %v696 = vunpack.c.l.b16 %v125
  %v697 = vunpack.c.l.b16 %v126
  %v698 = vunpack.c.l.b16 %v127
  %v699 = vunpack.c.l.b16 %v128
  %v700 = vunpack.c.l.b16 %v129
  %v701 = vunpack.c.l.b16 %v130
  %v702 = vunpack.c.l.b16 %v131
  %v703 = vunpack.c.l.b16 %v132
  %v704 = vunpack.c.l.b16 %v133
  %v705 = vunpack.c.l.b16 %v134
  %v706 = vunpack.c.l.b16 %v135
  %v707 = vunpack.c.l.b16 %v136
  %v708 = vunpack.c.l.b16 %v137
  %v709 = vunpack.c.l.b16 %v138
  %v710 = vunpack.c.l.b16 %v139
  %v711 = vunpack.c.l.b16 %v140
  %v712 = vunpack.c.l.b16 %v141
  %v713 = vunpack.c.l.b16 %v142
  %v714 = vunpack.c.l.b16 %v143
  %v715 = vunpack.c.l.b16 %v144
  %v716 = vunpack.c.l.b16 %v145
  %v717 = vunpack.c.l.b16 %v146
  %v718 = vpack.c.b16 %v687, %v686
  %v719 = vpack.c.b16 %v689, %v688
  %v720 = vpack.c.b16 %v691, %v690
  %v721 = vpack.c.b16 %v693, %v692
  %v722 = vpack.c.b16 %v695, %v694
  %v723 = vpack.c.b16 %v697, %v696
  %v724 = vpack.c.b16 %v699, %v698
  %v725 = vpack.c.b16 %v701, %v700
  %v726 = vpack.c.b16 %v703, %v702
  %v727 = vpack.c.b16 %v705, %v704
  %v728 = vpack.c.b16 %v707, %v706
  %v729 = vpack.c.b16 %v709, %v708
  %v730 = vpack.c.b16 %v711, %v710
  %v731 = vpack.c.b16 %v713, %v712
  %v732 = vpack.c.b16 %v715, %v714
  %v733 = vpack.c.b16 %v717, %v716
  %750 = vmatprep.subr.bf16.mxu0 0
  %751 = vmatpush1.bf16.msra.mxu0 %v718
  %752 = vmatprep.subr.bf16.mxu0 0
  %753 = vmatpush1.bf16.msra.mxu0 %v719
  %754 = vmatprep.subr.bf16.mxu0 0
  %755 = vmatpush1.bf16.msra.mxu0 %v720
  %756 = vmatprep.subr.bf16.mxu0 0
  %757 = vmatpush1.bf16.msra.mxu0 %v721
  %758 = vmatprep.subr.bf16.mxu0 0
  %759 = vmatpush1.bf16.msra.mxu0 %v722
  %760 = vmatprep.subr.bf16.mxu0 0
  %761 = vmatpush1.bf16.msra.mxu0 %v723
  %762 = vmatprep.subr.bf16.mxu0 0
  %763 = vmatpush1.bf16.msra.mxu0 %v724
  %764 = vmatprep.subr.bf16.mxu0 0
  %765 = vmatpush1.bf16.msra.mxu0 %v725
  %766 = vmatprep.subr.bf16.mxu0 0
  %767 = vmatpush1.bf16.msra.mxu0 %v726
  %768 = vmatprep.subr.bf16.mxu0 0
  %769 = vmatpush1.bf16.msra.mxu0 %v727
  %770 = vmatprep.subr.bf16.mxu0 0
  %771 = vmatpush1.bf16.msra.mxu0 %v728
  %772 = vmatprep.subr.bf16.mxu0 0
  %773 = vmatpush1.bf16.msra.mxu0 %v729
  %774 = vmatprep.subr.bf16.mxu0 0
  %775 = vmatpush1.bf16.msra.mxu0 %v730
  %776 = vmatprep.subr.bf16.mxu0 0
  %777 = vmatpush1.bf16.msra.mxu0 %v731
  %778 = vmatprep.subr.bf16.mxu0 0
  %779 = vmatpush1.bf16.msra.mxu0 %v732
  %780 = vmatprep.subr.bf16.mxu0 0
  %781 = vmatpush1.bf16.msra.mxu0 %v733
  %782 = vmatprep.mubr.bf16.mxu0 %v455
  %783 = vmatmul.mubr.bf16.gmra.mrb[0].mxu0 %v454
  %v784 = vpop.f32.mrb[0].mxu0
  %v785 = vadd.f32 %v152, %v784
  %v786 = vpop.f32.mrb[0].mxu0
  %v787 = vpop.f32.mrb[0].mxu0
  %v788 = vadd.f32 %v152, %v787
  %v789 = vpop.f32.mrb[0].mxu0
  %790 = vmatprep.mubr.bf16.mxu0 %v457
  %791 = vmatmul.mubr.bf16.gmra.mrb[0].mxu0 %v456
  %v792 = vpop.f32.mrb[0].mxu0
  %v793 = vadd.f32 %v152, %v792
  %v794 = vpop.f32.mrb[0].mxu0
  %v795 = vpop.f32.mrb[0].mxu0
  %v796 = vadd.f32 %v152, %v795
  %v797 = vpop.f32.mrb[0].mxu0
  %798 = vmatprep.mubr.bf16.mxu0 %v459
  %799 = vmatmul.mubr.bf16.gmra.mrb[0].mxu0 %v458
  %v800 = vpop.f32.mrb[0].mxu0
  %v801 = vadd.f32 %v152, %v800
  %v802 = vpop.f32.mrb[0].mxu0
  %v803 = vpop.f32.mrb[0].mxu0
  %v804 = vadd.f32 %v152, %v803
  %v805 = vpop.f32.mrb[0].mxu0
  %806 = vmatprep.mubr.bf16.mxu0 %v461
  %807 = vmatmul.mubr.bf16.gmra.mrb[0].mxu0 %v460
  %v808 = vpop.f32.mrb[0].mxu0
  %v809 = vadd.f32 %v152, %v808
  %v810 = vpop.f32.mrb[0].mxu0
  %v811 = vpop.f32.mrb[0].mxu0
  %v812 = vadd.f32 %v152, %v811
  %v813 = vpop.f32.mrb[0].mxu0
  %814 = vmatprep.mubr.bf16.mxu0 %v463
  %815 = vmatmul.mubr.bf16.gmra.mrb[0].mxu0 %v462
  %v816 = vpop.f32.mrb[0].mxu0
  %v817 = vadd.f32 %v152, %v816
  %v818 = vpop.f32.mrb[0].mxu0
  %v819 = vpop.f32.mrb[0].mxu0
  %v820 = vadd.f32 %v152, %v819
  %v821 = vpop.f32.mrb[0].mxu0
  %822 = vmatprep.mubr.bf16.mxu0 %v465
  %823 = vmatmul.mubr.bf16.gmra.mrb[0].mxu0 %v464
  %v824 = vpop.f32.mrb[0].mxu0
  %v825 = vadd.f32 %v152, %v824
  %v826 = vpop.f32.mrb[0].mxu0
  %v827 = vpop.f32.mrb[0].mxu0
  %v828 = vadd.f32 %v152, %v827
  %v829 = vpop.f32.mrb[0].mxu0
  %830 = vmatprep.mubr.bf16.mxu0 %v467
  %831 = vmatmul.mubr.bf16.gmra.mrb[0].mxu0 %v466
  %v832 = vpop.f32.mrb[0].mxu0
  %v833 = vadd.f32 %v152, %v832
  %v834 = vpop.f32.mrb[0].mxu0
  %v835 = vpop.f32.mrb[0].mxu0
  %v836 = vadd.f32 %v152, %v835
  %v837 = vpop.f32.mrb[0].mxu0
  %838 = vmatprep.mubr.bf16.mxu0 %v469
  %839 = vmatmul.mubr.bf16.gmra.mrb[0].mxu0 %v468
  %v840 = vpop.f32.mrb[0].mxu0
  %v841 = vadd.f32 %v152, %v840
  %v842 = vpop.f32.mrb[0].mxu0
  %v843 = vpop.f32.mrb[0].mxu0
  %v844 = vadd.f32 %v152, %v843
  %v845 = vpop.f32.mrb[0].mxu0
  %846 = vmatprep.mubr.bf16.mxu0 %v471
  %847 = vmatmul.mubr.bf16.gmra.mrb[0].mxu0 %v470
  %v848 = vpop.f32.mrb[0].mxu0
  %v849 = vadd.f32 %v152, %v848
  %v850 = vpop.f32.mrb[0].mxu0
  %v851 = vpop.f32.mrb[0].mxu0
  %v852 = vadd.f32 %v152, %v851
  %v853 = vpop.f32.mrb[0].mxu0
  %854 = vmatprep.mubr.bf16.mxu0 %v473
  %855 = vmatmul.mubr.bf16.gmra.mrb[0].mxu0 %v472
  %v856 = vpop.f32.mrb[0].mxu0
  %v857 = vadd.f32 %v152, %v856
  %v858 = vpop.f32.mrb[0].mxu0
  %v859 = vpop.f32.mrb[0].mxu0
  %v860 = vadd.f32 %v152, %v859
  %v861 = vpop.f32.mrb[0].mxu0
  %862 = vmatprep.mubr.bf16.mxu0 %v475
  %863 = vmatmul.mubr.bf16.gmra.mrb[0].mxu0 %v474
  %v864 = vpop.f32.mrb[0].mxu0
  %v865 = vadd.f32 %v152, %v864
  %v866 = vpop.f32.mrb[0].mxu0
  %v867 = vpop.f32.mrb[0].mxu0
  %v868 = vadd.f32 %v152, %v867
  %v869 = vpop.f32.mrb[0].mxu0
  %870 = vmatprep.mubr.bf16.mxu0 %v477
  %871 = vmatmul.mubr.bf16.gmra.mrb[0].mxu0 %v476
  %v872 = vpop.f32.mrb[0].mxu0
  %v873 = vadd.f32 %v152, %v872
  %v874 = vpop.f32.mrb[0].mxu0
  %v875 = vpop.f32.mrb[0].mxu0
  %v876 = vadd.f32 %v152, %v875
  %v877 = vpop.f32.mrb[0].mxu0
  %878 = vmatprep.mubr.bf16.mxu0 %v479
  %879 = vmatmul.mubr.bf16.gmra.mrb[0].mxu0 %v478
  %v880 = vpop.f32.mrb[0].mxu0
  %v881 = vadd.f32 %v152, %v880
  %v882 = vpop.f32.mrb[0].mxu0
  %v883 = vpop.f32.mrb[0].mxu0
  %v884 = vadd.f32 %v152, %v883
  %v885 = vpop.f32.mrb[0].mxu0
  %886 = vmatprep.mubr.bf16.mxu0 %v481
  %887 = vmatmul.mubr.bf16.gmra.mrb[0].mxu0 %v480
  %v888 = vpop.f32.mrb[0].mxu0
  %v889 = vadd.f32 %v152, %v888
  %v890 = vpop.f32.mrb[0].mxu0
  %v891 = vpop.f32.mrb[0].mxu0
  %v892 = vadd.f32 %v152, %v891
  %v893 = vpop.f32.mrb[0].mxu0
  %894 = vmatprep.mubr.bf16.mxu0 %v483
  %895 = vmatmul.mubr.bf16.gmra.mrb[0].mxu0 %v482
  %v896 = vpop.f32.mrb[0].mxu0
  %v897 = vadd.f32 %v152, %v896
  %v898 = vpop.f32.mrb[0].mxu0
  %v899 = vpop.f32.mrb[0].mxu0
  %v900 = vadd.f32 %v152, %v899
  %v901 = vpop.f32.mrb[0].mxu0
  %902 = vmatprep.mubr.bf16.mxu0 %v485
  %903 = vmatmul.mubr.bf16.gmra.mrb[0].mxu0 %v484
  %v904 = vpop.f32.mrb[0].mxu0
  %v905 = vadd.f32 %v152, %v904
  %v906 = vpop.f32.mrb[0].mxu0
  %v907 = vpop.f32.mrb[0].mxu0
  %v908 = vadd.f32 %v152, %v907
  %v909 = vpop.f32.mrb[0].mxu0
  %910 = vmatprep.mubr.bf16.mxu0 %v487
  %911 = vmatmul.mubr.bf16.gmra.mrb[0].mxu0 %v486
  %v912 = vpop.f32.mrb[0].mxu0
  %v913 = vadd.f32 %v152, %v912
  %v914 = vpop.f32.mrb[0].mxu0
  %v915 = vpop.f32.mrb[0].mxu0
  %v916 = vadd.f32 %v152, %v915
  %v917 = vpop.f32.mrb[0].mxu0
  %918 = vmatprep.mubr.bf16.mxu0 %v489
  %919 = vmatmul.mubr.bf16.gmra.mrb[0].mxu0 %v488
  %v920 = vpop.f32.mrb[0].mxu0
  %v921 = vadd.f32 %v152, %v920
  %v922 = vpop.f32.mrb[0].mxu0
  %v923 = vpop.f32.mrb[0].mxu0
  %v924 = vadd.f32 %v152, %v923
  %v925 = vpop.f32.mrb[0].mxu0
  %926 = vmatprep.mubr.bf16.mxu0 %v491
  %927 = vmatmul.mubr.bf16.gmra.mrb[0].mxu0 %v490
  %v928 = vpop.f32.mrb[0].mxu0
  %v929 = vadd.f32 %v152, %v928
  %v930 = vpop.f32.mrb[0].mxu0
  %v931 = vpop.f32.mrb[0].mxu0
  %v932 = vadd.f32 %v152, %v931
  %v933 = vpop.f32.mrb[0].mxu0
  %934 = vmatprep.mubr.bf16.mxu0 %v493
  %935 = vmatmul.mubr.bf16.gmra.mrb[0].mxu0 %v492
  %v936 = vpop.f32.mrb[0].mxu0
  %v937 = vadd.f32 %v152, %v936
  %v938 = vpop.f32.mrb[0].mxu0
  %v939 = vpop.f32.mrb[0].mxu0
  %v940 = vadd.f32 %v152, %v939
  %v941 = vpop.f32.mrb[0].mxu0
  %942 = vmatprep.mubr.bf16.mxu0 %v495
  %943 = vmatmul.mubr.bf16.gmra.mrb[0].mxu0 %v494
  %v944 = vpop.f32.mrb[0].mxu0
  %v945 = vadd.f32 %v152, %v944
  %v946 = vpop.f32.mrb[0].mxu0
  %v947 = vpop.f32.mrb[0].mxu0
  %v948 = vadd.f32 %v152, %v947
  %v949 = vpop.f32.mrb[0].mxu0
  %950 = vmatprep.mubr.bf16.mxu0 %v497
  %951 = vmatmul.mubr.bf16.gmra.mrb[0].mxu0 %v496
  %v952 = vpop.f32.mrb[0].mxu0
  %v953 = vadd.f32 %v152, %v952
  %v954 = vpop.f32.mrb[0].mxu0
  %v955 = vpop.f32.mrb[0].mxu0
  %v956 = vadd.f32 %v152, %v955
  %v957 = vpop.f32.mrb[0].mxu0
  %958 = vmatprep.mubr.bf16.mxu0 %v499
  %959 = vmatmul.mubr.bf16.gmra.mrb[0].mxu0 %v498
  %v960 = vpop.f32.mrb[0].mxu0
  %v961 = vadd.f32 %v152, %v960
  %v962 = vpop.f32.mrb[0].mxu0
  %v963 = vpop.f32.mrb[0].mxu0
  %v964 = vadd.f32 %v152, %v963
  %v965 = vpop.f32.mrb[0].mxu0
  %966 = vmatprep.mubr.bf16.mxu0 %v501
  %967 = vmatmul.mubr.bf16.gmra.mrb[0].mxu0 %v500
  %v968 = vpop.f32.mrb[0].mxu0
  %v969 = vadd.f32 %v152, %v968
  %v970 = vpop.f32.mrb[0].mxu0
  %v971 = vpop.f32.mrb[0].mxu0
  %v972 = vadd.f32 %v152, %v971
  %v973 = vpop.f32.mrb[0].mxu0
  %974 = vmatprep.mubr.bf16.mxu0 %v503
  %975 = vmatmul.mubr.bf16.gmra.mrb[0].mxu0 %v502
  %v976 = vpop.f32.mrb[0].mxu0
  %v977 = vadd.f32 %v152, %v976
  %v978 = vpop.f32.mrb[0].mxu0
  %v979 = vpop.f32.mrb[0].mxu0
  %v980 = vadd.f32 %v152, %v979
  %v981 = vpop.f32.mrb[0].mxu0
  %982 = vmatprep.mubr.bf16.mxu0 %v505
  %983 = vmatmul.mubr.bf16.gmra.mrb[0].mxu0 %v504
  %v984 = vpop.f32.mrb[0].mxu0
  %v985 = vadd.f32 %v152, %v984
  %v986 = vpop.f32.mrb[0].mxu0
  %v987 = vpop.f32.mrb[0].mxu0
  %v988 = vadd.f32 %v152, %v987
  %v989 = vpop.f32.mrb[0].mxu0
  %990 = vmatprep.mubr.bf16.mxu0 %v507
  %991 = vmatmul.mubr.bf16.gmra.mrb[0].mxu0 %v506
  %v992 = vpop.f32.mrb[0].mxu0
  %v993 = vadd.f32 %v152, %v992
  %v994 = vpop.f32.mrb[0].mxu0
  %v995 = vpop.f32.mrb[0].mxu0
  %v996 = vadd.f32 %v152, %v995
  %v997 = vpop.f32.mrb[0].mxu0
  %998 = vmatprep.mubr.bf16.mxu0 %v509
  %999 = vmatmul.mubr.bf16.gmra.mrb[0].mxu0 %v508
  %v1000 = vpop.f32.mrb[0].mxu0
  %v1001 = vadd.f32 %v152, %v1000
  %v1002 = vpop.f32.mrb[0].mxu0
  %v1003 = vpop.f32.mrb[0].mxu0
  %v1004 = vadd.f32 %v152, %v1003
  %v1005 = vpop.f32.mrb[0].mxu0
  %1006 = vmatprep.mubr.bf16.mxu0 %v511
  %1007 = vmatmul.mubr.bf16.gmra.mrb[0].mxu0 %v510
  %v1008 = vpop.f32.mrb[0].mxu0
  %v1009 = vadd.f32 %v152, %v1008
  %v1010 = vpop.f32.mrb[0].mxu0
  %v1011 = vpop.f32.mrb[0].mxu0
  %v1012 = vadd.f32 %v152, %v1011
  %v1013 = vpop.f32.mrb[0].mxu0
  %1014 = vmatprep.mubr.bf16.mxu0 %v513
  %1015 = vmatmul.mubr.bf16.gmra.mrb[0].mxu0 %v512
  %v1016 = vpop.f32.mrb[0].mxu0
  %v1017 = vadd.f32 %v152, %v1016
  %v1018 = vpop.f32.mrb[0].mxu0
  %v1019 = vpop.f32.mrb[0].mxu0
  %v1020 = vadd.f32 %v152, %v1019
  %v1021 = vpop.f32.mrb[0].mxu0
  %1022 = vmatprep.mubr.bf16.mxu0 %v515
  %1023 = vmatmul.mubr.bf16.gmra.mrb[0].mxu0 %v514
  %v1024 = vpop.f32.mrb[0].mxu0
  %v1025 = vadd.f32 %v152, %v1024
  %v1026 = vpop.f32.mrb[0].mxu0
  %v1027 = vpop.f32.mrb[0].mxu0
  %v1028 = vadd.f32 %v152, %v1027
  %v1029 = vpop.f32.mrb[0].mxu0
  %1030 = vmatprep.mubr.bf16.mxu0 %v517
  %1031 = vmatmul.mubr.bf16.gmra.mrb[0].mxu0 %v516
  %v1032 = vpop.f32.mrb[0].mxu0
  %v1033 = vadd.f32 %v152, %v1032
  %v1034 = vpop.f32.mrb[0].mxu0
  %v1035 = vpop.f32.mrb[0].mxu0
  %v1036 = vadd.f32 %v152, %v1035
  %v1037 = vpop.f32.mrb[0].mxu0
  %1038 = vmatprep.mubr.bf16.mxu0 %v519
  %1039 = vmatmul.mubr.bf16.gmra.mrb[0].mxu0 %v518
  %v1040 = vpop.f32.mrb[0].mxu0
  %v1041 = vadd.f32 %v152, %v1040
  %v1042 = vpop.f32.mrb[0].mxu0
  %v1043 = vpop.f32.mrb[0].mxu0
  %v1044 = vadd.f32 %v152, %v1043
  %v1045 = vpop.f32.mrb[0].mxu0
  %1046 = vmatprep.mubr.bf16.mxu0 %v521
  %1047 = vmatmul.mubr.bf16.gmra.mrb[0].mxu0 %v520
  %v1048 = vpop.f32.mrb[0].mxu0
  %v1049 = vadd.f32 %v152, %v1048
  %v1050 = vpop.f32.mrb[0].mxu0
  %v1051 = vpop.f32.mrb[0].mxu0
  %v1052 = vadd.f32 %v152, %v1051
  %v1053 = vpop.f32.mrb[0].mxu0
  %1054 = vmatprep.mubr.bf16.mxu0 %v523
  %1055 = vmatmul.mubr.bf16.gmra.mrb[0].mxu0 %v522
  %v1056 = vpop.f32.mrb[0].mxu0
  %v1057 = vadd.f32 %v152, %v1056
  %v1058 = vpop.f32.mrb[0].mxu0
  %v1059 = vpop.f32.mrb[0].mxu0
  %v1060 = vadd.f32 %v152, %v1059
  %v1061 = vpop.f32.mrb[0].mxu0
  %1062 = vmatprep.mubr.bf16.mxu0 %v525
  %1063 = vmatmul.mubr.bf16.gmra.mrb[0].mxu0 %v524
  %v1064 = vpop.f32.mrb[0].mxu0
  %v1065 = vadd.f32 %v152, %v1064
  %v1066 = vpop.f32.mrb[0].mxu0
  %v1067 = vpop.f32.mrb[0].mxu0
  %v1068 = vadd.f32 %v152, %v1067
  %v1069 = vpop.f32.mrb[0].mxu0
  %1070 = vmatprep.mubr.bf16.mxu0 %v527
  %1071 = vmatmul.mubr.bf16.gmra.mrb[0].mxu0 %v526
  %v1072 = vpop.f32.mrb[0].mxu0
  %v1073 = vadd.f32 %v152, %v1072
  %v1074 = vpop.f32.mrb[0].mxu0
  %v1075 = vpop.f32.mrb[0].mxu0
  %v1076 = vadd.f32 %v152, %v1075
  %v1077 = vpop.f32.mrb[0].mxu0
  %1078 = vmatprep.mubr.bf16.mxu0 %v529
  %1079 = vmatmul.mubr.bf16.gmra.mrb[0].mxu0 %v528
  %v1080 = vpop.f32.mrb[0].mxu0
  %v1081 = vadd.f32 %v152, %v1080
  %v1082 = vpop.f32.mrb[0].mxu0
  %v1083 = vpop.f32.mrb[0].mxu0
  %v1084 = vadd.f32 %v152, %v1083
  %v1085 = vpop.f32.mrb[0].mxu0
  %1086 = vmatprep.mubr.bf16.mxu0 %v531
  %1087 = vmatmul.mubr.bf16.gmra.mrb[0].mxu0 %v530
  %v1088 = vpop.f32.mrb[0].mxu0
  %v1089 = vadd.f32 %v152, %v1088
  %v1090 = vpop.f32.mrb[0].mxu0
  %v1091 = vpop.f32.mrb[0].mxu0
  %v1092 = vadd.f32 %v152, %v1091
  %v1093 = vpop.f32.mrb[0].mxu0
  %1094 = vmatprep.mubr.bf16.mxu0 %v533
  %1095 = vmatmul.mubr.bf16.gmra.mrb[0].mxu0 %v532
  %v1096 = vpop.f32.mrb[0].mxu0
  %v1097 = vadd.f32 %v152, %v1096
  %v1098 = vpop.f32.mrb[0].mxu0
  %v1099 = vpop.f32.mrb[0].mxu0
  %v1100 = vadd.f32 %v152, %v1099
  %v1101 = vpop.f32.mrb[0].mxu0
  %1102 = vmatprep.mubr.bf16.mxu0 %v535
  %1103 = vmatmul.mubr.bf16.gmra.mrb[0].mxu0 %v534
  %v1104 = vpop.f32.mrb[0].mxu0
  %v1105 = vadd.f32 %v152, %v1104
  %v1106 = vpop.f32.mrb[0].mxu0
  %v1107 = vpop.f32.mrb[0].mxu0
  %v1108 = vadd.f32 %v152, %v1107
  %v1109 = vpop.f32.mrb[0].mxu0
  %1110 = vmatprep.mubr.bf16.mxu0 %v537
  %1111 = vmatmul.mubr.bf16.gmra.mrb[0].mxu0 %v536
  %v1112 = vpop.f32.mrb[0].mxu0
  %v1113 = vadd.f32 %v152, %v1112
  %v1114 = vpop.f32.mrb[0].mxu0
  %v1115 = vpop.f32.mrb[0].mxu0
  %v1116 = vadd.f32 %v152, %v1115
  %v1117 = vpop.f32.mrb[0].mxu0
  %1118 = vmatprep.mubr.bf16.mxu0 %v539
  %1119 = vmatmul.mubr.bf16.gmra.mrb[0].mxu0 %v538
  %v1120 = vpop.f32.mrb[0].mxu0
  %v1121 = vadd.f32 %v152, %v1120
  %v1122 = vpop.f32.mrb[0].mxu0
  %v1123 = vpop.f32.mrb[0].mxu0
  %v1124 = vadd.f32 %v152, %v1123
  %v1125 = vpop.f32.mrb[0].mxu0
  %1126 = vmatprep.mubr.bf16.mxu0 %v541
  %1127 = vmatmul.mubr.bf16.gmra.mrb[0].mxu0 %v540
  %v1128 = vpop.f32.mrb[0].mxu0
  %v1129 = vadd.f32 %v152, %v1128
  %v1130 = vpop.f32.mrb[0].mxu0
  %v1131 = vpop.f32.mrb[0].mxu0
  %v1132 = vadd.f32 %v152, %v1131
  %v1133 = vpop.f32.mrb[0].mxu0
  %1134 = vmatprep.mubr.bf16.mxu0 %v543
  %1135 = vmatmul.mubr.bf16.gmra.mrb[0].mxu0 %v542
  %v1136 = vpop.f32.mrb[0].mxu0
  %v1137 = vadd.f32 %v152, %v1136
  %v1138 = vpop.f32.mrb[0].mxu0
  %v1139 = vpop.f32.mrb[0].mxu0
  %v1140 = vadd.f32 %v152, %v1139
  %v1141 = vpop.f32.mrb[0].mxu0
  %1142 = vmatprep.mubr.bf16.mxu0 %v545
  %1143 = vmatmul.mubr.bf16.gmra.mrb[0].mxu0 %v544
  %v1144 = vpop.f32.mrb[0].mxu0
  %v1145 = vadd.f32 %v152, %v1144
  %v1146 = vpop.f32.mrb[0].mxu0
  %v1147 = vpop.f32.mrb[0].mxu0
  %v1148 = vadd.f32 %v152, %v1147
  %v1149 = vpop.f32.mrb[0].mxu0
  %1150 = vmatprep.mubr.bf16.mxu0 %v547
  %1151 = vmatmul.mubr.bf16.gmra.mrb[0].mxu0 %v546
  %v1152 = vpop.f32.mrb[0].mxu0
  %v1153 = vadd.f32 %v152, %v1152
  %v1154 = vpop.f32.mrb[0].mxu0
  %v1155 = vpop.f32.mrb[0].mxu0
  %v1156 = vadd.f32 %v152, %v1155
  %v1157 = vpop.f32.mrb[0].mxu0
  %1158 = vmatprep.mubr.bf16.mxu0 %v549
  %1159 = vmatmul.mubr.bf16.gmra.mrb[0].mxu0 %v548
  %v1160 = vpop.f32.mrb[0].mxu0
  %v1161 = vadd.f32 %v152, %v1160
  %v1162 = vpop.f32.mrb[0].mxu0
  %v1163 = vpop.f32.mrb[0].mxu0
  %v1164 = vadd.f32 %v152, %v1163
  %v1165 = vpop.f32.mrb[0].mxu0
  %1166 = vmatprep.mubr.bf16.mxu0 %v551
  %1167 = vmatmul.mubr.bf16.gmra.mrb[0].mxu0 %v550
  %v1168 = vpop.f32.mrb[0].mxu0
  %v1169 = vadd.f32 %v152, %v1168
  %v1170 = vpop.f32.mrb[0].mxu0
  %v1171 = vpop.f32.mrb[0].mxu0
  %v1172 = vadd.f32 %v152, %v1171
  %v1173 = vpop.f32.mrb[0].mxu0
  %1174 = vmatprep.mubr.bf16.mxu0 %v553
  %1175 = vmatmul.mubr.bf16.gmra.mrb[0].mxu0 %v552
  %v1176 = vpop.f32.mrb[0].mxu0
  %v1177 = vadd.f32 %v152, %v1176
  %v1178 = vpop.f32.mrb[0].mxu0
  %v1179 = vpop.f32.mrb[0].mxu0
  %v1180 = vadd.f32 %v152, %v1179
  %v1181 = vpop.f32.mrb[0].mxu0
  %1182 = vdwg.mxu0
  %v1183 = vmax.f32 %v785, 0.0
  %v1184 = vmax.f32 %v788, 0.0
  %v1185 = vmax.f32 %v793, 0.0
  %v1186 = vmax.f32 %v796, 0.0
  %v1187 = vmax.f32 %v801, 0.0
  %v1188 = vmax.f32 %v804, 0.0
  %v1189 = vmax.f32 %v809, 0.0
  %v1190 = vmax.f32 %v812, 0.0
  %v1191 = vmax.f32 %v817, 0.0
  %v1192 = vmax.f32 %v820, 0.0
  %v1193 = vmax.f32 %v825, 0.0
  %v1194 = vmax.f32 %v828, 0.0
  %v1195 = vmax.f32 %v833, 0.0
  %v1196 = vmax.f32 %v836, 0.0
  %v1197 = vmax.f32 %v841, 0.0
  %v1198 = vmax.f32 %v844, 0.0
  %v1199 = vmax.f32 %v849, 0.0
  %v1200 = vmax.f32 %v852, 0.0
  %v1201 = vmax.f32 %v857, 0.0
  %v1202 = vmax.f32 %v860, 0.0
  %v1203 = vmax.f32 %v865, 0.0
  %v1204 = vmax.f32 %v868, 0.0
  %v1205 = vmax.f32 %v873, 0.0
  %v1206 = vmax.f32 %v876, 0.0
  %v1207 = vmax.f32 %v881, 0.0
  %v1208 = vmax.f32 %v884, 0.0
  %v1209 = vmax.f32 %v889, 0.0
  %v1210 = vmax.f32 %v892, 0.0
  %v1211 = vmax.f32 %v897, 0.0
  %v1212 = vmax.f32 %v900, 0.0
  %v1213 = vmax.f32 %v905, 0.0
  %v1214 = vmax.f32 %v908, 0.0
  %v1215 = vmax.f32 %v913, 0.0
  %v1216 = vmax.f32 %v916, 0.0
  %v1217 = vmax.f32 %v921, 0.0
  %v1218 = vmax.f32 %v924, 0.0
  %v1219 = vmax.f32 %v929, 0.0
  %v1220 = vmax.f32 %v932, 0.0
  %v1221 = vmax.f32 %v937, 0.0
  %v1222 = vmax.f32 %v940, 0.0
  %v1223 = vmax.f32 %v945, 0.0
  %v1224 = vmax.f32 %v948, 0.0
  %v1225 = vmax.f32 %v953, 0.0
  %v1226 = vmax.f32 %v956, 0.0
  %v1227 = vmax.f32 %v961, 0.0
  %v1228 = vmax.f32 %v964, 0.0
  %v1229 = vmax.f32 %v969, 0.0
  %v1230 = vmax.f32 %v972, 0.0
  %v1231 = vmax.f32 %v977, 0.0
  %v1232 = vmax.f32 %v980, 0.0
  %v1233 = vmax.f32 %v985, 0.0
  %v1234 = vmax.f32 %v988, 0.0
  %v1235 = vmax.f32 %v993, 0.0
  %v1236 = vmax.f32 %v996, 0.0
  %v1237 = vmax.f32 %v1001, 0.0
  %v1238 = vmax.f32 %v1004, 0.0
  %v1239 = vmax.f32 %v1009, 0.0
  %v1240 = vmax.f32 %v1012, 0.0
  %v1241 = vmax.f32 %v1017, 0.0
  %v1242 = vmax.f32 %v1020, 0.0
  %v1243 = vmax.f32 %v1025, 0.0
  %v1244 = vmax.f32 %v1028, 0.0
  %v1245 = vmax.f32 %v1033, 0.0
  %v1246 = vmax.f32 %v1036, 0.0
  %v1247 = vmax.f32 %v1041, 0.0
  %v1248 = vmax.f32 %v1044, 0.0
  %v1249 = vmax.f32 %v1049, 0.0
  %v1250 = vmax.f32 %v1052, 0.0
  %v1251 = vmax.f32 %v1057, 0.0
  %v1252 = vmax.f32 %v1060, 0.0
  %v1253 = vmax.f32 %v1065, 0.0
  %v1254 = vmax.f32 %v1068, 0.0
  %v1255 = vmax.f32 %v1073, 0.0
  %v1256 = vmax.f32 %v1076, 0.0
  %v1257 = vmax.f32 %v1081, 0.0
  %v1258 = vmax.f32 %v1084, 0.0
  %v1259 = vmax.f32 %v1089, 0.0
  %v1260 = vmax.f32 %v1092, 0.0
  %v1261 = vmax.f32 %v1097, 0.0
  %v1262 = vmax.f32 %v1100, 0.0
  %v1263 = vmax.f32 %v1105, 0.0
  %v1264 = vmax.f32 %v1108, 0.0
  %v1265 = vmax.f32 %v1113, 0.0
  %v1266 = vmax.f32 %v1116, 0.0
  %v1267 = vmax.f32 %v1121, 0.0
  %v1268 = vmax.f32 %v1124, 0.0
  %v1269 = vmax.f32 %v1129, 0.0
  %v1270 = vmax.f32 %v1132, 0.0
  %v1271 = vmax.f32 %v1137, 0.0
  %v1272 = vmax.f32 %v1140, 0.0
  %v1273 = vmax.f32 %v1145, 0.0
  %v1274 = vmax.f32 %v1148, 0.0
  %v1275 = vmax.f32 %v1153, 0.0
  %v1276 = vmax.f32 %v1156, 0.0
  %v1277 = vmax.f32 %v1161, 0.0
  %v1278 = vmax.f32 %v1164, 0.0
  %v1279 = vmax.f32 %v1169, 0.0
  %v1280 = vmax.f32 %v1172, 0.0
  %v1281 = vmax.f32 %v1177, 0.0
  %v1282 = vmax.f32 %v1180, 0.0
  %v1283 = vpack.c.bf16 %v1184, %v1183
  %v1284 = vpack.c.bf16 %v1186, %v1185
  %v1285 = vpack.c.bf16 %v1188, %v1187
  %v1286 = vpack.c.bf16 %v1190, %v1189
  %v1287 = vpack.c.bf16 %v1192, %v1191
  %v1288 = vpack.c.bf16 %v1194, %v1193
  %v1289 = vpack.c.bf16 %v1196, %v1195
  %v1290 = vpack.c.bf16 %v1198, %v1197
  %v1291 = vpack.c.bf16 %v1200, %v1199
  %v1292 = vpack.c.bf16 %v1202, %v1201
  %v1293 = vpack.c.bf16 %v1204, %v1203
  %v1294 = vpack.c.bf16 %v1206, %v1205
  %v1295 = vpack.c.bf16 %v1208, %v1207
  %v1296 = vpack.c.bf16 %v1210, %v1209
  %v1297 = vpack.c.bf16 %v1212, %v1211
  %v1298 = vpack.c.bf16 %v1214, %v1213
  %v1299 = vpack.c.bf16 %v1216, %v1215
  %v1300 = vpack.c.bf16 %v1218, %v1217
  %v1301 = vpack.c.bf16 %v1220, %v1219
  %v1302 = vpack.c.bf16 %v1222, %v1221
  %v1303 = vpack.c.bf16 %v1224, %v1223
  %v1304 = vpack.c.bf16 %v1226, %v1225
  %v1305 = vpack.c.bf16 %v1228, %v1227
  %v1306 = vpack.c.bf16 %v1230, %v1229
  %v1307 = vpack.c.bf16 %v1232, %v1231
  %v1308 = vpack.c.bf16 %v1234, %v1233
  %v1309 = vpack.c.bf16 %v1236, %v1235
  %v1310 = vpack.c.bf16 %v1238, %v1237
  %v1311 = vpack.c.bf16 %v1240, %v1239
  %v1312 = vpack.c.bf16 %v1242, %v1241
  %v1313 = vpack.c.bf16 %v1244, %v1243
  %v1314 = vpack.c.bf16 %v1246, %v1245
  %v1315 = vpack.c.bf16 %v1248, %v1247
  %v1316 = vpack.c.bf16 %v1250, %v1249
  %v1317 = vpack.c.bf16 %v1252, %v1251
  %v1318 = vpack.c.bf16 %v1254, %v1253
  %v1319 = vpack.c.bf16 %v1256, %v1255
  %v1320 = vpack.c.bf16 %v1258, %v1257
  %v1321 = vpack.c.bf16 %v1260, %v1259
  %v1322 = vpack.c.bf16 %v1262, %v1261
  %v1323 = vpack.c.bf16 %v1264, %v1263
  %v1324 = vpack.c.bf16 %v1266, %v1265
  %v1325 = vpack.c.bf16 %v1268, %v1267
  %v1326 = vpack.c.bf16 %v1270, %v1269
  %v1327 = vpack.c.bf16 %v1272, %v1271
  %v1328 = vpack.c.bf16 %v1274, %v1273
  %v1329 = vpack.c.bf16 %v1276, %v1275
  %v1330 = vpack.c.bf16 %v1278, %v1277
  %v1331 = vpack.c.bf16 %v1280, %v1279
  %v1332 = vpack.c.bf16 %v1282, %v1281
  %v1383 = vunpack.c.l.b16 %v1283
  %v1384 = vunpack.c.h.b16 %v1283
  %v1385 = vunpack.c.l.b16 %v1284
  %v1386 = vunpack.c.h.b16 %v1284
  %v1387 = vunpack.c.l.b16 %v1285
  %v1388 = vunpack.c.h.b16 %v1285
  %v1389 = vunpack.c.l.b16 %v1286
  %v1390 = vunpack.c.h.b16 %v1286
  %v1391 = vunpack.c.l.b16 %v1287
  %v1392 = vunpack.c.h.b16 %v1287
  %v1393 = vunpack.c.l.b16 %v1288
  %v1394 = vunpack.c.h.b16 %v1288
  %v1395 = vunpack.c.l.b16 %v1289
  %v1396 = vunpack.c.h.b16 %v1289
  %v1397 = vunpack.c.l.b16 %v1290
  %v1398 = vunpack.c.h.b16 %v1290
  %v1399 = vunpack.c.l.b16 %v1291
  %v1400 = vunpack.c.h.b16 %v1291
  %v1401 = vunpack.c.l.b16 %v1292
  %v1402 = vunpack.c.h.b16 %v1292
  %v1403 = vunpack.c.l.b16 %v1293
  %v1404 = vunpack.c.h.b16 %v1293
  %v1405 = vunpack.c.l.b16 %v1294
  %v1406 = vunpack.c.h.b16 %v1294
  %v1407 = vunpack.c.l.b16 %v1295
  %v1408 = vunpack.c.h.b16 %v1295
  %v1409 = vunpack.c.l.b16 %v1296
  %v1410 = vunpack.c.h.b16 %v1296
  %v1411 = vunpack.c.l.b16 %v1297
  %v1412 = vunpack.c.h.b16 %v1297
  %v1413 = vunpack.c.l.b16 %v1298
  %v1414 = vunpack.c.h.b16 %v1298
  %v1415 = vunpack.c.l.b16 %v1299
  %v1416 = vunpack.c.h.b16 %v1299
  %v1417 = vunpack.c.l.b16 %v1300
  %v1418 = vunpack.c.h.b16 %v1300
  %v1419 = vunpack.c.l.b16 %v1301
  %v1420 = vunpack.c.h.b16 %v1301
  %v1421 = vunpack.c.l.b16 %v1302
  %v1422 = vunpack.c.h.b16 %v1302
  %v1423 = vunpack.c.l.b16 %v1303
  %v1424 = vunpack.c.h.b16 %v1303
  %v1425 = vunpack.c.l.b16 %v1304
  %v1426 = vunpack.c.h.b16 %v1304
  %v1427 = vunpack.c.l.b16 %v1305
  %v1428 = vunpack.c.h.b16 %v1305
  %v1429 = vunpack.c.l.b16 %v1306
  %v1430 = vunpack.c.h.b16 %v1306
  %v1431 = vunpack.c.l.b16 %v1307
  %v1432 = vunpack.c.h.b16 %v1307
  %v1433 = vunpack.c.l.b16 %v1308
  %v1434 = vunpack.c.h.b16 %v1308
  %v1435 = vunpack.c.l.b16 %v1309
  %v1436 = vunpack.c.h.b16 %v1309
  %v1437 = vunpack.c.l.b16 %v1310
  %v1438 = vunpack.c.h.b16 %v1310
  %v1439 = vunpack.c.l.b16 %v1311
  %v1440 = vunpack.c.h.b16 %v1311
  %v1441 = vunpack.c.l.b16 %v1312
  %v1442 = vunpack.c.h.b16 %v1312
  %v1443 = vunpack.c.l.b16 %v1313
  %v1444 = vunpack.c.h.b16 %v1313
  %v1445 = vunpack.c.l.b16 %v1314
  %v1446 = vunpack.c.h.b16 %v1314
  %v1447 = vunpack.c.l.b16 %v1315
  %v1448 = vunpack.c.h.b16 %v1315
  %v1449 = vunpack.c.l.b16 %v1316
  %v1450 = vunpack.c.h.b16 %v1316
  %v1451 = vunpack.c.l.b16 %v1317
  %v1452 = vunpack.c.h.b16 %v1317
  %v1453 = vunpack.c.l.b16 %v1318
  %v1454 = vunpack.c.h.b16 %v1318
  %v1455 = vunpack.c.l.b16 %v1319
  %v1456 = vunpack.c.h.b16 %v1319
  %v1457 = vunpack.c.l.b16 %v1320
  %v1458 = vunpack.c.h.b16 %v1320
  %v1459 = vunpack.c.l.b16 %v1321
  %v1460 = vunpack.c.h.b16 %v1321
  %v1461 = vunpack.c.l.b16 %v1322
  %v1462 = vunpack.c.h.b16 %v1322
  %v1463 = vunpack.c.l.b16 %v1323
  %v1464 = vunpack.c.h.b16 %v1323
  %v1465 = vunpack.c.l.b16 %v1324
  %v1466 = vunpack.c.h.b16 %v1324
  %v1467 = vunpack.c.l.b16 %v1325
  %v1468 = vunpack.c.h.b16 %v1325
  %v1469 = vunpack.c.l.b16 %v1326
  %v1470 = vunpack.c.h.b16 %v1326
  %v1471 = vunpack.c.l.b16 %v1327
  %v1472 = vunpack.c.h.b16 %v1327
  %v1473 = vunpack.c.l.b16 %v1328
  %v1474 = vunpack.c.h.b16 %v1328
  %v1475 = vunpack.c.l.b16 %v1329
  %v1476 = vunpack.c.h.b16 %v1329
  %v1477 = vunpack.c.l.b16 %v1330
  %v1478 = vunpack.c.h.b16 %v1330
  %v1479 = vunpack.c.l.b16 %v1331
  %v1480 = vunpack.c.h.b16 %v1331
  %v1481 = vunpack.c.l.b16 %v1332
  %v1482 = vunpack.c.h.b16 %v1332
  %v1483 = vpack.c.b16 %v1383, %v1383
  %v1484 = vpack.c.b16 %v1384, %v1384
  %v1485 = vpack.c.b16 %v1385, %v1385
  %v1486 = vpack.c.b16 %v1386, %v1386
  %v1487 = vpack.c.b16 %v1387, %v1387
  %v1488 = vpack.c.b16 %v1388, %v1388
  %v1489 = vpack.c.b16 %v1389, %v1389
  %v1490 = vpack.c.b16 %v1390, %v1390
  %v1491 = vpack.c.b16 %v1391, %v1391
  %v1492 = vpack.c.b16 %v1392, %v1392
  %v1493 = vpack.c.b16 %v1393, %v1393
  %v1494 = vpack.c.b16 %v1394, %v1394
  %v1495 = vpack.c.b16 %v1395, %v1395
  %v1496 = vpack.c.b16 %v1396, %v1396
  %v1497 = vpack.c.b16 %v1397, %v1397
  %v1498 = vpack.c.b16 %v1398, %v1398
  %v1499 = vpack.c.b16 %v1399, %v1399
  %v1500 = vpack.c.b16 %v1400, %v1400
  %v1501 = vpack.c.b16 %v1401, %v1401
  %v1502 = vpack.c.b16 %v1402, %v1402
  %v1503 = vpack.c.b16 %v1403, %v1403
  %v1504 = vpack.c.b16 %v1404, %v1404
  %v1505 = vpack.c.b16 %v1405, %v1405
  %v1506 = vpack.c.b16 %v1406, %v1406
  %v1507 = vpack.c.b16 %v1407, %v1407
  %v1508 = vpack.c.b16 %v1408, %v1408
  %v1509 = vpack.c.b16 %v1409, %v1409
  %v1510 = vpack.c.b16 %v1410, %v1410
  %v1511 = vpack.c.b16 %v1411, %v1411
  %v1512 = vpack.c.b16 %v1412, %v1412
  %v1513 = vpack.c.b16 %v1413, %v1413
  %v1514 = vpack.c.b16 %v1414, %v1414
  %v1515 = vpack.c.b16 %v1415, %v1415
  %v1516 = vpack.c.b16 %v1416, %v1416
  %v1517 = vpack.c.b16 %v1417, %v1417
  %v1518 = vpack.c.b16 %v1418, %v1418
  %v1519 = vpack.c.b16 %v1419, %v1419
  %v1520 = vpack.c.b16 %v1420, %v1420
  %v1521 = vpack.c.b16 %v1421, %v1421
  %v1522 = vpack.c.b16 %v1422, %v1422
  %v1523 = vpack.c.b16 %v1423, %v1423
  %v1524 = vpack.c.b16 %v1424, %v1424
  %v1525 = vpack.c.b16 %v1425, %v1425
  %v1526 = vpack.c.b16 %v1426, %v1426
  %v1527 = vpack.c.b16 %v1427, %v1427
  %v1528 = vpack.c.b16 %v1428, %v1428
  %v1529 = vpack.c.b16 %v1429, %v1429
  %v1530 = vpack.c.b16 %v1430, %v1430
  %v1531 = vpack.c.b16 %v1431, %v1431
  %v1532 = vpack.c.b16 %v1432, %v1432
  %v1533 = vpack.c.b16 %v1433, %v1433
  %v1534 = vpack.c.b16 %v1434, %v1434
  %v1535 = vpack.c.b16 %v1435, %v1435
  %v1536 = vpack.c.b16 %v1436, %v1436
  %v1537 = vpack.c.b16 %v1437, %v1437
  %v1538 = vpack.c.b16 %v1438, %v1438
  %v1539 = vpack.c.b16 %v1439, %v1439
  %v1540 = vpack.c.b16 %v1440, %v1440
  %v1541 = vpack.c.b16 %v1441, %v1441
  %v1542 = vpack.c.b16 %v1442, %v1442
  %v1543 = vpack.c.b16 %v1443, %v1443
  %v1544 = vpack.c.b16 %v1444, %v1444
  %v1545 = vpack.c.b16 %v1445, %v1445
  %v1546 = vpack.c.b16 %v1446, %v1446
  %v1547 = vpack.c.b16 %v1447, %v1447
  %v1548 = vpack.c.b16 %v1448, %v1448
  %v1549 = vpack.c.b16 %v1449, %v1449
  %v1550 = vpack.c.b16 %v1450, %v1450
  %v1551 = vpack.c.b16 %v1451, %v1451
  %v1552 = vpack.c.b16 %v1452, %v1452
  %v1553 = vpack.c.b16 %v1453, %v1453
  %v1554 = vpack.c.b16 %v1454, %v1454
  %v1555 = vpack.c.b16 %v1455, %v1455
  %v1556 = vpack.c.b16 %v1456, %v1456
  %v1557 = vpack.c.b16 %v1457, %v1457
  %v1558 = vpack.c.b16 %v1458, %v1458
  %v1559 = vpack.c.b16 %v1459, %v1459
  %v1560 = vpack.c.b16 %v1460, %v1460
  %v1561 = vpack.c.b16 %v1461, %v1461
  %v1562 = vpack.c.b16 %v1462, %v1462
  %v1563 = vpack.c.b16 %v1463, %v1463
  %v1564 = vpack.c.b16 %v1464, %v1464
  %v1565 = vpack.c.b16 %v1465, %v1465
  %v1566 = vpack.c.b16 %v1466, %v1466
  %v1567 = vpack.c.b16 %v1467, %v1467
  %v1568 = vpack.c.b16 %v1468, %v1468
  %v1569 = vpack.c.b16 %v1469, %v1469
  %v1570 = vpack.c.b16 %v1470, %v1470
  %v1571 = vpack.c.b16 %v1471, %v1471
  %v1572 = vpack.c.b16 %v1472, %v1472
  %v1573 = vpack.c.b16 %v1473, %v1473
  %v1574 = vpack.c.b16 %v1474, %v1474
  %v1575 = vpack.c.b16 %v1475, %v1475
  %v1576 = vpack.c.b16 %v1476, %v1476
  %v1577 = vpack.c.b16 %v1477, %v1477
  %v1578 = vpack.c.b16 %v1478, %v1478
  %v1579 = vpack.c.b16 %v1479, %v1479
  %v1580 = vpack.c.b16 %v1480, %v1480
  %v1581 = vpack.c.b16 %v1481, %v1481
  %v1582 = vpack.c.b16 %v1482, %v1482
  %vm1683 = vcmask 257024
  %1684 = vst.msk [vmem:[%s3] sm:$0xf] %vm1683, %v1483
  %1685 = vst.msk [vmem:[%s3 + $0x4] sm:$0xf] %vm1683, %v1484
  %1686 = vst.msk [vmem:[%s3 + $0x8] sm:$0xf] %vm1683, %v1485
  %1687 = vst.msk [vmem:[%s3 + $0xc] sm:$0xf] %vm1683, %v1486
  %1688 = vst.msk [vmem:[%s3 + $0x10] sm:$0xf] %vm1683, %v1487
  %1689 = vst.msk [vmem:[%s3 + $0x14] sm:$0xf] %vm1683, %v1488
  %1690 = vst.msk [vmem:[%s3 + $0x18] sm:$0xf] %vm1683, %v1489
  %1691 = vst.msk [vmem:[%s3 + $0x1c] sm:$0xf] %vm1683, %v1490
  %1692 = vst.msk [vmem:[%s3 + $0x20] sm:$0xf] %vm1683, %v1491
  %1693 = vst.msk [vmem:[%s3 + $0x24] sm:$0xf] %vm1683, %v1492
  %1694 = vst.msk [vmem:[%s3 + $0x28] sm:$0xf] %vm1683, %v1493
  %1695 = vst.msk [vmem:[%s3 + $0x2c] sm:$0xf] %vm1683, %v1494
  %1696 = vst.msk [vmem:[%s3 + $0x30] sm:$0xf] %vm1683, %v1495
  %1697 = vst.msk [vmem:[%s3 + $0x34] sm:$0xf] %vm1683, %v1496
  %1698 = vst.msk [vmem:[%s3 + $0x38] sm:$0xf] %vm1683, %v1497
  %1699 = vst.msk [vmem:[%s3 + $0x3c] sm:$0xf] %vm1683, %v1498
  %1700 = vst.msk [vmem:[%s3 + $0x40] sm:$0xf] %vm1683, %v1499
  %1701 = vst.msk [vmem:[%s3 + $0x44] sm:$0xf] %vm1683, %v1500
  %1702 = vst.msk [vmem:[%s3 + $0x48] sm:$0xf] %vm1683, %v1501
  %1703 = vst.msk [vmem:[%s3 + $0x4c] sm:$0xf] %vm1683, %v1502
  %1704 = vst.msk [vmem:[%s3 + $0x50] sm:$0xf] %vm1683, %v1503
  %1705 = vst.msk [vmem:[%s3 + $0x54] sm:$0xf] %vm1683, %v1504
  %1706 = vst.msk [vmem:[%s3 + $0x58] sm:$0xf] %vm1683, %v1505
  %1707 = vst.msk [vmem:[%s3 + $0x5c] sm:$0xf] %vm1683, %v1506
  %1708 = vst.msk [vmem:[%s3 + $0x60] sm:$0xf] %vm1683, %v1507
  %1709 = vst.msk [vmem:[%s3 + $0x64] sm:$0xf] %vm1683, %v1508
  %1710 = vst.msk [vmem:[%s3 + $0x68] sm:$0xf] %vm1683, %v1509
  %1711 = vst.msk [vmem:[%s3 + $0x6c] sm:$0xf] %vm1683, %v1510
  %1712 = vst.msk [vmem:[%s3 + $0x70] sm:$0xf] %vm1683, %v1511
  %1713 = vst.msk [vmem:[%s3 + $0x74] sm:$0xf] %vm1683, %v1512
  %1714 = vst.msk [vmem:[%s3 + $0x78] sm:$0xf] %vm1683, %v1513
  %1715 = vst.msk [vmem:[%s3 + $0x7c] sm:$0xf] %vm1683, %v1514
  %1716 = vst.msk [vmem:[%s3 + $0x80] sm:$0xf] %vm1683, %v1515
  %1717 = vst.msk [vmem:[%s3 + $0x84] sm:$0xf] %vm1683, %v1516
  %1718 = vst.msk [vmem:[%s3 + $0x88] sm:$0xf] %vm1683, %v1517
  %1719 = vst.msk [vmem:[%s3 + $0x8c] sm:$0xf] %vm1683, %v1518
  %1720 = vst.msk [vmem:[%s3 + $0x90] sm:$0xf] %vm1683, %v1519
  %1721 = vst.msk [vmem:[%s3 + $0x94] sm:$0xf] %vm1683, %v1520
  %1722 = vst.msk [vmem:[%s3 + $0x98] sm:$0xf] %vm1683, %v1521
  %1723 = vst.msk [vmem:[%s3 + $0x9c] sm:$0xf] %vm1683, %v1522
  %1724 = vst.msk [vmem:[%s3 + $0xa0] sm:$0xf] %vm1683, %v1523
  %1725 = vst.msk [vmem:[%s3 + $0xa4] sm:$0xf] %vm1683, %v1524
  %1726 = vst.msk [vmem:[%s3 + $0xa8] sm:$0xf] %vm1683, %v1525
  %1727 = vst.msk [vmem:[%s3 + $0xac] sm:$0xf] %vm1683, %v1526
  %1728 = vst.msk [vmem:[%s3 + $0xb0] sm:$0xf] %vm1683, %v1527
  %1729 = vst.msk [vmem:[%s3 + $0xb4] sm:$0xf] %vm1683, %v1528
  %1730 = vst.msk [vmem:[%s3 + $0xb8] sm:$0xf] %vm1683, %v1529
  %1731 = vst.msk [vmem:[%s3 + $0xbc] sm:$0xf] %vm1683, %v1530
  %1732 = vst.msk [vmem:[%s3 + $0xc0] sm:$0xf] %vm1683, %v1531
  %1733 = vst.msk [vmem:[%s3 + $0xc4] sm:$0xf] %vm1683, %v1532
  %1734 = vst.msk [vmem:[%s3 + $0xc8] sm:$0xf] %vm1683, %v1533
  %1735 = vst.msk [vmem:[%s3 + $0xcc] sm:$0xf] %vm1683, %v1534
  %1736 = vst.msk [vmem:[%s3 + $0xd0] sm:$0xf] %vm1683, %v1535
  %1737 = vst.msk [vmem:[%s3 + $0xd4] sm:$0xf] %vm1683, %v1536
  %1738 = vst.msk [vmem:[%s3 + $0xd8] sm:$0xf] %vm1683, %v1537
  %1739 = vst.msk [vmem:[%s3 + $0xdc] sm:$0xf] %vm1683, %v1538
  %1740 = vst.msk [vmem:[%s3 + $0xe0] sm:$0xf] %vm1683, %v1539
  %1741 = vst.msk [vmem:[%s3 + $0xe4] sm:$0xf] %vm1683, %v1540
  %1742 = vst.msk [vmem:[%s3 + $0xe8] sm:$0xf] %vm1683, %v1541
  %1743 = vst.msk [vmem:[%s3 + $0xec] sm:$0xf] %vm1683, %v1542
  %1744 = vst.msk [vmem:[%s3 + $0xf0] sm:$0xf] %vm1683, %v1543
  %1745 = vst.msk [vmem:[%s3 + $0xf4] sm:$0xf] %vm1683, %v1544
  %1746 = vst.msk [vmem:[%s3 + $0xf8] sm:$0xf] %vm1683, %v1545
  %1747 = vst.msk [vmem:[%s3 + $0xfc] sm:$0xf] %vm1683, %v1546
  %1748 = vst.msk [vmem:[%s3 + $0x100] sm:$0xf] %vm1683, %v1547
  %1749 = vst.msk [vmem:[%s3 + $0x104] sm:$0xf] %vm1683, %v1548
  %1750 = vst.msk [vmem:[%s3 + $0x108] sm:$0xf] %vm1683, %v1549
  %1751 = vst.msk [vmem:[%s3 + $0x10c] sm:$0xf] %vm1683, %v1550
  %1752 = vst.msk [vmem:[%s3 + $0x110] sm:$0xf] %vm1683, %v1551
  %1753 = vst.msk [vmem:[%s3 + $0x114] sm:$0xf] %vm1683, %v1552
  %1754 = vst.msk [vmem:[%s3 + $0x118] sm:$0xf] %vm1683, %v1553
  %1755 = vst.msk [vmem:[%s3 + $0x11c] sm:$0xf] %vm1683, %v1554
  %1756 = vst.msk [vmem:[%s3 + $0x120] sm:$0xf] %vm1683, %v1555
  %1757 = vst.msk [vmem:[%s3 + $0x124] sm:$0xf] %vm1683, %v1556
  %1758 = vst.msk [vmem:[%s3 + $0x128] sm:$0xf] %vm1683, %v1557
  %1759 = vst.msk [vmem:[%s3 + $0x12c] sm:$0xf] %vm1683, %v1558
  %1760 = vst.msk [vmem:[%s3 + $0x130] sm:$0xf] %vm1683, %v1559
  %1761 = vst.msk [vmem:[%s3 + $0x134] sm:$0xf] %vm1683, %v1560
  %1762 = vst.msk [vmem:[%s3 + $0x138] sm:$0xf] %vm1683, %v1561
  %1763 = vst.msk [vmem:[%s3 + $0x13c] sm:$0xf] %vm1683, %v1562
  %1764 = vst.msk [vmem:[%s3 + $0x140] sm:$0xf] %vm1683, %v1563
  %1765 = vst.msk [vmem:[%s3 + $0x144] sm:$0xf] %vm1683, %v1564
  %1766 = vst.msk [vmem:[%s3 + $0x148] sm:$0xf] %vm1683, %v1565
  %1767 = vst.msk [vmem:[%s3 + $0x14c] sm:$0xf] %vm1683, %v1566
  %1768 = vst.msk [vmem:[%s3 + $0x150] sm:$0xf] %vm1683, %v1567
  %1769 = vst.msk [vmem:[%s3 + $0x154] sm:$0xf] %vm1683, %v1568
  %1770 = vst.msk [vmem:[%s3 + $0x158] sm:$0xf] %vm1683, %v1569
  %1771 = vst.msk [vmem:[%s3 + $0x15c] sm:$0xf] %vm1683, %v1570
  %1772 = vst.msk [vmem:[%s3 + $0x160] sm:$0xf] %vm1683, %v1571
  %1773 = vst.msk [vmem:[%s3 + $0x164] sm:$0xf] %vm1683, %v1572
  %1774 = vst.msk [vmem:[%s3 + $0x168] sm:$0xf] %vm1683, %v1573
  %1775 = vst.msk [vmem:[%s3 + $0x16c] sm:$0xf] %vm1683, %v1574
  %1776 = vst.msk [vmem:[%s3 + $0x170] sm:$0xf] %vm1683, %v1575
  %1777 = vst.msk [vmem:[%s3 + $0x174] sm:$0xf] %vm1683, %v1576
  %1778 = vst.msk [vmem:[%s3 + $0x178] sm:$0xf] %vm1683, %v1577
  %1779 = vst.msk [vmem:[%s3 + $0x17c] sm:$0xf] %vm1683, %v1578
  %1780 = vst.msk [vmem:[%s3 + $0x180] sm:$0xf] %vm1683, %v1579
  %1781 = vst.msk [vmem:[%s3 + $0x184] sm:$0xf] %vm1683, %v1580
  %1782 = vst.msk [vmem:[%s3 + $0x188] sm:$0xf] %vm1683, %v1581
  %1783 = vst.msk [vmem:[%s3 + $0x18c] sm:$0xf] %vm1683, %v1582
  // Predicated region
  $region14: #{qnetwork_forward.3} parent=0 // pred_check
    _
  $region15: #{qnetwork_forward.3} parent=0 // pred_check_branch
    %1785 = sbr.rel (0) target = $region17
  $region16: #{qnetwork_forward.3} parent=0 // pred_region
    _
  $region17: #{qnetwork_forward.3} parent=0 // pred_fallthru
    _
  // Predicated region
  $region18: #{qnetwork_forward.3} parent=0 // pred_check
    _
  $region19: #{qnetwork_forward.3} parent=0 // pred_check_branch
    %1787 = sbr.rel (0) target = $region21
  $region20: #{qnetwork_forward.3} parent=0 // pred_region
    _
  $region21: #{qnetwork_forward.3} parent=0 // pred_fallthru
    _

// kernel: qnetwork_forward.4
$region0: #{qnetwork_forward.4}
  #allocation0 [shape = 'u32[]', space=smem, size = 0x4, offset = 0x4, fixed_abs, tag = 'smem constant byte address 0x4 - core index']
  #allocation1 [shape = 'u32[144,128]{1,0:T(1,128)}', space=vmem, size = 0x12000, scoped, tag = 'internal scratch']
  %s0 = inlined_call_operand.vmem [shape: bf16[176,512], index: 0, kind: input, shape index: {}]
  %s1 = inlined_call_operand.vmem [shape: bf16[512,64], index: 1, kind: input, shape index: {}]
  %s2 = inlined_call_operand.vmem [shape: f32[1,64], index: 2, kind: input, shape index: {}]
  %s3 = inlined_call_operand.vmem [shape: bf16[176,64], index: 3, kind: output, shape index: {}]
  %s4 = sld [smem:[#allocation0]]
  $region22: #{qnetwork_forward.4} parent=0
    _
  %s6 = ssub.s32 1, %s4
  %s7 = scalar_select 0, %s6, %s4
  // Predicated region
  $region2: #{qnetwork_forward.4} parent=0 // pred_check
    _
  $region3: #{qnetwork_forward.4} parent=0 // pred_check_branch
    %9 = sbr.rel (0) target = $region5
  $region4: #{qnetwork_forward.4} parent=0 // pred_region
    _
  $region5: #{qnetwork_forward.4} parent=0 // pred_fallthru
    _
  // Predicated region
  $region6: #{qnetwork_forward.4} parent=0 // pred_check
    _
  $region7: #{qnetwork_forward.4} parent=0 // pred_check_branch
    %11 = sbr.rel (0) target = $region9
  $region8: #{qnetwork_forward.4} parent=0 // pred_region
    _
  $region9: #{qnetwork_forward.4} parent=0 // pred_fallthru
    _
  // Predicated region
  $region10: #{qnetwork_forward.4} parent=0 // pred_check
    _
  $region11: #{qnetwork_forward.4} parent=0 // pred_check_branch
    %13 = sbr.rel (0) target = $region13
  $region12: #{qnetwork_forward.4} parent=0 // pred_region
    _
  $region13: #{qnetwork_forward.4} parent=0 // pred_fallthru
    _
  %v15 = vld [vmem:[%s0] sm:$0xff]
  %v16 = vld [vmem:[%s0 + $0x8] sm:$0xff]
  %v17 = vld [vmem:[%s0 + $0x10] sm:$0xff]
  %v18 = vld [vmem:[%s0 + $0x18] sm:$0xff]
  %v19 = vld [vmem:[%s0 + $0x20] sm:$0xff]
  %v20 = vld [vmem:[%s0 + $0x28] sm:$0xff]
  %v21 = vld [vmem:[%s0 + $0x30] sm:$0xff]
  %v22 = vld [vmem:[%s0 + $0x38] sm:$0xff]
  %v23 = vld [vmem:[%s0 + $0x40] sm:$0xff]
  %v24 = vld [vmem:[%s0 + $0x48] sm:$0xff]
  %v25 = vld [vmem:[%s0 + $0x50] sm:$0xff]
  %v26 = vld [vmem:[%s0 + $0x58] sm:$0xff]
  %v27 = vld [vmem:[%s0 + $0x60] sm:$0xff]
  %v28 = vld [vmem:[%s0 + $0x68] sm:$0xff]
  %v29 = vld [vmem:[%s0 + $0x70] sm:$0xff]
  %v30 = vld [vmem:[%s0 + $0x78] sm:$0xff]
  %v31 = vld [vmem:[%s0 + $0x80] sm:$0xff]
  %v32 = vld [vmem:[%s0 + $0x88] sm:$0xff]
  %v33 = vld [vmem:[%s0 + $0x90] sm:$0xff]
  %v34 = vld [vmem:[%s0 + $0x98] sm:$0xff]
  %v35 = vld [vmem:[%s0 + $0xa0] sm:$0xff]
  %v36 = vld [vmem:[%s0 + $0xa8] sm:$0xff]
  %v37 = vld [vmem:[%s0 + $0xb0] sm:$0xff]
  %v38 = vld [vmem:[%s0 + $0xb8] sm:$0xff]
  %v39 = vld [vmem:[%s0 + $0xc0] sm:$0xff]
  %v40 = vld [vmem:[%s0 + $0xc8] sm:$0xff]
  %v41 = vld [vmem:[%s0 + $0xd0] sm:$0xff]
  %v42 = vld [vmem:[%s0 + $0xd8] sm:$0xff]
  %v43 = vld [vmem:[%s0 + $0xe0] sm:$0xff]
  %v44 = vld [vmem:[%s0 + $0xe8] sm:$0xff]
  %v45 = vld [vmem:[%s0 + $0xf0] sm:$0xff]
  %v46 = vld [vmem:[%s0 + $0xf8] sm:$0xff]
  %v47 = vld [vmem:[%s0 + $0x100] sm:$0xff]
  %v48 = vld [vmem:[%s0 + $0x108] sm:$0xff]
  %v49 = vld [vmem:[%s0 + $0x110] sm:$0xff]
  %v50 = vld [vmem:[%s0 + $0x118] sm:$0xff]
  %v51 = vld [vmem:[%s0 + $0x120] sm:$0xff]
  %v52 = vld [vmem:[%s0 + $0x128] sm:$0xff]
  %v53 = vld [vmem:[%s0 + $0x130] sm:$0xff]
  %v54 = vld [vmem:[%s0 + $0x138] sm:$0xff]
  %v55 = vld [vmem:[%s0 + $0x140] sm:$0xff]
  %v56 = vld [vmem:[%s0 + $0x148] sm:$0xff]
  %v57 = vld [vmem:[%s0 + $0x150] sm:$0xff]
  %v58 = vld [vmem:[%s0 + $0x158] sm:$0xff]
  %v59 = vld [vmem:[%s1] sm:$0xf]
  %v60 = vld [vmem:[%s1 + $0x4] sm:$0xf]
  %v61 = vld [vmem:[%s1 + $0x8] sm:$0xf]
  %v62 = vld [vmem:[%s1 + $0xc] sm:$0xf]
  %v63 = vld [vmem:[%s1 + $0x10] sm:$0xf]
  %v64 = vld [vmem:[%s1 + $0x14] sm:$0xf]
  %v65 = vld [vmem:[%s1 + $0x18] sm:$0xf]
  %v66 = vld [vmem:[%s1 + $0x1c] sm:$0xf]
  %v67 = vld [vmem:[%s1 + $0x20] sm:$0xf]
  %v68 = vld [vmem:[%s1 + $0x24] sm:$0xf]
  %v69 = vld [vmem:[%s1 + $0x28] sm:$0xf]
  %v70 = vld [vmem:[%s1 + $0x2c] sm:$0xf]
  %v71 = vld [vmem:[%s1 + $0x30] sm:$0xf]
  %v72 = vld [vmem:[%s1 + $0x34] sm:$0xf]
  %v73 = vld [vmem:[%s1 + $0x38] sm:$0xf]
  %v74 = vld [vmem:[%s1 + $0x3c] sm:$0xf]
  %v75 = vld [vmem:[%s1 + $0x40] sm:$0xf]
  %v76 = vld [vmem:[%s1 + $0x44] sm:$0xf]
  %v77 = vld [vmem:[%s1 + $0x48] sm:$0xf]
  %v78 = vld [vmem:[%s1 + $0x4c] sm:$0xf]
  %v79 = vld [vmem:[%s1 + $0x50] sm:$0xf]
  %v80 = vld [vmem:[%s1 + $0x54] sm:$0xf]
  %v81 = vld [vmem:[%s1 + $0x58] sm:$0xf]
  %v82 = vld [vmem:[%s1 + $0x5c] sm:$0xf]
  %v83 = vld [vmem:[%s1 + $0x60] sm:$0xf]
  %v84 = vld [vmem:[%s1 + $0x64] sm:$0xf]
  %v85 = vld [vmem:[%s1 + $0x68] sm:$0xf]
  %v86 = vld [vmem:[%s1 + $0x6c] sm:$0xf]
  %v87 = vld [vmem:[%s1 + $0x70] sm:$0xf]
  %v88 = vld [vmem:[%s1 + $0x74] sm:$0xf]
  %v89 = vld [vmem:[%s1 + $0x78] sm:$0xf]
  %v90 = vld [vmem:[%s1 + $0x7c] sm:$0xf]
  %v91 = vld [vmem:[%s1 + $0x80] sm:$0xf]
  %v92 = vld [vmem:[%s1 + $0x84] sm:$0xf]
  %v93 = vld [vmem:[%s1 + $0x88] sm:$0xf]
  %v94 = vld [vmem:[%s1 + $0x8c] sm:$0xf]
  %v95 = vld [vmem:[%s1 + $0x90] sm:$0xf]
  %v96 = vld [vmem:[%s1 + $0x94] sm:$0xf]
  %v97 = vld [vmem:[%s1 + $0x98] sm:$0xf]
  %v98 = vld [vmem:[%s1 + $0x9c] sm:$0xf]
  %v99 = vld [vmem:[%s1 + $0xa0] sm:$0xf]
  %v100 = vld [vmem:[%s1 + $0xa4] sm:$0xf]
  %v101 = vld [vmem:[%s1 + $0xa8] sm:$0xf]
  %v102 = vld [vmem:[%s1 + $0xac] sm:$0xf]
  %v103 = vld [vmem:[%s1 + $0xb0] sm:$0xf]
  %v104 = vld [vmem:[%s1 + $0xb4] sm:$0xf]
  %v105 = vld [vmem:[%s1 + $0xb8] sm:$0xf]
  %v106 = vld [vmem:[%s1 + $0xbc] sm:$0xf]
  %v107 = vld [vmem:[%s1 + $0xc0] sm:$0xf]
  %v108 = vld [vmem:[%s1 + $0xc4] sm:$0xf]
  %v109 = vld [vmem:[%s1 + $0xc8] sm:$0xf]
  %v110 = vld [vmem:[%s1 + $0xcc] sm:$0xf]
  %v111 = vld [vmem:[%s1 + $0xd0] sm:$0xf]
  %v112 = vld [vmem:[%s1 + $0xd4] sm:$0xf]
  %v113 = vld [vmem:[%s1 + $0xd8] sm:$0xf]
  %v114 = vld [vmem:[%s1 + $0xdc] sm:$0xf]
  %v115 = vld [vmem:[%s1 + $0xe0] sm:$0xf]
  %v116 = vld [vmem:[%s1 + $0xe4] sm:$0xf]
  %v117 = vld [vmem:[%s1 + $0xe8] sm:$0xf]
  %v118 = vld [vmem:[%s1 + $0xec] sm:$0xf]
  %v119 = vld [vmem:[%s1 + $0xf0] sm:$0xf]
  %v120 = vld [vmem:[%s1 + $0xf4] sm:$0xf]
  %v121 = vld [vmem:[%s1 + $0xf8] sm:$0xf]
  %v122 = vld [vmem:[%s1 + $0xfc] sm:$0xf]
  %v123 = vld [vmem:[%s2] sm:$0x1]
  %v125 = vlaneseq
  %v126 = vshrl.u32 %v125, 7
  %v127 = vsub.s32 0, %v126
  %v128 = vrot.slane %v123, %v127
  %v174 = vunpack.c.l.b16 %v15
  %v175 = vunpack.c.h.b16 %v15
  %v176 = vunpack.c.l.b16 %v16
  %v177 = vunpack.c.h.b16 %v16
  %v178 = vunpack.c.l.b16 %v17
  %v179 = vunpack.c.h.b16 %v17
  %v180 = vunpack.c.l.b16 %v18
  %v181 = vunpack.c.h.b16 %v18
  %v182 = vunpack.c.l.b16 %v19
  %v183 = vunpack.c.h.b16 %v19
  %v184 = vunpack.c.l.b16 %v20
  %v185 = vunpack.c.h.b16 %v20
  %v186 = vunpack.c.l.b16 %v21
  %v187 = vunpack.c.h.b16 %v21
  %v188 = vunpack.c.l.b16 %v22
  %v189 = vunpack.c.h.b16 %v22
  %v190 = vunpack.c.l.b16 %v23
  %v191 = vunpack.c.h.b16 %v23
  %v192 = vunpack.c.l.b16 %v24
  %v193 = vunpack.c.h.b16 %v24
  %v194 = vunpack.c.l.b16 %v25
  %v195 = vunpack.c.h.b16 %v25
  %v196 = vunpack.c.l.b16 %v26
  %v197 = vunpack.c.h.b16 %v26
  %v198 = vunpack.c.l.b16 %v27
  %v199 = vunpack.c.h.b16 %v27
  %v200 = vunpack.c.l.b16 %v28
  %v201 = vunpack.c.h.b16 %v28
  %v202 = vunpack.c.l.b16 %v29
  %v203 = vunpack.c.h.b16 %v29
  %v204 = vunpack.c.l.b16 %v30
  %v205 = vunpack.c.h.b16 %v30
  %v206 = vunpack.c.l.b16 %v31
  %v207 = vunpack.c.h.b16 %v31
  %v208 = vunpack.c.l.b16 %v32
  %v209 = vunpack.c.h.b16 %v32
  %v210 = vunpack.c.l.b16 %v33
  %v211 = vunpack.c.h.b16 %v33
  %v212 = vunpack.c.l.b16 %v34
  %v213 = vunpack.c.h.b16 %v34
  %v214 = vunpack.c.l.b16 %v35
  %v215 = vunpack.c.h.b16 %v35
  %v216 = vunpack.c.l.b16 %v36
  %v217 = vunpack.c.h.b16 %v36
  %v218 = vunpack.c.l.b16 %v37
  %v219 = vunpack.c.h.b16 %v37
  %v220 = vunpack.c.l.b16 %v38
  %v221 = vunpack.c.h.b16 %v38
  %v222 = vunpack.c.l.b16 %v39
  %v223 = vunpack.c.h.b16 %v39
  %v224 = vunpack.c.l.b16 %v40
  %v225 = vunpack.c.h.b16 %v40
  %v226 = vunpack.c.l.b16 %v41
  %v227 = vunpack.c.h.b16 %v41
  %v228 = vunpack.c.l.b16 %v42
  %v229 = vunpack.c.h.b16 %v42
  %v230 = vunpack.c.l.b16 %v43
  %v231 = vunpack.c.h.b16 %v43
  %v232 = vunpack.c.l.b16 %v44
  %v233 = vunpack.c.h.b16 %v44
  %v234 = vunpack.c.l.b16 %v45
  %v235 = vunpack.c.h.b16 %v45
  %v236 = vunpack.c.l.b16 %v46
  %v237 = vunpack.c.h.b16 %v46
  %v238 = vunpack.c.l.b16 %v47
  %v239 = vunpack.c.h.b16 %v47
  %v240 = vunpack.c.l.b16 %v48
  %v241 = vunpack.c.h.b16 %v48
  %v242 = vunpack.c.l.b16 %v49
  %v243 = vunpack.c.h.b16 %v49
  %v244 = vunpack.c.l.b16 %v50
  %v245 = vunpack.c.h.b16 %v50
  %v246 = vunpack.c.l.b16 %v51
  %v247 = vunpack.c.h.b16 %v51
  %v248 = vunpack.c.l.b16 %v52
  %v249 = vunpack.c.h.b16 %v52
  %v250 = vunpack.c.l.b16 %v53
  %v251 = vunpack.c.h.b16 %v53
  %v252 = vunpack.c.l.b16 %v54
  %v253 = vunpack.c.h.b16 %v54
  %v254 = vunpack.c.l.b16 %v55
  %v255 = vunpack.c.h.b16 %v55
  %v256 = vunpack.c.l.b16 %v56
  %v257 = vunpack.c.h.b16 %v56
  %v258 = vunpack.c.l.b16 %v57
  %v259 = vunpack.c.h.b16 %v57
  %v260 = vunpack.c.l.b16 %v58
  %v261 = vunpack.c.h.b16 %v58
  %v262 = vpack.c.b16 %v178, %v174
  %v263 = vpack.c.b16 %v179, %v175
  %v264 = vpack.c.b16 %v180, %v176
  %v265 = vpack.c.b16 %v181, %v177
  %v266 = vpack.c.b16 %v186, %v182
  %v267 = vpack.c.b16 %v187, %v183
  %v268 = vpack.c.b16 %v188, %v184
  %v269 = vpack.c.b16 %v189, %v185
  %v270 = vpack.c.b16 %v194, %v190
  %v271 = vpack.c.b16 %v195, %v191
  %v272 = vpack.c.b16 %v196, %v192
  %v273 = vpack.c.b16 %v197, %v193
  %v274 = vpack.c.b16 %v202, %v198
  %v275 = vpack.c.b16 %v203, %v199
  %v276 = vpack.c.b16 %v204, %v200
  %v277 = vpack.c.b16 %v205, %v201
  %v278 = vpack.c.b16 %v210, %v206
  %v279 = vpack.c.b16 %v211, %v207
  %v280 = vpack.c.b16 %v212, %v208
  %v281 = vpack.c.b16 %v213, %v209
  %v282 = vpack.c.b16 %v218, %v214
  %v283 = vpack.c.b16 %v219, %v215
  %v284 = vpack.c.b16 %v220, %v216
  %v285 = vpack.c.b16 %v221, %v217
  %v286 = vpack.c.b16 %v226, %v222
  %v287 = vpack.c.b16 %v227, %v223
  %v288 = vpack.c.b16 %v228, %v224
  %v289 = vpack.c.b16 %v229, %v225
  %v290 = vpack.c.b16 %v234, %v230
  %v291 = vpack.c.b16 %v235, %v231
  %v292 = vpack.c.b16 %v236, %v232
  %v293 = vpack.c.b16 %v237, %v233
  %v294 = vpack.c.b16 %v242, %v238
  %v295 = vpack.c.b16 %v243, %v239
  %v296 = vpack.c.b16 %v244, %v240
  %v297 = vpack.c.b16 %v245, %v241
  %v298 = vpack.c.b16 %v250, %v246
  %v299 = vpack.c.b16 %v251, %v247
  %v300 = vpack.c.b16 %v252, %v248
  %v301 = vpack.c.b16 %v253, %v249
  %v302 = vpack.c.b16 %v258, %v254
  %v303 = vpack.c.b16 %v259, %v255
  %v304 = vpack.c.b16 %v260, %v256
  %v305 = vpack.c.b16 %v261, %v257
  %v414 = vunpack.c.l.b16 %v59
  %v415 = vunpack.c.l.b16 %v60
  %v416 = vunpack.c.l.b16 %v61
  %v417 = vunpack.c.l.b16 %v62
  %v418 = vunpack.c.l.b16 %v63
  %v419 = vunpack.c.l.b16 %v64
  %v420 = vunpack.c.l.b16 %v65
  %v421 = vunpack.c.l.b16 %v66
  %v422 = vunpack.c.l.b16 %v67
  %v423 = vunpack.c.l.b16 %v68
  %v424 = vunpack.c.l.b16 %v69
  %v425 = vunpack.c.l.b16 %v70
  %v426 = vunpack.c.l.b16 %v71
  %v427 = vunpack.c.l.b16 %v72
  %v428 = vunpack.c.l.b16 %v73
  %v429 = vunpack.c.l.b16 %v74
  %v430 = vunpack.c.l.b16 %v75
  %v431 = vunpack.c.l.b16 %v76
  %v432 = vunpack.c.l.b16 %v77
  %v433 = vunpack.c.l.b16 %v78
  %v434 = vunpack.c.l.b16 %v79
  %v435 = vunpack.c.l.b16 %v80
  %v436 = vunpack.c.l.b16 %v81
  %v437 = vunpack.c.l.b16 %v82
  %v438 = vunpack.c.l.b16 %v83
  %v439 = vunpack.c.l.b16 %v84
  %v440 = vunpack.c.l.b16 %v85
  %v441 = vunpack.c.l.b16 %v86
  %v442 = vunpack.c.l.b16 %v87
  %v443 = vunpack.c.l.b16 %v88
  %v444 = vunpack.c.l.b16 %v89
  %v445 = vunpack.c.l.b16 %v90
  %v446 = vunpack.c.l.b16 %v91
  %v447 = vunpack.c.l.b16 %v92
  %v448 = vunpack.c.l.b16 %v93
  %v449 = vunpack.c.l.b16 %v94
  %v450 = vunpack.c.l.b16 %v95
  %v451 = vunpack.c.l.b16 %v96
  %v452 = vunpack.c.l.b16 %v97
  %v453 = vunpack.c.l.b16 %v98
  %v454 = vunpack.c.l.b16 %v99
  %v455 = vunpack.c.l.b16 %v100
  %v456 = vunpack.c.l.b16 %v101
  %v457 = vunpack.c.l.b16 %v102
  %v458 = vunpack.c.l.b16 %v103
  %v459 = vunpack.c.l.b16 %v104
  %v460 = vunpack.c.l.b16 %v105
  %v461 = vunpack.c.l.b16 %v106
  %v462 = vunpack.c.l.b16 %v107
  %v463 = vunpack.c.l.b16 %v108
  %v464 = vunpack.c.l.b16 %v109
  %v465 = vunpack.c.l.b16 %v110
  %v466 = vunpack.c.l.b16 %v111
  %v467 = vunpack.c.l.b16 %v112
  %v468 = vunpack.c.l.b16 %v113
  %v469 = vunpack.c.l.b16 %v114
  %v470 = vunpack.c.l.b16 %v115
  %v471 = vunpack.c.l.b16 %v116
  %v472 = vunpack.c.l.b16 %v117
  %v473 = vunpack.c.l.b16 %v118
  %v474 = vunpack.c.l.b16 %v119
  %v475 = vunpack.c.l.b16 %v120
  %v476 = vunpack.c.l.b16 %v121
  %v477 = vunpack.c.l.b16 %v122
  %v478 = vpack.c.b16 %v415, %v414
  %v479 = vpack.c.b16 %v417, %v416
  %v480 = vpack.c.b16 %v419, %v418
  %v481 = vpack.c.b16 %v421, %v420
  %v482 = vpack.c.b16 %v423, %v422
  %v483 = vpack.c.b16 %v425, %v424
  %v484 = vpack.c.b16 %v427, %v426
  %v485 = vpack.c.b16 %v429, %v428
  %v486 = vpack.c.b16 %v431, %v430
  %v487 = vpack.c.b16 %v433, %v432
  %v488 = vpack.c.b16 %v435, %v434
  %v489 = vpack.c.b16 %v437, %v436
  %v490 = vpack.c.b16 %v439, %v438
  %v491 = vpack.c.b16 %v441, %v440
  %v492 = vpack.c.b16 %v443, %v442
  %v493 = vpack.c.b16 %v445, %v444
  %v494 = vpack.c.b16 %v447, %v446
  %v495 = vpack.c.b16 %v449, %v448
  %v496 = vpack.c.b16 %v451, %v450
  %v497 = vpack.c.b16 %v453, %v452
  %v498 = vpack.c.b16 %v455, %v454
  %v499 = vpack.c.b16 %v457, %v456
  %v500 = vpack.c.b16 %v459, %v458
  %v501 = vpack.c.b16 %v461, %v460
  %v502 = vpack.c.b16 %v463, %v462
  %v503 = vpack.c.b16 %v465, %v464
  %v504 = vpack.c.b16 %v467, %v466
  %v505 = vpack.c.b16 %v469, %v468
  %v506 = vpack.c.b16 %v471, %v470
  %v507 = vpack.c.b16 %v473, %v472
  %v508 = vpack.c.b16 %v475, %v474
  %v509 = vpack.c.b16 %v477, %v476
  %542 = vmatprep.subr.bf16.mxu0 0
  %543 = vmatpush1.bf16.msra.mxu0 %v478
  %544 = vmatprep.subr.bf16.mxu0 0
  %545 = vmatpush1.bf16.msra.mxu0 %v479
  %546 = vmatprep.subr.bf16.mxu0 0
  %547 = vmatpush1.bf16.msra.mxu0 %v480
  %548 = vmatprep.subr.bf16.mxu0 0
  %549 = vmatpush1.bf16.msra.mxu0 %v481
  %550 = vmatprep.subr.bf16.mxu0 0
  %551 = vmatpush1.bf16.msra.mxu0 %v482
  %552 = vmatprep.subr.bf16.mxu0 0
  %553 = vmatpush1.bf16.msra.mxu0 %v483
  %554 = vmatprep.subr.bf16.mxu0 0
  %555 = vmatpush1.bf16.msra.mxu0 %v484
  %556 = vmatprep.subr.bf16.mxu0 0
  %557 = vmatpush1.bf16.msra.mxu0 %v485
  %558 = vmatprep.subr.bf16.mxu0 0
  %559 = vmatpush1.bf16.msra.mxu0 %v486
  %560 = vmatprep.subr.bf16.mxu0 0
  %561 = vmatpush1.bf16.msra.mxu0 %v487
  %562 = vmatprep.subr.bf16.mxu0 0
  %563 = vmatpush1.bf16.msra.mxu0 %v488
  %564 = vmatprep.subr.bf16.mxu0 0
  %565 = vmatpush1.bf16.msra.mxu0 %v489
  %566 = vmatprep.subr.bf16.mxu0 0
  %567 = vmatpush1.bf16.msra.mxu0 %v490
  %568 = vmatprep.subr.bf16.mxu0 0
  %569 = vmatpush1.bf16.msra.mxu0 %v491
  %570 = vmatprep.subr.bf16.mxu0 0
  %571 = vmatpush1.bf16.msra.mxu0 %v492
  %572 = vmatprep.subr.bf16.mxu0 0
  %573 = vmatpush1.bf16.msra.mxu0 %v493
  %574 = vmatprep.mubr.bf16.mxu0 %v263
  %575 = vmatmul.mubr.bf16.gmra.mrb[0].mxu0 %v262
  %v576 = vpop.f32.mrb[0].mxu0
  %v577 = vadd.f32 %v128, %v576
  %v578 = vpop.f32.mrb[0].mxu0
  %v579 = vpop.f32.mrb[0].mxu0
  %v580 = vadd.f32 %v128, %v579
  %v581 = vpop.f32.mrb[0].mxu0
  %582 = vmatprep.mubr.bf16.mxu0 %v267
  %583 = vmatmul.mubr.bf16.gmra.mrb[0].mxu0 %v266
  %v584 = vpop.f32.mrb[0].mxu0
  %v585 = vadd.f32 %v128, %v584
  %v586 = vpop.f32.mrb[0].mxu0
  %v587 = vpop.f32.mrb[0].mxu0
  %v588 = vadd.f32 %v128, %v587
  %v589 = vpop.f32.mrb[0].mxu0
  %590 = vmatprep.mubr.bf16.mxu0 %v271
  %591 = vmatmul.mubr.bf16.gmra.mrb[0].mxu0 %v270
  %v592 = vpop.f32.mrb[0].mxu0
  %v593 = vadd.f32 %v128, %v592
  %v594 = vpop.f32.mrb[0].mxu0
  %v595 = vpop.f32.mrb[0].mxu0
  %v596 = vadd.f32 %v128, %v595
  %v597 = vpop.f32.mrb[0].mxu0
  %598 = vmatprep.mubr.bf16.mxu0 %v275
  %599 = vmatmul.mubr.bf16.gmra.mrb[0].mxu0 %v274
  %v600 = vpop.f32.mrb[0].mxu0
  %v601 = vadd.f32 %v128, %v600
  %v602 = vpop.f32.mrb[0].mxu0
  %v603 = vpop.f32.mrb[0].mxu0
  %v604 = vadd.f32 %v128, %v603
  %v605 = vpop.f32.mrb[0].mxu0
  %606 = vmatprep.mubr.bf16.mxu0 %v279
  %607 = vmatmul.mubr.bf16.gmra.mrb[0].mxu0 %v278
  %v608 = vpop.f32.mrb[0].mxu0
  %v609 = vadd.f32 %v128, %v608
  %v610 = vpop.f32.mrb[0].mxu0
  %v611 = vpop.f32.mrb[0].mxu0
  %v612 = vadd.f32 %v128, %v611
  %v613 = vpop.f32.mrb[0].mxu0
  %614 = vmatprep.mubr.bf16.mxu0 %v283
  %615 = vmatmul.mubr.bf16.gmra.mrb[0].mxu0 %v282
  %v616 = vpop.f32.mrb[0].mxu0
  %v617 = vadd.f32 %v128, %v616
  %v618 = vpop.f32.mrb[0].mxu0
  %v619 = vpop.f32.mrb[0].mxu0
  %v620 = vadd.f32 %v128, %v619
  %v621 = vpop.f32.mrb[0].mxu0
  %622 = vmatprep.mubr.bf16.mxu0 %v287
  %623 = vmatmul.mubr.bf16.gmra.mrb[0].mxu0 %v286
  %v624 = vpop.f32.mrb[0].mxu0
  %v625 = vadd.f32 %v128, %v624
  %v626 = vpop.f32.mrb[0].mxu0
  %v627 = vpop.f32.mrb[0].mxu0
  %v628 = vadd.f32 %v128, %v627
  %v629 = vpop.f32.mrb[0].mxu0
  %630 = vmatprep.mubr.bf16.mxu0 %v291
  %631 = vmatmul.mubr.bf16.gmra.mrb[0].mxu0 %v290
  %v632 = vpop.f32.mrb[0].mxu0
  %v633 = vadd.f32 %v128, %v632
  %v634 = vpop.f32.mrb[0].mxu0
  %v635 = vpop.f32.mrb[0].mxu0
  %v636 = vadd.f32 %v128, %v635
  %v637 = vpop.f32.mrb[0].mxu0
  %638 = vmatprep.mubr.bf16.mxu0 %v295
  %639 = vmatmul.mubr.bf16.gmra.mrb[0].mxu0 %v294
  %v640 = vpop.f32.mrb[0].mxu0
  %v641 = vadd.f32 %v128, %v640
  %v642 = vpop.f32.mrb[0].mxu0
  %v643 = vpop.f32.mrb[0].mxu0
  %v644 = vadd.f32 %v128, %v643
  %v645 = vpop.f32.mrb[0].mxu0
  %646 = vmatprep.mubr.bf16.mxu0 %v299
  %647 = vmatmul.mubr.bf16.gmra.mrb[0].mxu0 %v298
  %v648 = vpop.f32.mrb[0].mxu0
  %v649 = vadd.f32 %v128, %v648
  %v650 = vpop.f32.mrb[0].mxu0
  %v651 = vpop.f32.mrb[0].mxu0
  %v652 = vadd.f32 %v128, %v651
  %v653 = vpop.f32.mrb[0].mxu0
  %654 = vmatprep.mubr.bf16.mxu0 %v303
  %655 = vmatmul.mubr.bf16.gmra.mrb[0].mxu0 %v302
  %v656 = vpop.f32.mrb[0].mxu0
  %v657 = vadd.f32 %v128, %v656
  %v658 = vpop.f32.mrb[0].mxu0
  %v659 = vpop.f32.mrb[0].mxu0
  %v660 = vadd.f32 %v128, %v659
  %v661 = vpop.f32.mrb[0].mxu0
  %662 = vdwg.mxu0
  %663 = vmatprep.subr.bf16.mxu0 0
  %664 = vmatpush1.bf16.msra.mxu0 %v494
  %665 = vmatprep.subr.bf16.mxu0 0
  %666 = vmatpush1.bf16.msra.mxu0 %v495
  %667 = vmatprep.subr.bf16.mxu0 0
  %668 = vmatpush1.bf16.msra.mxu0 %v496
  %669 = vmatprep.subr.bf16.mxu0 0
  %670 = vmatpush1.bf16.msra.mxu0 %v497
  %671 = vmatprep.subr.bf16.mxu0 0
  %672 = vmatpush1.bf16.msra.mxu0 %v498
  %673 = vmatprep.subr.bf16.mxu0 0
  %674 = vmatpush1.bf16.msra.mxu0 %v499
  %675 = vmatprep.subr.bf16.mxu0 0
  %676 = vmatpush1.bf16.msra.mxu0 %v500
  %677 = vmatprep.subr.bf16.mxu0 0
  %678 = vmatpush1.bf16.msra.mxu0 %v501
  %679 = vmatprep.subr.bf16.mxu0 0
  %680 = vmatpush1.bf16.msra.mxu0 %v502
  %681 = vmatprep.subr.bf16.mxu0 0
  %682 = vmatpush1.bf16.msra.mxu0 %v503
  %683 = vmatprep.subr.bf16.mxu0 0
  %684 = vmatpush1.bf16.msra.mxu0 %v504
  %685 = vmatprep.subr.bf16.mxu0 0
  %686 = vmatpush1.bf16.msra.mxu0 %v505
  %687 = vmatprep.subr.bf16.mxu0 0
  %688 = vmatpush1.bf16.msra.mxu0 %v506
  %689 = vmatprep.subr.bf16.mxu0 0
  %690 = vmatpush1.bf16.msra.mxu0 %v507
  %691 = vmatprep.subr.bf16.mxu0 0
  %692 = vmatpush1.bf16.msra.mxu0 %v508
  %693 = vmatprep.subr.bf16.mxu0 0
  %694 = vmatpush1.bf16.msra.mxu0 %v509
  %695 = vmatprep.mubr.bf16.mxu0 %v265
  %696 = vmatmul.mubr.bf16.gmra.mrb[0].mxu0 %v264
  %v697 = vpop.f32.mrb[0].mxu0
  %v698 = vadd.f32 %v577, %v697
  %v699 = vpop.f32.mrb[0].mxu0
  %v700 = vpop.f32.mrb[0].mxu0
  %v701 = vadd.f32 %v580, %v700
  %v702 = vpop.f32.mrb[0].mxu0
  %703 = vmatprep.mubr.bf16.mxu0 %v269
  %704 = vmatmul.mubr.bf16.gmra.mrb[0].mxu0 %v268
  %v705 = vpop.f32.mrb[0].mxu0
  %v706 = vadd.f32 %v585, %v705
  %v707 = vpop.f32.mrb[0].mxu0
  %v708 = vpop.f32.mrb[0].mxu0
  %v709 = vadd.f32 %v588, %v708
  %v710 = vpop.f32.mrb[0].mxu0
  %711 = vmatprep.mubr.bf16.mxu0 %v273
  %712 = vmatmul.mubr.bf16.gmra.mrb[0].mxu0 %v272
  %v713 = vpop.f32.mrb[0].mxu0
  %v714 = vadd.f32 %v593, %v713
  %v715 = vpop.f32.mrb[0].mxu0
  %v716 = vpop.f32.mrb[0].mxu0
  %v717 = vadd.f32 %v596, %v716
  %v718 = vpop.f32.mrb[0].mxu0
  %719 = vmatprep.mubr.bf16.mxu0 %v277
  %720 = vmatmul.mubr.bf16.gmra.mrb[0].mxu0 %v276
  %v721 = vpop.f32.mrb[0].mxu0
  %v722 = vadd.f32 %v601, %v721
  %v723 = vpop.f32.mrb[0].mxu0
  %v724 = vpop.f32.mrb[0].mxu0
  %v725 = vadd.f32 %v604, %v724
  %v726 = vpop.f32.mrb[0].mxu0
  %727 = vmatprep.mubr.bf16.mxu0 %v281
  %728 = vmatmul.mubr.bf16.gmra.mrb[0].mxu0 %v280
  %v729 = vpop.f32.mrb[0].mxu0
  %v730 = vadd.f32 %v609, %v729
  %v731 = vpop.f32.mrb[0].mxu0
  %v732 = vpop.f32.mrb[0].mxu0
  %v733 = vadd.f32 %v612, %v732
  %v734 = vpop.f32.mrb[0].mxu0
  %735 = vmatprep.mubr.bf16.mxu0 %v285
  %736 = vmatmul.mubr.bf16.gmra.mrb[0].mxu0 %v284
  %v737 = vpop.f32.mrb[0].mxu0
  %v738 = vadd.f32 %v617, %v737
  %v739 = vpop.f32.mrb[0].mxu0
  %v740 = vpop.f32.mrb[0].mxu0
  %v741 = vadd.f32 %v620, %v740
  %v742 = vpop.f32.mrb[0].mxu0
  %743 = vmatprep.mubr.bf16.mxu0 %v289
  %744 = vmatmul.mubr.bf16.gmra.mrb[0].mxu0 %v288
  %v745 = vpop.f32.mrb[0].mxu0
  %v746 = vadd.f32 %v625, %v745
  %v747 = vpop.f32.mrb[0].mxu0
  %v748 = vpop.f32.mrb[0].mxu0
  %v749 = vadd.f32 %v628, %v748
  %v750 = vpop.f32.mrb[0].mxu0
  %751 = vmatprep.mubr.bf16.mxu0 %v293
  %752 = vmatmul.mubr.bf16.gmra.mrb[0].mxu0 %v292
  %v753 = vpop.f32.mrb[0].mxu0
  %v754 = vadd.f32 %v633, %v753
  %v755 = vpop.f32.mrb[0].mxu0
  %v756 = vpop.f32.mrb[0].mxu0
  %v757 = vadd.f32 %v636, %v756
  %v758 = vpop.f32.mrb[0].mxu0
  %759 = vmatprep.mubr.bf16.mxu0 %v297
  %760 = vmatmul.mubr.bf16.gmra.mrb[0].mxu0 %v296
  %v761 = vpop.f32.mrb[0].mxu0
  %v762 = vadd.f32 %v641, %v761
  %v763 = vpop.f32.mrb[0].mxu0
  %v764 = vpop.f32.mrb[0].mxu0
  %v765 = vadd.f32 %v644, %v764
  %v766 = vpop.f32.mrb[0].mxu0
  %767 = vmatprep.mubr.bf16.mxu0 %v301
  %768 = vmatmul.mubr.bf16.gmra.mrb[0].mxu0 %v300
  %v769 = vpop.f32.mrb[0].mxu0
  %v770 = vadd.f32 %v649, %v769
  %v771 = vpop.f32.mrb[0].mxu0
  %v772 = vpop.f32.mrb[0].mxu0
  %v773 = vadd.f32 %v652, %v772
  %v774 = vpop.f32.mrb[0].mxu0
  %775 = vmatprep.mubr.bf16.mxu0 %v305
  %776 = vmatmul.mubr.bf16.gmra.mrb[0].mxu0 %v304
  %v777 = vpop.f32.mrb[0].mxu0
  %v778 = vadd.f32 %v657, %v777
  %v779 = vpop.f32.mrb[0].mxu0
  %v780 = vpop.f32.mrb[0].mxu0
  %v781 = vadd.f32 %v660, %v780
  %v782 = vpop.f32.mrb[0].mxu0
  %783 = vdwg.mxu0
  %v784 = vmax.f32 %v698, 0.0
  %v785 = vmax.f32 %v701, 0.0
  %v786 = vmax.f32 %v706, 0.0
  %v787 = vmax.f32 %v709, 0.0
  %v788 = vmax.f32 %v714, 0.0
  %v789 = vmax.f32 %v717, 0.0
  %v790 = vmax.f32 %v722, 0.0
  %v791 = vmax.f32 %v725, 0.0
  %v792 = vmax.f32 %v730, 0.0
  %v793 = vmax.f32 %v733, 0.0
  %v794 = vmax.f32 %v738, 0.0
  %v795 = vmax.f32 %v741, 0.0
  %v796 = vmax.f32 %v746, 0.0
  %v797 = vmax.f32 %v749, 0.0
  %v798 = vmax.f32 %v754, 0.0
  %v799 = vmax.f32 %v757, 0.0
  %v800 = vmax.f32 %v762, 0.0
  %v801 = vmax.f32 %v765, 0.0
  %v802 = vmax.f32 %v770, 0.0
  %v803 = vmax.f32 %v773, 0.0
  %v804 = vmax.f32 %v778, 0.0
  %v805 = vmax.f32 %v781, 0.0
  %v806 = vpack.c.bf16 %v785, %v784
  %v807 = vpack.c.bf16 %v787, %v786
  %v808 = vpack.c.bf16 %v789, %v788
  %v809 = vpack.c.bf16 %v791, %v790
  %v810 = vpack.c.bf16 %v793, %v792
  %v811 = vpack.c.bf16 %v795, %v794
  %v812 = vpack.c.bf16 %v797, %v796
  %v813 = vpack.c.bf16 %v799, %v798
  %v814 = vpack.c.bf16 %v801, %v800
  %v815 = vpack.c.bf16 %v803, %v802
  %v816 = vpack.c.bf16 %v805, %v804
  %v828 = vunpack.c.l.b16 %v806
  %v829 = vunpack.c.h.b16 %v806
  %v830 = vunpack.c.l.b16 %v807
  %v831 = vunpack.c.h.b16 %v807
  %v832 = vunpack.c.l.b16 %v808
  %v833 = vunpack.c.h.b16 %v808
  %v834 = vunpack.c.l.b16 %v809
  %v835 = vunpack.c.h.b16 %v809
  %v836 = vunpack.c.l.b16 %v810
  %v837 = vunpack.c.h.b16 %v810
  %v838 = vunpack.c.l.b16 %v811
  %v839 = vunpack.c.h.b16 %v811
  %v840 = vunpack.c.l.b16 %v812
  %v841 = vunpack.c.h.b16 %v812
  %v842 = vunpack.c.l.b16 %v813
  %v843 = vunpack.c.h.b16 %v813
  %v844 = vunpack.c.l.b16 %v814
  %v845 = vunpack.c.h.b16 %v814
  %v846 = vunpack.c.l.b16 %v815
  %v847 = vunpack.c.h.b16 %v815
  %v848 = vunpack.c.l.b16 %v816
  %v849 = vunpack.c.h.b16 %v816
  %v850 = vpack.c.b16 %v828, %v828
  %v851 = vpack.c.b16 %v829, %v829
  %v852 = vpack.c.b16 %v830, %v830
  %v853 = vpack.c.b16 %v831, %v831
  %v854 = vpack.c.b16 %v832, %v832
  %v855 = vpack.c.b16 %v833, %v833
  %v856 = vpack.c.b16 %v834, %v834
  %v857 = vpack.c.b16 %v835, %v835
  %v858 = vpack.c.b16 %v836, %v836
  %v859 = vpack.c.b16 %v837, %v837
  %v860 = vpack.c.b16 %v838, %v838
  %v861 = vpack.c.b16 %v839, %v839
  %v862 = vpack.c.b16 %v840, %v840
  %v863 = vpack.c.b16 %v841, %v841
  %v864 = vpack.c.b16 %v842, %v842
  %v865 = vpack.c.b16 %v843, %v843
  %v866 = vpack.c.b16 %v844, %v844
  %v867 = vpack.c.b16 %v845, %v845
  %v868 = vpack.c.b16 %v846, %v846
  %v869 = vpack.c.b16 %v847, %v847
  %v870 = vpack.c.b16 %v848, %v848
  %v871 = vpack.c.b16 %v849, %v849
  %vm894 = vcmask 519168
  %895 = vst.msk [vmem:[%s3] sm:$0xf] %vm894, %v850
  %896 = vst.msk [vmem:[%s3 + $0x4] sm:$0xf] %vm894, %v851
  %897 = vst.msk [vmem:[%s3 + $0x8] sm:$0xf] %vm894, %v852
  %898 = vst.msk [vmem:[%s3 + $0xc] sm:$0xf] %vm894, %v853
  %899 = vst.msk [vmem:[%s3 + $0x10] sm:$0xf] %vm894, %v854
  %900 = vst.msk [vmem:[%s3 + $0x14] sm:$0xf] %vm894, %v855
  %901 = vst.msk [vmem:[%s3 + $0x18] sm:$0xf] %vm894, %v856
  %902 = vst.msk [vmem:[%s3 + $0x1c] sm:$0xf] %vm894, %v857
  %903 = vst.msk [vmem:[%s3 + $0x20] sm:$0xf] %vm894, %v858
  %904 = vst.msk [vmem:[%s3 + $0x24] sm:$0xf] %vm894, %v859
  %905 = vst.msk [vmem:[%s3 + $0x28] sm:$0xf] %vm894, %v860
  %906 = vst.msk [vmem:[%s3 + $0x2c] sm:$0xf] %vm894, %v861
  %907 = vst.msk [vmem:[%s3 + $0x30] sm:$0xf] %vm894, %v862
  %908 = vst.msk [vmem:[%s3 + $0x34] sm:$0xf] %vm894, %v863
  %909 = vst.msk [vmem:[%s3 + $0x38] sm:$0xf] %vm894, %v864
  %910 = vst.msk [vmem:[%s3 + $0x3c] sm:$0xf] %vm894, %v865
  %911 = vst.msk [vmem:[%s3 + $0x40] sm:$0xf] %vm894, %v866
  %912 = vst.msk [vmem:[%s3 + $0x44] sm:$0xf] %vm894, %v867
  %913 = vst.msk [vmem:[%s3 + $0x48] sm:$0xf] %vm894, %v868
  %914 = vst.msk [vmem:[%s3 + $0x4c] sm:$0xf] %vm894, %v869
  %915 = vst.msk [vmem:[%s3 + $0x50] sm:$0xf] %vm894, %v870
  %916 = vst.msk [vmem:[%s3 + $0x54] sm:$0xf] %vm894, %v871
  // Predicated region
  $region14: #{qnetwork_forward.4} parent=0 // pred_check
    _
  $region15: #{qnetwork_forward.4} parent=0 // pred_check_branch
    %918 = sbr.rel (0) target = $region17
  $region16: #{qnetwork_forward.4} parent=0 // pred_region
    _
  $region17: #{qnetwork_forward.4} parent=0 // pred_fallthru
    _
  // Predicated region
  $region18: #{qnetwork_forward.4} parent=0 // pred_check
    _
  $region19: #{qnetwork_forward.4} parent=0 // pred_check_branch
    %920 = sbr.rel (0) target = $region21
  $region20: #{qnetwork_forward.4} parent=0 // pred_region
    _
  $region21: #{qnetwork_forward.4} parent=0 // pred_fallthru
    _

// kernel: qnetwork_forward.5
$region0: #{qnetwork_forward.5}
  #allocation0 [shape = 'u32[]', space=smem, size = 0x4, offset = 0x4, fixed_abs, tag = 'smem constant byte address 0x4 - core index']
  #allocation1 [shape = 'u32[144,128]{1,0:T(1,128)}', space=vmem, size = 0x12000, scoped, tag = 'internal scratch']
  #allocation2 [shape = 'f32[16,512]{1,0:T(8,128)}', space=vmem, size = 0x8000, scoped, tag = 'scratch operand']
  %s0 = inlined_call_operand.vmem [shape: bf16[49,16,576], index: 0, kind: input, shape index: {}]
  %s1 = inlined_call_operand.vmem [shape: bf16[576,64], index: 1, kind: input, shape index: {}]
  %s2 = inlined_call_operand.vmem [shape: f32[1,64], index: 2, kind: input, shape index: {}]
  %s3 = inlined_call_operand.vmem [shape: bf16[7,448,512], index: 3, kind: input, shape index: {}]
  %s4 = inlined_call_operand.vmem [shape: f32[1,512], index: 4, kind: input, shape index: {}]
  %s5 = inlined_call_operand.vmem [shape: bf16[512,128], index: 5, kind: input, shape index: {}]
  %s6 = inlined_call_operand.vmem [shape: f32[1,128], index: 6, kind: input, shape index: {}]
  %s7 = inlined_call_operand.vmem [shape: f32[16,128], index: 7, kind: output, shape index: {}]
  %s8 = sld [smem:[#allocation0]]
  $region69: #{qnetwork_forward.5} parent=0
    _
  %s10 = ssub.s32 1, %s8
  %s11 = scalar_select 0, %s10, %s8
  loop: start=0, step=1, limit=9
  $region2: #{qnetwork_forward.5} parent=0 // loop_pre_header
    _
  $region3: #{qnetwork_forward.5} parent=0 // loop_header
    %s13 = sphi 0, %s17
    %p14 = scmp.ge.s32.totalorder %s13, 9
    %s20 = sphi 0, %s32
    %s21 = sphi 0, %s28
    %s22 = sphi 0, %s20
    %s23 = sphi 0, %s21
    %s24 = sphi 0, %s22
    %s25 = sphi 0, %s23
    %s37 = sphi 0, %s39
    %s40 = sphi 0, %s37
    %s41 = sphi 0, %s40
    %s57 = sphi 0, %s41
    %s61 = sphi 0, %s61
    %s63 = sphi 0, %s61
    %s64 = sphi 0, %s63
    %s78 = sphi 0, %s64
    %s82 = sphi 0, %s82
    %s84 = sphi 0, %s82
    %s85 = sphi 0, %s84
    %s99 = sphi 0, %s85
    %s103 = sphi 0, %s103
    %s105 = sphi 0, %s103
    %s106 = sphi 0, %s105
    %s120 = sphi 0, %s106
    %s124 = sphi 0, %s124
    %s126 = sphi 0, %s124
    %s127 = sphi 0, %s126
    %s141 = sphi 0, %s127
    %s145 = sphi 0, %s145
    %s147 = sphi 0, %s145
    %s148 = sphi 0, %s147
    %s162 = sphi 0, %s148
    %s166 = sphi 0, %s166
    %s168 = sphi 0, %s166
    %s169 = sphi 0, %s168
    %s183 = sphi 0, %s169
    %s189 = sphi 0, %s191
    %s192 = sphi 0, %s189
    %s193 = sphi 0, %s192
    %s209 = sphi 0, %s193
  $region4: #{qnetwork_forward.5} parent=0 // loop_header_branch
    %16 = sbr.rel (%p14) target = $region8
  $region5: #{qnetwork_forward.5} parent=0 // loop_body
    %s18 = ssub.s32 %s13, 1
    %s19 = ssub.s32 %s13, 2
    %s26 = sadd.s32 1, %s21
    %p27 = scmp.ge.s32.totalorder %s26, 7
    %s28 = scalar_select %p27, 0, %s26
    %s29 = sadd.s32 1, %s20
    %s30 = scalar_select %p27, %s29, %s20
    %p31 = scmp.ge.s32.totalorder %s30, 1
    %s32 = scalar_select %p31, 0, %s30
    %s33 = ssub.s32 %s21, %s28
    %s34 = ssub.s32 %s20, %s32
    %s35 = sor.u32 %s33, %s34
    %p36 = scmp.eq.s32.totalorder %s35, 0
    %s38 = sadd.s32 %s37, 1
    %s39 = scalar_select %p36, %s37, %s38
    %p42 = pneg %p36
    %p43 = scmp.eq.s32.totalorder %s13, 6
    %p44 = por %p42, %p43
    %p45 = scmp.ne.s32.totalorder %s37, %s40
    %p46 = scmp.eq.s32.totalorder %s13, 0
    %p47 = por %p45, %p46
    %p48 = scmp.ne.s32.totalorder %s37, %s40
    %p49 = scmp.eq.s32.totalorder %s18, 6
    %p50 = por %p48, %p49
    %p51 = scmp.ne.s32.totalorder %s40, %s41
    %p52 = scmp.eq.s32.totalorder %s18, 0
    %p53 = por %p51, %p52
    %p54 = scmp.ne.s32.totalorder %s40, %s41
    %p55 = scmp.eq.s32.totalorder %s19, 6
    %p56 = por %p54, %p55
    %p58 = scmp.ne.s32.totalorder %s41, %s57
    %p59 = scmp.eq.s32.totalorder %s19, 0
    %p60 = por %p58, %p59
    %s62 = sadd.s32 %s61, 1
    %p65 = scmp.eq.s32.totalorder %s13, 6
    %p66 = scmp.ne.s32.totalorder %s61, %s63
    %p67 = scmp.eq.s32.totalorder %s13, 0
    %p68 = por %p66, %p67
    %p69 = scmp.ne.s32.totalorder %s61, %s63
    %p70 = scmp.eq.s32.totalorder %s18, 6
    %p71 = por %p69, %p70
    %p72 = scmp.ne.s32.totalorder %s63, %s64
    %p73 = scmp.eq.s32.totalorder %s18, 0
    %p74 = por %p72, %p73
    %p75 = scmp.ne.s32.totalorder %s63, %s64
    %p76 = scmp.eq.s32.totalorder %s19, 6
    %p77 = por %p75, %p76
    %p79 = scmp.ne.s32.totalorder %s64, %s78
    %p80 = scmp.eq.s32.totalorder %s19, 0
    %p81 = por %p79, %p80
    %s83 = sadd.s32 %s82, 1
    %p86 = scmp.eq.s32.totalorder %s13, 6
    %p87 = scmp.ne.s32.totalorder %s82, %s84
    %p88 = scmp.eq.s32.totalorder %s13, 0
    %p89 = por %p87, %p88
    %p90 = scmp.ne.s32.totalorder %s82, %s84
    %p91 = scmp.eq.s32.totalorder %s18, 6
    %p92 = por %p90, %p91
    %p93 = scmp.ne.s32.totalorder %s84, %s85
    %p94 = scmp.eq.s32.totalorder %s18, 0
    %p95 = por %p93, %p94
    %p96 = scmp.ne.s32.totalorder %s84, %s85
    %p97 = scmp.eq.s32.totalorder %s19, 6
    %p98 = por %p96, %p97
    %p100 = scmp.ne.s32.totalorder %s85, %s99
    %p101 = scmp.eq.s32.totalorder %s19, 0
    %p102 = por %p100, %p101
    %s104 = sadd.s32 %s103, 1
    %p107 = scmp.eq.s32.totalorder %s13, 6
    %p108 = scmp.ne.s32.totalorder %s103, %s105
    %p109 = scmp.eq.s32.totalorder %s13, 0
    %p110 = por %p108, %p109
    %p111 = scmp.ne.s32.totalorder %s103, %s105
    %p112 = scmp.eq.s32.totalorder %s18, 6
    %p113 = por %p111, %p112
    %p114 = scmp.ne.s32.totalorder %s105, %s106
    %p115 = scmp.eq.s32.totalorder %s18, 0
    %p116 = por %p114, %p115
    %p117 = scmp.ne.s32.totalorder %s105, %s106
    %p118 = scmp.eq.s32.totalorder %s19, 6
    %p119 = por %p117, %p118
    %p121 = scmp.ne.s32.totalorder %s106, %s120
    %p122 = scmp.eq.s32.totalorder %s19, 0
    %p123 = por %p121, %p122
    %s125 = sadd.s32 %s124, 1
    %p128 = scmp.eq.s32.totalorder %s13, 6
    %p129 = scmp.ne.s32.totalorder %s124, %s126
    %p130 = scmp.eq.s32.totalorder %s13, 0
    %p131 = por %p129, %p130
    %p132 = scmp.ne.s32.totalorder %s124, %s126
    %p133 = scmp.eq.s32.totalorder %s18, 6
    %p134 = por %p132, %p133
    %p135 = scmp.ne.s32.totalorder %s126, %s127
    %p136 = scmp.eq.s32.totalorder %s18, 0
    %p137 = por %p135, %p136
    %p138 = scmp.ne.s32.totalorder %s126, %s127
    %p139 = scmp.eq.s32.totalorder %s19, 6
    %p140 = por %p138, %p139
    %p142 = scmp.ne.s32.totalorder %s127, %s141
    %p143 = scmp.eq.s32.totalorder %s19, 0
    %p144 = por %p142, %p143
    %s146 = sadd.s32 %s145, 1
    %p149 = scmp.eq.s32.totalorder %s13, 6
    %p150 = scmp.ne.s32.totalorder %s145, %s147
    %p151 = scmp.eq.s32.totalorder %s13, 0
    %p152 = por %p150, %p151
    %p153 = scmp.ne.s32.totalorder %s145, %s147
    %p154 = scmp.eq.s32.totalorder %s18, 6
    %p155 = por %p153, %p154
    %p156 = scmp.ne.s32.totalorder %s147, %s148
    %p157 = scmp.eq.s32.totalorder %s18, 0
    %p158 = por %p156, %p157
    %p159 = scmp.ne.s32.totalorder %s147, %s148
    %p160 = scmp.eq.s32.totalorder %s19, 6
    %p161 = por %p159, %p160
    %p163 = scmp.ne.s32.totalorder %s148, %s162
    %p164 = scmp.eq.s32.totalorder %s19, 0
    %p165 = por %p163, %p164
    %s167 = sadd.s32 %s166, 1
    %p170 = scmp.eq.s32.totalorder %s13, 6
    %p171 = scmp.ne.s32.totalorder %s166, %s168
    %p172 = scmp.eq.s32.totalorder %s13, 0
    %p173 = por %p171, %p172
    %p174 = scmp.ne.s32.totalorder %s166, %s168
    %p175 = scmp.eq.s32.totalorder %s18, 6
    %p176 = por %p174, %p175
    %p177 = scmp.ne.s32.totalorder %s168, %s169
    %p178 = scmp.eq.s32.totalorder %s18, 0
    %p179 = por %p177, %p178
    %p180 = scmp.ne.s32.totalorder %s168, %s169
    %p181 = scmp.eq.s32.totalorder %s19, 6
    %p182 = por %p180, %p181
    %p184 = scmp.ne.s32.totalorder %s169, %s183
    %p185 = scmp.eq.s32.totalorder %s19, 0
    %p186 = por %p184, %p185
    %s187 = ssub.s32 %s20, %s32
    %p188 = scmp.eq.s32.totalorder %s187, 0
    %s190 = sadd.s32 %s189, 1
    %s191 = scalar_select %p188, %s189, %s190
    %p194 = pneg %p188
    %p195 = scmp.eq.s32.totalorder %s13, 6
    %p196 = por %p194, %p195
    %p197 = scmp.ne.s32.totalorder %s189, %s192
    %p198 = scmp.eq.s32.totalorder %s13, 0
    %p199 = por %p197, %p198
    %p200 = scmp.ne.s32.totalorder %s189, %s192
    %p201 = scmp.eq.s32.totalorder %s18, 6
    %p202 = por %p200, %p201
    %p203 = scmp.ne.s32.totalorder %s192, %s193
    %p204 = scmp.eq.s32.totalorder %s18, 0
    %p205 = por %p203, %p204
    %p206 = scmp.ne.s32.totalorder %s192, %s193
    %p207 = scmp.eq.s32.totalorder %s19, 6
    %p208 = por %p206, %p207
    %p210 = scmp.ne.s32.totalorder %s193, %s209
    %p211 = scmp.eq.s32.totalorder %s19, 0
    %p212 = por %p210, %p211
    %p213 = scmp.le.s32.totalorder 1, %s13
    %p214 = scmp.lt.s32.totalorder %s13, 8
    %p215 = pnand %p213, %p214
    %p216 = pneg %p215
    // Predicated region
    $region9: #{qnetwork_forward.5} parent=5 // pred_check
      _
    $region10: #{qnetwork_forward.5} parent=5 // pred_check_branch
      %218 = sbr.rel (%p215) target = $region12
    $region11: #{qnetwork_forward.5} parent=5 // pred_region
      %s219 = ssub.s32 %s13, 1
      // Predicated region
      $region13: #{qnetwork_forward.5} parent=11 // pred_check
        %p220 = pneg %p74
      $region14: #{qnetwork_forward.5} parent=11 // pred_check_branch
        %222 = sbr.rel (%p220) target = $region16
      $region15: #{qnetwork_forward.5} parent=11 // pred_region
        _
      $region16: #{qnetwork_forward.5} parent=11 // pred_fallthru
        _
      // Predicated region
      $region17: #{qnetwork_forward.5} parent=11 // pred_check
        %p223 = pneg %p95
      $region18: #{qnetwork_forward.5} parent=11 // pred_check_branch
        %225 = sbr.rel (%p223) target = $region20
      $region19: #{qnetwork_forward.5} parent=11 // pred_region
        _
      $region20: #{qnetwork_forward.5} parent=11 // pred_fallthru
        _
      // Predicated region
      $region21: #{qnetwork_forward.5} parent=11 // pred_check
        %p226 = pneg %p116
      $region22: #{qnetwork_forward.5} parent=11 // pred_check_branch
        %228 = sbr.rel (%p226) target = $region24
      $region23: #{qnetwork_forward.5} parent=11 // pred_region
        _
      $region24: #{qnetwork_forward.5} parent=11 // pred_fallthru
        _
      // Predicated region
      $region25: #{qnetwork_forward.5} parent=11 // pred_check
        %p229 = pneg %p137
      $region26: #{qnetwork_forward.5} parent=11 // pred_check_branch
        %231 = sbr.rel (%p229) target = $region28
      $region27: #{qnetwork_forward.5} parent=11 // pred_region
        _
      $region28: #{qnetwork_forward.5} parent=11 // pred_fallthru
        _
      // Predicated region
      $region29: #{qnetwork_forward.5} parent=11 // pred_check
        %p232 = pneg %p158
      $region30: #{qnetwork_forward.5} parent=11 // pred_check_branch
        %234 = sbr.rel (%p232) target = $region32
      $region31: #{qnetwork_forward.5} parent=11 // pred_region
        _
      $region32: #{qnetwork_forward.5} parent=11 // pred_fallthru
        _
      // Predicated region
      $region33: #{qnetwork_forward.5} parent=11 // pred_check
        %p235 = pneg %p179
      $region34: #{qnetwork_forward.5} parent=11 // pred_check_branch
        %237 = sbr.rel (%p235) target = $region36
      $region35: #{qnetwork_forward.5} parent=11 // pred_region
        _
      $region36: #{qnetwork_forward.5} parent=11 // pred_fallthru
        _
    $region12: #{qnetwork_forward.5} parent=5 // pred_fallthru
      _
    %p238 = scmp.lt.s32.totalorder %s13, 7
    // Predicated region
    $region37: #{qnetwork_forward.5} parent=5 // pred_check
      %p239 = pneg %p238
    $region38: #{qnetwork_forward.5} parent=5 // pred_check_branch
      %241 = sbr.rel (%p239) target = $region40
    $region39: #{qnetwork_forward.5} parent=5 // pred_region
      // Predicated region
      $region41: #{qnetwork_forward.5} parent=39 // pred_check
        %p242 = pneg %p47
      $region42: #{qnetwork_forward.5} parent=39 // pred_check_branch
        %244 = sbr.rel (%p242) target = $region44
      $region43: #{qnetwork_forward.5} parent=39 // pred_region
        %s245 = smul.u32 7, %s21
        %s246 = smul.u32 2, %s20
        %p247 = scmp.lt.s32.totalorder %s245, 48
        %s248 = scalar_select %p247, %s245, 48
        %p249 = scmp.lt.s32.totalorder %s246, 1
        %s250 = scalar_select %p249, %s246, 1
        %s251 = smul.addr %s250, 5
        %s252 = smul.addr %s248, 10
        %s253 = sadd.s32 %s251, %s252
        %s254 = smul.addr %s253, 4
        %s255 = scalar_lea.vmem %s0, %s254
        %s256 = smul.u32 7, %s21
        %s257 = smul.u32 2, %s20
      $region44: #{qnetwork_forward.5} parent=39 // pred_fallthru
        _
    $region40: #{qnetwork_forward.5} parent=5 // pred_fallthru
      _
    %p258 = scmp.le.s32.totalorder 1, %s13
    %p259 = scmp.lt.s32.totalorder %s13, 8
    %p260 = pnand %p258, %p259
    %p261 = pneg %p260
    // Predicated region
    $region45: #{qnetwork_forward.5} parent=5 // pred_check
      _
    $region46: #{qnetwork_forward.5} parent=5 // pred_check_branch
      %263 = sbr.rel (%p260) target = $region48
    $region47: #{qnetwork_forward.5} parent=5 // pred_region
      %s264 = ssub.s32 %s13, 1
      %s265 = smul.u32 7, %s23
      %s266 = smul.u32 2, %s22
      %p267 = scmp.lt.s32.totalorder %s265, 48
      %s268 = scalar_select %p267, %s265, 48
      %p269 = scmp.lt.s32.totalorder %s266, 1
      %s270 = scalar_select %p269, %s266, 1
      %s271 = smul.addr %s270, 5
      %s272 = smul.addr %s268, 10
      %s273 = sadd.s32 %s271, %s272
      %s274 = smul.addr %s273, 4
      %s275 = scalar_lea.vmem %s0, %s274
      %p276 = pneg %p53
      %p277 = pneg %p50
      %p278 = pneg %p74
      %p279 = pneg %p71
      %p280 = pneg %p95
      %p281 = pneg %p92
      %p282 = pneg %p116
      %p283 = pneg %p113
      %p284 = pneg %p137
      %p285 = pneg %p134
      %p286 = pneg %p158
      %p287 = pneg %p155
      %p288 = pneg %p179
      %p289 = pneg %p176
      %p290 = pneg %p205
      %p291 = pneg %p202
      %s292 = smul.u32 2, %s22
      %p293 = scmp.lt.s32.totalorder %s292, 1
      %s294 = scalar_select %p293, %s292, 1
      %s295 = smul.addr %s294, 8
      %s296 = scalar_lea.vmem %s7, %s295
      %s297 = smul.u32 7, %s23
      %s298 = smul.u32 2, %s22
      %p299 = scmp.lt.s32.totalorder %s297, 48
      %s300 = scalar_select %p299, %s297, 48
      %p301 = scmp.lt.s32.totalorder %s298, 1
      %s302 = scalar_select %p301, %s298, 1
      %s303 = smul.addr %s302, 5
      %s304 = smul.addr %s300, 10
      %s305 = sadd.s32 %s303, %s304
      %s306 = smul.addr %s305, 4
      %s307 = scalar_lea.vmem %s0, %s306
      %s308 = smul.u32 7, %s23
      %s309 = smul.u32 2, %s22
      %s310 = smul.u32 2, %s22
      %p311 = scmp.lt.s32.totalorder %s310, 1
      %s312 = scalar_select %p311, %s310, 1
      %s313 = smul.addr %s312, 8
      %s314 = scalar_lea.vmem %s7, %s313
      %s315 = smul.u32 2, %s22
      %p317 = scmp.eq.s32.totalorder %s23, 0
      // Predicated region
      $region49: #{qnetwork_forward.5} parent=47 // pred_check
        %p318 = pneg %p317
      $region50: #{qnetwork_forward.5} parent=47 // pred_check_branch
        %320 = sbr.rel (%p318) target = $region52
      $region51: #{qnetwork_forward.5} parent=47 // pred_region
        %321 = vst [vmem:[#allocation2] sm:$0xff] 0.0
        %322 = vst [vmem:[#allocation2 + $0x8] sm:$0xff] 0.0
        %323 = vst [vmem:[#allocation2 + $0x10] sm:$0xff] 0.0
        %324 = vst [vmem:[#allocation2 + $0x18] sm:$0xff] 0.0
        %325 = vst [vmem:[#allocation2 + $0x20] sm:$0xff] 0.0
        %326 = vst [vmem:[#allocation2 + $0x28] sm:$0xff] 0.0
        %327 = vst [vmem:[#allocation2 + $0x30] sm:$0xff] 0.0
        %328 = vst [vmem:[#allocation2 + $0x38] sm:$0xff] 0.0
      $region52: #{qnetwork_forward.5} parent=47 // pred_fallthru
        _
      %v329 = vld [vmem:[%s307] sm:$0xff]
      %v330 = vld [vmem:[%s307 + $0x8] sm:$0xff]
      %v331 = vld [vmem:[%s307 + $0x10] sm:$0xf]
      %v332 = vld [vmem:[%s307 + $0x14] sm:$0xff]
      %v333 = vld [vmem:[%s307 + $0x1c] sm:$0xff]
      %v334 = vld [vmem:[%s307 + $0x24] sm:$0xf]
      %v335 = vld [vmem:[%s1] sm:$0xf]
      %v336 = vld [vmem:[%s1 + $0x4] sm:$0xf]
      %v337 = vld [vmem:[%s1 + $0x8] sm:$0xf]
      %v338 = vld [vmem:[%s1 + $0xc] sm:$0xf]
      %v339 = vld [vmem:[%s1 + $0x10] sm:$0xf]
      %v340 = vld [vmem:[%s1 + $0x14] sm:$0xf]
      %v341 = vld [vmem:[%s1 + $0x18] sm:$0xf]
      %v342 = vld [vmem:[%s1 + $0x1c] sm:$0xf]
      %v343 = vld [vmem:[%s1 + $0x20] sm:$0xf]
      %v344 = vld [vmem:[%s1 + $0x24] sm:$0xf]
      %v345 = vld [vmem:[%s1 + $0x28] sm:$0xf]
      %v346 = vld [vmem:[%s1 + $0x2c] sm:$0xf]
      %v347 = vld [vmem:[%s1 + $0x30] sm:$0xf]
      %v348 = vld [vmem:[%s1 + $0x34] sm:$0xf]
      %v349 = vld [vmem:[%s1 + $0x38] sm:$0xf]
      %v350 = vld [vmem:[%s1 + $0x3c] sm:$0xf]
      %v351 = vld [vmem:[%s1 + $0x40] sm:$0xf]
      %v352 = vld [vmem:[%s1 + $0x44] sm:$0xf]
      %v353 = vld [vmem:[%s1 + $0x48] sm:$0xf]
      %v354 = vld [vmem:[%s1 + $0x4c] sm:$0xf]
      %v355 = vld [vmem:[%s1 + $0x50] sm:$0xf]
      %v356 = vld [vmem:[%s1 + $0x54] sm:$0xf]
      %v357 = vld [vmem:[%s1 + $0x58] sm:$0xf]
      %v358 = vld [vmem:[%s1 + $0x5c] sm:$0xf]
      %v359 = vld [vmem:[%s1 + $0x60] sm:$0xf]
      %v360 = vld [vmem:[%s1 + $0x64] sm:$0xf]
      %v361 = vld [vmem:[%s1 + $0x68] sm:$0xf]
      %v362 = vld [vmem:[%s1 + $0x6c] sm:$0xf]
      %v363 = vld [vmem:[%s1 + $0x70] sm:$0xf]
      %v364 = vld [vmem:[%s1 + $0x74] sm:$0xf]
      %v365 = vld [vmem:[%s1 + $0x78] sm:$0xf]
      %v366 = vld [vmem:[%s1 + $0x7c] sm:$0xf]
      %v367 = vld [vmem:[%s1 + $0x80] sm:$0xf]
      %v368 = vld [vmem:[%s1 + $0x84] sm:$0xf]
      %v369 = vld [vmem:[%s1 + $0x88] sm:$0xf]
      %v370 = vld [vmem:[%s1 + $0x8c] sm:$0xf]
      %v371 = vld [vmem:[%s1 + $0x90] sm:$0xf]
      %v372 = vld [vmem:[%s1 + $0x94] sm:$0xf]
      %v373 = vld [vmem:[%s1 + $0x98] sm:$0xf]
      %v374 = vld [vmem:[%s1 + $0x9c] sm:$0xf]
      %v375 = vld [vmem:[%s1 + $0xa0] sm:$0xf]
      %v376 = vld [vmem:[%s1 + $0xa4] sm:$0xf]
      %v377 = vld [vmem:[%s1 + $0xa8] sm:$0xf]
      %v378 = vld [vmem:[%s1 + $0xac] sm:$0xf]
      %v379 = vld [vmem:[%s1 + $0xb0] sm:$0xf]
      %v380 = vld [vmem:[%s1 + $0xb4] sm:$0xf]
      %v381 = vld [vmem:[%s1 + $0xb8] sm:$0xf]
      %v382 = vld [vmem:[%s1 + $0xbc] sm:$0xf]
      %v383 = vld [vmem:[%s1 + $0xc0] sm:$0xf]
      %v384 = vld [vmem:[%s1 + $0xc4] sm:$0xf]
      %v385 = vld [vmem:[%s1 + $0xc8] sm:$0xf]
      %v386 = vld [vmem:[%s1 + $0xcc] sm:$0xf]
      %v387 = vld [vmem:[%s1 + $0xd0] sm:$0xf]
      %v388 = vld [vmem:[%s1 + $0xd4] sm:$0xf]
      %v389 = vld [vmem:[%s1 + $0xd8] sm:$0xf]
      %v390 = vld [vmem:[%s1 + $0xdc] sm:$0xf]
      %v391 = vld [vmem:[%s1 + $0xe0] sm:$0xf]
      %v392 = vld [vmem:[%s1 + $0xe4] sm:$0xf]
      %v393 = vld [vmem:[%s1 + $0xe8] sm:$0xf]
      %v394 = vld [vmem:[%s1 + $0xec] sm:$0xf]
      %v395 = vld [vmem:[%s1 + $0xf0] sm:$0xf]
      %v396 = vld [vmem:[%s1 + $0xf4] sm:$0xf]
      %v397 = vld [vmem:[%s1 + $0xf8] sm:$0xf]
      %v398 = vld [vmem:[%s1 + $0xfc] sm:$0xf]
      %v399 = vld [vmem:[%s1 + $0x100] sm:$0xf]
      %v400 = vld [vmem:[%s1 + $0x104] sm:$0xf]
      %v401 = vld [vmem:[%s1 + $0x108] sm:$0xf]
      %v402 = vld [vmem:[%s1 + $0x10c] sm:$0xf]
      %v403 = vld [vmem:[%s1 + $0x110] sm:$0xf]
      %v404 = vld [vmem:[%s1 + $0x114] sm:$0xf]
      %v405 = vld [vmem:[%s1 + $0x118] sm:$0xf]
      %v406 = vld [vmem:[%s1 + $0x11c] sm:$0xf]
      %v407 = vld [vmem:[%s2] sm:$0x1]
      %v409 = vlaneseq
      %v410 = vshrl.u32 %v409, 7
      %v411 = vsub.s32 0, %v410
      %v412 = vrot.slane %v407, %v411
      %v420 = vunpack.c.l.b16 %v329
      %v421 = vunpack.c.h.b16 %v329
      %v422 = vunpack.c.l.b16 %v330
      %v423 = vunpack.c.h.b16 %v330
      %v424 = vunpack.c.l.b16 %v331
      %v425 = vunpack.c.l.b16 %v332
      %v426 = vunpack.c.h.b16 %v332
      %v427 = vunpack.c.l.b16 %v333
      %v428 = vunpack.c.h.b16 %v333
      %v429 = vunpack.c.l.b16 %v334
      %v430 = vpack.c.b16 %v425, %v420
      %v431 = vpack.c.b16 %v426, %v421
      %v432 = vpack.c.b16 %v427, %v422
      %v433 = vpack.c.b16 %v428, %v423
      %v434 = vpack.c.b16 %v429, %v424
      %v511 = vunpack.c.l.b16 %v335
      %v512 = vunpack.c.l.b16 %v336
      %v513 = vunpack.c.l.b16 %v337
      %v514 = vunpack.c.l.b16 %v338
      %v515 = vunpack.c.l.b16 %v339
      %v516 = vunpack.c.l.b16 %v340
      %v517 = vunpack.c.l.b16 %v341
      %v518 = vunpack.c.l.b16 %v342
      %v519 = vunpack.c.l.b16 %v343
      %v520 = vunpack.c.l.b16 %v344
      %v521 = vunpack.c.l.b16 %v345
      %v522 = vunpack.c.l.b16 %v346
      %v523 = vunpack.c.l.b16 %v347
      %v524 = vunpack.c.l.b16 %v348
      %v525 = vunpack.c.l.b16 %v349
      %v526 = vunpack.c.l.b16 %v350
      %v527 = vunpack.c.l.b16 %v351
      %v528 = vunpack.c.l.b16 %v352
      %v529 = vunpack.c.l.b16 %v353
      %v530 = vunpack.c.l.b16 %v354
      %v531 = vunpack.c.l.b16 %v355
      %v532 = vunpack.c.l.b16 %v356
      %v533 = vunpack.c.l.b16 %v357
      %v534 = vunpack.c.l.b16 %v358
      %v535 = vunpack.c.l.b16 %v359
      %v536 = vunpack.c.l.b16 %v360
      %v537 = vunpack.c.l.b16 %v361
      %v538 = vunpack.c.l.b16 %v362
      %v539 = vunpack.c.l.b16 %v363
      %v540 = vunpack.c.l.b16 %v364
      %v541 = vunpack.c.l.b16 %v365
      %v542 = vunpack.c.l.b16 %v366
      %v543 = vunpack.c.l.b16 %v367
      %v544 = vunpack.c.l.b16 %v368
      %v545 = vunpack.c.l.b16 %v369
      %v546 = vunpack.c.l.b16 %v370
      %v547 = vunpack.c.l.b16 %v371
      %v548 = vunpack.c.l.b16 %v372
      %v549 = vunpack.c.l.b16 %v373
      %v550 = vunpack.c.l.b16 %v374
      %v551 = vunpack.c.l.b16 %v375
      %v552 = vunpack.c.l.b16 %v376
      %v553 = vunpack.c.l.b16 %v377
      %v554 = vunpack.c.l.b16 %v378
      %v555 = vunpack.c.l.b16 %v379
      %v556 = vunpack.c.l.b16 %v380
      %v557 = vunpack.c.l.b16 %v381
      %v558 = vunpack.c.l.b16 %v382
      %v559 = vunpack.c.l.b16 %v383
      %v560 = vunpack.c.l.b16 %v384
      %v561 = vunpack.c.l.b16 %v385
      %v562 = vunpack.c.l.b16 %v386
      %v563 = vunpack.c.l.b16 %v387
      %v564 = vunpack.c.l.b16 %v388
      %v565 = vunpack.c.l.b16 %v389
      %v566 = vunpack.c.l.b16 %v390
      %v567 = vunpack.c.l.b16 %v391
      %v568 = vunpack.c.l.b16 %v392
      %v569 = vunpack.c.l.b16 %v393
      %v570 = vunpack.c.l.b16 %v394
      %v571 = vunpack.c.l.b16 %v395
      %v572 = vunpack.c.l.b16 %v396
      %v573 = vunpack.c.l.b16 %v397
      %v574 = vunpack.c.l.b16 %v398
      %v575 = vunpack.c.l.b16 %v399
      %v576 = vunpack.c.l.b16 %v400
      %v577 = vunpack.c.l.b16 %v401
      %v578 = vunpack.c.l.b16 %v402
      %v579 = vunpack.c.l.b16 %v403
      %v580 = vunpack.c.l.b16 %v404
      %v581 = vunpack.c.l.b16 %v405
      %v582 = vunpack.c.l.b16 %v406
      %v583 = vpack.c.b16 %v512, %v511
      %v584 = vpack.c.b16 %v514, %v513
      %v585 = vpack.c.b16 %v516, %v515
      %v586 = vpack.c.b16 %v518, %v517
      %v587 = vpack.c.b16 %v520, %v519
      %v588 = vpack.c.b16 %v522, %v521
      %v589 = vpack.c.b16 %v524, %v523
      %v590 = vpack.c.b16 %v526, %v525
      %v591 = vpack.c.b16 %v528, %v527
      %v592 = vpack.c.b16 %v530, %v529
      %v593 = vpack.c.b16 %v532, %v531
      %v594 = vpack.c.b16 %v534, %v533
      %v595 = vpack.c.b16 %v536, %v535
      %v596 = vpack.c.b16 %v538, %v537
      %v597 = vpack.c.b16 %v540, %v539
      %v598 = vpack.c.b16 %v542, %v541
      %v599 = vpack.c.b16 %v544, %v543
      %v600 = vpack.c.b16 %v546, %v545
      %v601 = vpack.c.b16 %v548, %v547
      %v602 = vpack.c.b16 %v550, %v549
      %v603 = vpack.c.b16 %v552, %v551
      %v604 = vpack.c.b16 %v554, %v553
      %v605 = vpack.c.b16 %v556, %v555
      %v606 = vpack.c.b16 %v558, %v557
      %v607 = vpack.c.b16 %v560, %v559
      %v608 = vpack.c.b16 %v562, %v561
      %v609 = vpack.c.b16 %v564, %v563
      %v610 = vpack.c.b16 %v566, %v565
      %v611 = vpack.c.b16 %v568, %v567
      %v612 = vpack.c.b16 %v570, %v569
      %v613 = vpack.c.b16 %v572, %v571
      %v614 = vpack.c.b16 %v574, %v573
      %v615 = vpack.c.b16 %v576, %v575
      %v616 = vpack.c.b16 %v578, %v577
      %v617 = vpack.c.b16 %v580, %v579
      %v618 = vpack.c.b16 %v582, %v581
      %vm655 = vcmask 523264
      %v657 = vsel %vm655, %v434, 0
      %659 = vmatprep.subr.bf16.mxu0 0
      %660 = vmatpush1.bf16.msra.mxu0 %v583
      %661 = vmatprep.subr.bf16.mxu0 0
      %662 = vmatpush1.bf16.msra.mxu0 %v584
      %663 = vmatprep.subr.bf16.mxu0 0
      %664 = vmatpush1.bf16.msra.mxu0 %v585
      %665 = vmatprep.subr.bf16.mxu0 0
      %666 = vmatpush1.bf16.msra.mxu0 %v586
      %667 = vmatprep.subr.bf16.mxu0 0
      %668 = vmatpush1.bf16.msra.mxu0 %v587
      %669 = vmatprep.subr.bf16.mxu0 0
      %670 = vmatpush1.bf16.msra.mxu0 %v588
      %671 = vmatprep.subr.bf16.mxu0 0
      %672 = vmatpush1.bf16.msra.mxu0 %v589
      %673 = vmatprep.subr.bf16.mxu0 0
      %674 = vmatpush1.bf16.msra.mxu0 %v590
      %675 = vmatprep.subr.bf16.mxu0 0
      %676 = vmatpush1.bf16.msra.mxu0 %v591
      %677 = vmatprep.subr.bf16.mxu0 0
      %678 = vmatpush1.bf16.msra.mxu0 %v592
      %679 = vmatprep.subr.bf16.mxu0 0
      %680 = vmatpush1.bf16.msra.mxu0 %v593
      %681 = vmatprep.subr.bf16.mxu0 0
      %682 = vmatpush1.bf16.msra.mxu0 %v594
      %683 = vmatprep.subr.bf16.mxu0 0
      %684 = vmatpush1.bf16.msra.mxu0 %v595
      %685 = vmatprep.subr.bf16.mxu0 0
      %686 = vmatpush1.bf16.msra.mxu0 %v596
      %687 = vmatprep.subr.bf16.mxu0 0
      %688 = vmatpush1.bf16.msra.mxu0 %v597
      %689 = vmatprep.subr.bf16.mxu0 0
      %690 = vmatpush1.bf16.msra.mxu0 %v598
      %691 = vmatprep.mubr.bf16.mxu0 %v431
      %692 = vmatmul.mubr.bf16.gmra.mrb[0].mxu0 %v430
      %v693 = vpop.f32.mrb[0].mxu0
      %v694 = vadd.f32 %v412, %v693
      %v695 = vpop.f32.mrb[0].mxu0
      %v696 = vpop.f32.mrb[0].mxu0
      %v697 = vadd.f32 %v412, %v696
      %v698 = vpop.f32.mrb[0].mxu0
      %699 = vdwg.mxu0
      %700 = vmatprep.subr.bf16.mxu0 0
      %701 = vmatpush1.bf16.msra.mxu0 %v599
      %702 = vmatprep.subr.bf16.mxu0 0
      %703 = vmatpush1.bf16.msra.mxu0 %v600
      %704 = vmatprep.subr.bf16.mxu0 0
      %705 = vmatpush1.bf16.msra.mxu0 %v601
      %706 = vmatprep.subr.bf16.mxu0 0
      %707 = vmatpush1.bf16.msra.mxu0 %v602
      %708 = vmatprep.subr.bf16.mxu0 0
      %709 = vmatpush1.bf16.msra.mxu0 %v603
      %710 = vmatprep.subr.bf16.mxu0 0
      %711 = vmatpush1.bf16.msra.mxu0 %v604
      %712 = vmatprep.subr.bf16.mxu0 0
      %713 = vmatpush1.bf16.msra.mxu0 %v605
      %714 = vmatprep.subr.bf16.mxu0 0
      %715 = vmatpush1.bf16.msra.mxu0 %v606
      %716 = vmatprep.subr.bf16.mxu0 0
      %717 = vmatpush1.bf16.msra.mxu0 %v607
      %718 = vmatprep.subr.bf16.mxu0 0
      %719 = vmatpush1.bf16.msra.mxu0 %v608
      %720 = vmatprep.subr.bf16.mxu0 0
      %721 = vmatpush1.bf16.msra.mxu0 %v609
      %722 = vmatprep.subr.bf16.mxu0 0
      %723 = vmatpush1.bf16.msra.mxu0 %v610
      %724 = vmatprep.subr.bf16.mxu0 0
      %725 = vmatpush1.bf16.msra.mxu0 %v611
      %726 = vmatprep.subr.bf16.mxu0 0
      %727 = vmatpush1.bf16.msra.mxu0 %v612
      %728 = vmatprep.subr.bf16.mxu0 0
      %729 = vmatpush1.bf16.msra.mxu0 %v613
      %730 = vmatprep.subr.bf16.mxu0 0
      %731 = vmatpush1.bf16.msra.mxu0 %v614
      %732 = vmatprep.mubr.bf16.mxu0 %v433
      %733 = vmatmul.mubr.bf16.gmra.mrb[0].mxu0 %v432
      %v734 = vpop.f32.mrb[0].mxu0
      %v735 = vadd.f32 %v694, %v734
      %v736 = vpop.f32.mrb[0].mxu0
      %v737 = vpop.f32.mrb[0].mxu0
      %v738 = vadd.f32 %v697, %v737
      %v739 = vpop.f32.mrb[0].mxu0
      %740 = vdwg.mxu0
      %741 = vmatprep.subr.bf16.mxu0 0
      %742 = vmatpush1.bf16.msra.mxu0 %v615
      %743 = vmatprep.subr.bf16.mxu0 0
      %744 = vmatpush1.bf16.msra.mxu0 %v616
      %745 = vmatprep.subr.bf16.mxu0 0
      %746 = vmatpush1.bf16.msra.mxu0 %v617
      %747 = vmatprep.subr.bf16.mxu0 0
      %748 = vmatpush1.bf16.msra.mxu0 %v618
      %749 = vmatprep.subr.bf16.mxu0 0
      %750 = vmatpush1.bf16.msra.mxu0 0
      %751 = vmatprep.subr.bf16.mxu0 0
      %752 = vmatpush1.bf16.msra.mxu0 0
      %753 = vmatprep.subr.bf16.mxu0 0
      %754 = vmatpush1.bf16.msra.mxu0 0
      %755 = vmatprep.subr.bf16.mxu0 0
      %756 = vmatpush1.bf16.msra.mxu0 0
      %757 = vmatprep.subr.bf16.mxu0 0
      %758 = vmatpush1.bf16.msra.mxu0 0
      %759 = vmatprep.subr.bf16.mxu0 0
      %760 = vmatpush1.bf16.msra.mxu0 0
      %761 = vmatprep.subr.bf16.mxu0 0
      %762 = vmatpush1.bf16.msra.mxu0 0
      %763 = vmatprep.subr.bf16.mxu0 0
      %764 = vmatpush1.bf16.msra.mxu0 0
      %765 = vmatprep.subr.bf16.mxu0 0
      %766 = vmatpush1.bf16.msra.mxu0 0
      %767 = vmatprep.subr.bf16.mxu0 0
      %768 = vmatpush1.bf16.msra.mxu0 0
      %769 = vmatprep.subr.bf16.mxu0 0
      %770 = vmatpush1.bf16.msra.mxu0 0
      %771 = vmatprep.subr.bf16.mxu0 0
      %772 = vmatpush1.bf16.msra.mxu0 0
      %773 = vmatprep.mubr.bf16.mxu0 0
      %774 = vmatmul.mubr.bf16.gmra.mrb[0].mxu0 %v657
      %v775 = vpop.f32.mrb[0].mxu0
      %v776 = vadd.f32 %v735, %v775
      %v777 = vpop.f32.mrb[0].mxu0
      %v778 = vpop.f32.mrb[0].mxu0
      %v779 = vadd.f32 %v738, %v778
      %v780 = vpop.f32.mrb[0].mxu0
      %781 = vdwg.mxu0
      %v782 = vmax.f32 %v776, 0.0
      %v783 = vmax.f32 %v779, 0.0
      %v784 = vpack.c.bf16 %v783, %v782
      %s785 = scalar_lea.vmem %s307, 40
      %v786 = vld [vmem:[%s785] sm:$0xff]
      %v787 = vld [vmem:[%s785 + $0x8] sm:$0xff]
      %v788 = vld [vmem:[%s785 + $0x10] sm:$0xf]
      %v789 = vld [vmem:[%s785 + $0x14] sm:$0xff]
      %v790 = vld [vmem:[%s785 + $0x1c] sm:$0xff]
      %v791 = vld [vmem:[%s785 + $0x24] sm:$0xf]
      %v798 = vunpack.c.l.b16 %v786
      %v799 = vunpack.c.h.b16 %v786
      %v800 = vunpack.c.l.b16 %v787
      %v801 = vunpack.c.h.b16 %v787
      %v802 = vunpack.c.l.b16 %v788
      %v803 = vunpack.c.l.b16 %v789
      %v804 = vunpack.c.h.b16 %v789
      %v805 = vunpack.c.l.b16 %v790
      %v806 = vunpack.c.h.b16 %v790
      %v807 = vunpack.c.l.b16 %v791
      %v808 = vpack.c.b16 %v803, %v798
      %v809 = vpack.c.b16 %v804, %v799
      %v810 = vpack.c.b16 %v805, %v800
      %v811 = vpack.c.b16 %v806, %v801
      %v812 = vpack.c.b16 %v807, %v802
      %v818 = vsel %vm655, %v812, 0
      %820 = vmatprep.subr.bf16.mxu0 0
      %821 = vmatpush1.bf16.msra.mxu0 %v583
      %822 = vmatprep.subr.bf16.mxu0 0
      %823 = vmatpush1.bf16.msra.mxu0 %v584
      %824 = vmatprep.subr.bf16.mxu0 0
      %825 = vmatpush1.bf16.msra.mxu0 %v585
      %826 = vmatprep.subr.bf16.mxu0 0
      %827 = vmatpush1.bf16.msra.mxu0 %v586
      %828 = vmatprep.subr.bf16.mxu0 0
      %829 = vmatpush1.bf16.msra.mxu0 %v587
      %830 = vmatprep.subr.bf16.mxu0 0
      %831 = vmatpush1.bf16.msra.mxu0 %v588
      %832 = vmatprep.subr.bf16.mxu0 0
      %833 = vmatpush1.bf16.msra.mxu0 %v589
      %834 = vmatprep.subr.bf16.mxu0 0
      %835 = vmatpush1.bf16.msra.mxu0 %v590
      %836 = vmatprep.subr.bf16.mxu0 0
      %837 = vmatpush1.bf16.msra.mxu0 %v591
      %838 = vmatprep.subr.bf16.mxu0 0
      %839 = vmatpush1.bf16.msra.mxu0 %v592
      %840 = vmatprep.subr.bf16.mxu0 0
      %841 = vmatpush1.bf16.msra.mxu0 %v593
      %842 = vmatprep.subr.bf16.mxu0 0
      %843 = vmatpush1.bf16.msra.mxu0 %v594
      %844 = vmatprep.subr.bf16.mxu0 0
      %845 = vmatpush1.bf16.msra.mxu0 %v595
      %846 = vmatprep.subr.bf16.mxu0 0
      %847 = vmatpush1.bf16.msra.mxu0 %v596
      %848 = vmatprep.subr.bf16.mxu0 0
      %849 = vmatpush1.bf16.msra.mxu0 %v597
      %850 = vmatprep.subr.bf16.mxu0 0
      %851 = vmatpush1.bf16.msra.mxu0 %v598
      %852 = vmatprep.mubr.bf16.mxu0 %v809
      %853 = vmatmul.mubr.bf16.gmra.mrb[0].mxu0 %v808
      %v854 = vpop.f32.mrb[0].mxu0
      %v855 = vadd.f32 %v412, %v854
      %v856 = vpop.f32.mrb[0].mxu0
      %v857 = vpop.f32.mrb[0].mxu0
      %v858 = vadd.f32 %v412, %v857
      %v859 = vpop.f32.mrb[0].mxu0
      %860 = vdwg.mxu0
      %861 = vmatprep.subr.bf16.mxu0 0
      %862 = vmatpush1.bf16.msra.mxu0 %v599
      %863 = vmatprep.subr.bf16.mxu0 0
      %864 = vmatpush1.bf16.msra.mxu0 %v600
      %865 = vmatprep.subr.bf16.mxu0 0
      %866 = vmatpush1.bf16.msra.mxu0 %v601
      %867 = vmatprep.subr.bf16.mxu0 0
      %868 = vmatpush1.bf16.msra.mxu0 %v602
      %869 = vmatprep.subr.bf16.mxu0 0
      %870 = vmatpush1.bf16.msra.mxu0 %v603
      %871 = vmatprep.subr.bf16.mxu0 0
      %872 = vmatpush1.bf16.msra.mxu0 %v604
      %873 = vmatprep.subr.bf16.mxu0 0
      %874 = vmatpush1.bf16.msra.mxu0 %v605
      %875 = vmatprep.subr.bf16.mxu0 0
      %876 = vmatpush1.bf16.msra.mxu0 %v606
      %877 = vmatprep.subr.bf16.mxu0 0
      %878 = vmatpush1.bf16.msra.mxu0 %v607
      %879 = vmatprep.subr.bf16.mxu0 0
      %880 = vmatpush1.bf16.msra.mxu0 %v608
      %881 = vmatprep.subr.bf16.mxu0 0
      %882 = vmatpush1.bf16.msra.mxu0 %v609
      %883 = vmatprep.subr.bf16.mxu0 0
      %884 = vmatpush1.bf16.msra.mxu0 %v610
      %885 = vmatprep.subr.bf16.mxu0 0
      %886 = vmatpush1.bf16.msra.mxu0 %v611
      %887 = vmatprep.subr.bf16.mxu0 0
      %888 = vmatpush1.bf16.msra.mxu0 %v612
      %889 = vmatprep.subr.bf16.mxu0 0
      %890 = vmatpush1.bf16.msra.mxu0 %v613
      %891 = vmatprep.subr.bf16.mxu0 0
      %892 = vmatpush1.bf16.msra.mxu0 %v614
      %893 = vmatprep.mubr.bf16.mxu0 %v811
      %894 = vmatmul.mubr.bf16.gmra.mrb[0].mxu0 %v810
      %v895 = vpop.f32.mrb[0].mxu0
      %v896 = vadd.f32 %v855, %v895
      %v897 = vpop.f32.mrb[0].mxu0
      %v898 = vpop.f32.mrb[0].mxu0
      %v899 = vadd.f32 %v858, %v898
      %v900 = vpop.f32.mrb[0].mxu0
      %901 = vdwg.mxu0
      %902 = vmatprep.subr.bf16.mxu0 0
      %903 = vmatpush1.bf16.msra.mxu0 %v615
      %904 = vmatprep.subr.bf16.mxu0 0
      %905 = vmatpush1.bf16.msra.mxu0 %v616
      %906 = vmatprep.subr.bf16.mxu0 0
      %907 = vmatpush1.bf16.msra.mxu0 %v617
      %908 = vmatprep.subr.bf16.mxu0 0
      %909 = vmatpush1.bf16.msra.mxu0 %v618
      %910 = vmatprep.subr.bf16.mxu0 0
      %911 = vmatpush1.bf16.msra.mxu0 0
      %912 = vmatprep.subr.bf16.mxu0 0
      %913 = vmatpush1.bf16.msra.mxu0 0
      %914 = vmatprep.subr.bf16.mxu0 0
      %915 = vmatpush1.bf16.msra.mxu0 0
      %916 = vmatprep.subr.bf16.mxu0 0
      %917 = vmatpush1.bf16.msra.mxu0 0
      %918 = vmatprep.subr.bf16.mxu0 0
      %919 = vmatpush1.bf16.msra.mxu0 0
      %920 = vmatprep.subr.bf16.mxu0 0
      %921 = vmatpush1.bf16.msra.mxu0 0
      %922 = vmatprep.subr.bf16.mxu0 0
      %923 = vmatpush1.bf16.msra.mxu0 0
      %924 = vmatprep.subr.bf16.mxu0 0
      %925 = vmatpush1.bf16.msra.mxu0 0
      %926 = vmatprep.subr.bf16.mxu0 0
      %927 = vmatpush1.bf16.msra.mxu0 0
      %928 = vmatprep.subr.bf16.mxu0 0
      %929 = vmatpush1.bf16.msra.mxu0 0
      %930 = vmatprep.subr.bf16.mxu0 0
      %931 = vmatpush1.bf16.msra.mxu0 0
      %932 = vmatprep.subr.bf16.mxu0 0
      %933 = vmatpush1.bf16.msra.mxu0 0
      %934 = vmatprep.mubr.bf16.mxu0 0
      %935 = vmatmul.mubr.bf16.gmra.mrb[0].mxu0 %v818
      %v936 = vpop.f32.mrb[0].mxu0
      %v937 = vadd.f32 %v896, %v936
      %v938 = vpop.f32.mrb[0].mxu0
      %v939 = vpop.f32.mrb[0].mxu0
      %v940 = vadd.f32 %v899, %v939
      %v941 = vpop.f32.mrb[0].mxu0
      %942 = vdwg.mxu0
      %v943 = vmax.f32 %v937, 0.0
      %v944 = vmax.f32 %v940, 0.0
      %v945 = vpack.c.bf16 %v944, %v943
      %s946 = scalar_lea.vmem %s307, 80
      %v947 = vld [vmem:[%s946] sm:$0xff]
      %v948 = vld [vmem:[%s946 + $0x8] sm:$0xff]
      %v949 = vld [vmem:[%s946 + $0x10] sm:$0xf]
      %v950 = vld [vmem:[%s946 + $0x14] sm:$0xff]
      %v951 = vld [vmem:[%s946 + $0x1c] sm:$0xff]
      %v952 = vld [vmem:[%s946 + $0x24] sm:$0xf]
      %v959 = vunpack.c.l.b16 %v947
      %v960 = vunpack.c.h.b16 %v947
      %v961 = vunpack.c.l.b16 %v948
      %v962 = vunpack.c.h.b16 %v948
      %v963 = vunpack.c.l.b16 %v949
      %v964 = vunpack.c.l.b16 %v950
      %v965 = vunpack.c.h.b16 %v950
      %v966 = vunpack.c.l.b16 %v951
      %v967 = vunpack.c.h.b16 %v951
      %v968 = vunpack.c.l.b16 %v952
      %v969 = vpack.c.b16 %v964, %v959
      %v970 = vpack.c.b16 %v965, %v960
      %v971 = vpack.c.b16 %v966, %v961
      %v972 = vpack.c.b16 %v967, %v962
      %v973 = vpack.c.b16 %v968, %v963
      %v979 = vsel %vm655, %v973, 0
      %981 = vmatprep.subr.bf16.mxu0 0
      %982 = vmatpush1.bf16.msra.mxu0 %v583
      %983 = vmatprep.subr.bf16.mxu0 0
      %984 = vmatpush1.bf16.msra.mxu0 %v584
      %985 = vmatprep.subr.bf16.mxu0 0
      %986 = vmatpush1.bf16.msra.mxu0 %v585
      %987 = vmatprep.subr.bf16.mxu0 0
      %988 = vmatpush1.bf16.msra.mxu0 %v586
      %989 = vmatprep.subr.bf16.mxu0 0
      %990 = vmatpush1.bf16.msra.mxu0 %v587
      %991 = vmatprep.subr.bf16.mxu0 0
      %992 = vmatpush1.bf16.msra.mxu0 %v588
      %993 = vmatprep.subr.bf16.mxu0 0
      %994 = vmatpush1.bf16.msra.mxu0 %v589
      %995 = vmatprep.subr.bf16.mxu0 0
      %996 = vmatpush1.bf16.msra.mxu0 %v590
      %997 = vmatprep.subr.bf16.mxu0 0
      %998 = vmatpush1.bf16.msra.mxu0 %v591
      %999 = vmatprep.subr.bf16.mxu0 0
      %1000 = vmatpush1.bf16.msra.mxu0 %v592
      %1001 = vmatprep.subr.bf16.mxu0 0
      %1002 = vmatpush1.bf16.msra.mxu0 %v593
      %1003 = vmatprep.subr.bf16.mxu0 0
      %1004 = vmatpush1.bf16.msra.mxu0 %v594
      %1005 = vmatprep.subr.bf16.mxu0 0
      %1006 = vmatpush1.bf16.msra.mxu0 %v595
      %1007 = vmatprep.subr.bf16.mxu0 0
      %1008 = vmatpush1.bf16.msra.mxu0 %v596
      %1009 = vmatprep.subr.bf16.mxu0 0
      %1010 = vmatpush1.bf16.msra.mxu0 %v597
      %1011 = vmatprep.subr.bf16.mxu0 0
      %1012 = vmatpush1.bf16.msra.mxu0 %v598
      %1013 = vmatprep.mubr.bf16.mxu0 %v970
      %1014 = vmatmul.mubr.bf16.gmra.mrb[0].mxu0 %v969
      %v1015 = vpop.f32.mrb[0].mxu0
      %v1016 = vadd.f32 %v412, %v1015
      %v1017 = vpop.f32.mrb[0].mxu0
      %v1018 = vpop.f32.mrb[0].mxu0
      %v1019 = vadd.f32 %v412, %v1018
      %v1020 = vpop.f32.mrb[0].mxu0
      %1021 = vdwg.mxu0
      %1022 = vmatprep.subr.bf16.mxu0 0
      %1023 = vmatpush1.bf16.msra.mxu0 %v599
      %1024 = vmatprep.subr.bf16.mxu0 0
      %1025 = vmatpush1.bf16.msra.mxu0 %v600
      %1026 = vmatprep.subr.bf16.mxu0 0
      %1027 = vmatpush1.bf16.msra.mxu0 %v601
      %1028 = vmatprep.subr.bf16.mxu0 0
      %1029 = vmatpush1.bf16.msra.mxu0 %v602
      %1030 = vmatprep.subr.bf16.mxu0 0
      %1031 = vmatpush1.bf16.msra.mxu0 %v603
      %1032 = vmatprep.subr.bf16.mxu0 0
      %1033 = vmatpush1.bf16.msra.mxu0 %v604
      %1034 = vmatprep.subr.bf16.mxu0 0
      %1035 = vmatpush1.bf16.msra.mxu0 %v605
      %1036 = vmatprep.subr.bf16.mxu0 0
      %1037 = vmatpush1.bf16.msra.mxu0 %v606
      %1038 = vmatprep.subr.bf16.mxu0 0
      %1039 = vmatpush1.bf16.msra.mxu0 %v607
      %1040 = vmatprep.subr.bf16.mxu0 0
      %1041 = vmatpush1.bf16.msra.mxu0 %v608
      %1042 = vmatprep.subr.bf16.mxu0 0
      %1043 = vmatpush1.bf16.msra.mxu0 %v609
      %1044 = vmatprep.subr.bf16.mxu0 0
      %1045 = vmatpush1.bf16.msra.mxu0 %v610
      %1046 = vmatprep.subr.bf16.mxu0 0
      %1047 = vmatpush1.bf16.msra.mxu0 %v611
      %1048 = vmatprep.subr.bf16.mxu0 0
      %1049 = vmatpush1.bf16.msra.mxu0 %v612
      %1050 = vmatprep.subr.bf16.mxu0 0
      %1051 = vmatpush1.bf16.msra.mxu0 %v613
      %1052 = vmatprep.subr.bf16.mxu0 0
      %1053 = vmatpush1.bf16.msra.mxu0 %v614
      %1054 = vmatprep.mubr.bf16.mxu0 %v972
      %1055 = vmatmul.mubr.bf16.gmra.mrb[0].mxu0 %v971
      %v1056 = vpop.f32.mrb[0].mxu0
      %v1057 = vadd.f32 %v1016, %v1056
      %v1058 = vpop.f32.mrb[0].mxu0
      %v1059 = vpop.f32.mrb[0].mxu0
      %v1060 = vadd.f32 %v1019, %v1059
      %v1061 = vpop.f32.mrb[0].mxu0
      %1062 = vdwg.mxu0
      %1063 = vmatprep.subr.bf16.mxu0 0
      %1064 = vmatpush1.bf16.msra.mxu0 %v615
      %1065 = vmatprep.subr.bf16.mxu0 0
      %1066 = vmatpush1.bf16.msra.mxu0 %v616
      %1067 = vmatprep.subr.bf16.mxu0 0
      %1068 = vmatpush1.bf16.msra.mxu0 %v617
      %1069 = vmatprep.subr.bf16.mxu0 0
      %1070 = vmatpush1.bf16.msra.mxu0 %v618
      %1071 = vmatprep.subr.bf16.mxu0 0
      %1072 = vmatpush1.bf16.msra.mxu0 0
      %1073 = vmatprep.subr.bf16.mxu0 0
      %1074 = vmatpush1.bf16.msra.mxu0 0
      %1075 = vmatprep.subr.bf16.mxu0 0
      %1076 = vmatpush1.bf16.msra.mxu0 0
      %1077 = vmatprep.subr.bf16.mxu0 0
      %1078 = vmatpush1.bf16.msra.mxu0 0
      %1079 = vmatprep.subr.bf16.mxu0 0
      %1080 = vmatpush1.bf16.msra.mxu0 0
      %1081 = vmatprep.subr.bf16.mxu0 0
      %1082 = vmatpush1.bf16.msra.mxu0 0
      %1083 = vmatprep.subr.bf16.mxu0 0
      %1084 = vmatpush1.bf16.msra.mxu0 0
      %1085 = vmatprep.subr.bf16.mxu0 0
      %1086 = vmatpush1.bf16.msra.mxu0 0
      %1087 = vmatprep.subr.bf16.mxu0 0
      %1088 = vmatpush1.bf16.msra.mxu0 0
      %1089 = vmatprep.subr.bf16.mxu0 0
      %1090 = vmatpush1.bf16.msra.mxu0 0
      %1091 = vmatprep.subr.bf16.mxu0 0
      %1092 = vmatpush1.bf16.msra.mxu0 0
      %1093 = vmatprep.subr.bf16.mxu0 0
      %1094 = vmatpush1.bf16.msra.mxu0 0
      %1095 = vmatprep.mubr.bf16.mxu0 0
      %1096 = vmatmul.mubr.bf16.gmra.mrb[0].mxu0 %v979
      %v1097 = vpop.f32.mrb[0].mxu0
      %v1098 = vadd.f32 %v1057, %v1097
      %v1099 = vpop.f32.mrb[0].mxu0
      %v1100 = vpop.f32.mrb[0].mxu0
      %v1101 = vadd.f32 %v1060, %v1100
      %v1102 = vpop.f32.mrb[0].mxu0
      %1103 = vdwg.mxu0
      %v1104 = vmax.f32 %v1098, 0.0
      %v1105 = vmax.f32 %v1101, 0.0
      %v1106 = vpack.c.bf16 %v1105, %v1104
      %s1107 = scalar_lea.vmem %s307, 120
      %v1108 = vld [vmem:[%s1107] sm:$0xff]
      %v1109 = vld [vmem:[%s1107 + $0x8] sm:$0xff]
      %v1110 = vld [vmem:[%s1107 + $0x10] sm:$0xf]
      %v1111 = vld [vmem:[%s1107 + $0x14] sm:$0xff]
      %v1112 = vld [vmem:[%s1107 + $0x1c] sm:$0xff]
      %v1113 = vld [vmem:[%s1107 + $0x24] sm:$0xf]
      %v1120 = vunpack.c.l.b16 %v1108
      %v1121 = vunpack.c.h.b16 %v1108
      %v1122 = vunpack.c.l.b16 %v1109
      %v1123 = vunpack.c.h.b16 %v1109
      %v1124 = vunpack.c.l.b16 %v1110
      %v1125 = vunpack.c.l.b16 %v1111
      %v1126 = vunpack.c.h.b16 %v1111
      %v1127 = vunpack.c.l.b16 %v1112
      %v1128 = vunpack.c.h.b16 %v1112
      %v1129 = vunpack.c.l.b16 %v1113
      %v1130 = vpack.c.b16 %v1125, %v1120
      %v1131 = vpack.c.b16 %v1126, %v1121
      %v1132 = vpack.c.b16 %v1127, %v1122
      %v1133 = vpack.c.b16 %v1128, %v1123
      %v1134 = vpack.c.b16 %v1129, %v1124
      %v1140 = vsel %vm655, %v1134, 0
      %1142 = vmatprep.subr.bf16.mxu0 0
      %1143 = vmatpush1.bf16.msra.mxu0 %v583
      %1144 = vmatprep.subr.bf16.mxu0 0
      %1145 = vmatpush1.bf16.msra.mxu0 %v584
      %1146 = vmatprep.subr.bf16.mxu0 0
      %1147 = vmatpush1.bf16.msra.mxu0 %v585
      %1148 = vmatprep.subr.bf16.mxu0 0
      %1149 = vmatpush1.bf16.msra.mxu0 %v586
      %1150 = vmatprep.subr.bf16.mxu0 0
      %1151 = vmatpush1.bf16.msra.mxu0 %v587
      %1152 = vmatprep.subr.bf16.mxu0 0
      %1153 = vmatpush1.bf16.msra.mxu0 %v588
      %1154 = vmatprep.subr.bf16.mxu0 0
      %1155 = vmatpush1.bf16.msra.mxu0 %v589
      %1156 = vmatprep.subr.bf16.mxu0 0
      %1157 = vmatpush1.bf16.msra.mxu0 %v590
      %1158 = vmatprep.subr.bf16.mxu0 0
      %1159 = vmatpush1.bf16.msra.mxu0 %v591
      %1160 = vmatprep.subr.bf16.mxu0 0
      %1161 = vmatpush1.bf16.msra.mxu0 %v592
      %1162 = vmatprep.subr.bf16.mxu0 0
      %1163 = vmatpush1.bf16.msra.mxu0 %v593
      %1164 = vmatprep.subr.bf16.mxu0 0
      %1165 = vmatpush1.bf16.msra.mxu0 %v594
      %1166 = vmatprep.subr.bf16.mxu0 0
      %1167 = vmatpush1.bf16.msra.mxu0 %v595
      %1168 = vmatprep.subr.bf16.mxu0 0
      %1169 = vmatpush1.bf16.msra.mxu0 %v596
      %1170 = vmatprep.subr.bf16.mxu0 0
      %1171 = vmatpush1.bf16.msra.mxu0 %v597
      %1172 = vmatprep.subr.bf16.mxu0 0
      %1173 = vmatpush1.bf16.msra.mxu0 %v598
      %1174 = vmatprep.mubr.bf16.mxu0 %v1131
      %1175 = vmatmul.mubr.bf16.gmra.mrb[0].mxu0 %v1130
      %v1176 = vpop.f32.mrb[0].mxu0
      %v1177 = vadd.f32 %v412, %v1176
      %v1178 = vpop.f32.mrb[0].mxu0
      %v1179 = vpop.f32.mrb[0].mxu0
      %v1180 = vadd.f32 %v412, %v1179
      %v1181 = vpop.f32.mrb[0].mxu0
      %1182 = vdwg.mxu0
      %1183 = vmatprep.subr.bf16.mxu0 0
      %1184 = vmatpush1.bf16.msra.mxu0 %v599
      %1185 = vmatprep.subr.bf16.mxu0 0
      %1186 = vmatpush1.bf16.msra.mxu0 %v600
      %1187 = vmatprep.subr.bf16.mxu0 0
      %1188 = vmatpush1.bf16.msra.mxu0 %v601
      %1189 = vmatprep.subr.bf16.mxu0 0
      %1190 = vmatpush1.bf16.msra.mxu0 %v602
      %1191 = vmatprep.subr.bf16.mxu0 0
      %1192 = vmatpush1.bf16.msra.mxu0 %v603
      %1193 = vmatprep.subr.bf16.mxu0 0
      %1194 = vmatpush1.bf16.msra.mxu0 %v604
      %1195 = vmatprep.subr.bf16.mxu0 0
      %1196 = vmatpush1.bf16.msra.mxu0 %v605
      %1197 = vmatprep.subr.bf16.mxu0 0
      %1198 = vmatpush1.bf16.msra.mxu0 %v606
      %1199 = vmatprep.subr.bf16.mxu0 0
      %1200 = vmatpush1.bf16.msra.mxu0 %v607
      %1201 = vmatprep.subr.bf16.mxu0 0
      %1202 = vmatpush1.bf16.msra.mxu0 %v608
      %1203 = vmatprep.subr.bf16.mxu0 0
      %1204 = vmatpush1.bf16.msra.mxu0 %v609
      %1205 = vmatprep.subr.bf16.mxu0 0
      %1206 = vmatpush1.bf16.msra.mxu0 %v610
      %1207 = vmatprep.subr.bf16.mxu0 0
      %1208 = vmatpush1.bf16.msra.mxu0 %v611
      %1209 = vmatprep.subr.bf16.mxu0 0
      %1210 = vmatpush1.bf16.msra.mxu0 %v612
      %1211 = vmatprep.subr.bf16.mxu0 0
      %1212 = vmatpush1.bf16.msra.mxu0 %v613
      %1213 = vmatprep.subr.bf16.mxu0 0
      %1214 = vmatpush1.bf16.msra.mxu0 %v614
      %1215 = vmatprep.mubr.bf16.mxu0 %v1133
      %1216 = vmatmul.mubr.bf16.gmra.mrb[0].mxu0 %v1132
      %v1217 = vpop.f32.mrb[0].mxu0
      %v1218 = vadd.f32 %v1177, %v1217
      %v1219 = vpop.f32.mrb[0].mxu0
      %v1220 = vpop.f32.mrb[0].mxu0
      %v1221 = vadd.f32 %v1180, %v1220
      %v1222 = vpop.f32.mrb[0].mxu0
      %1223 = vdwg.mxu0
      %1224 = vmatprep.subr.bf16.mxu0 0
      %1225 = vmatpush1.bf16.msra.mxu0 %v615
      %1226 = vmatprep.subr.bf16.mxu0 0
      %1227 = vmatpush1.bf16.msra.mxu0 %v616
      %1228 = vmatprep.subr.bf16.mxu0 0
      %1229 = vmatpush1.bf16.msra.mxu0 %v617
      %1230 = vmatprep.subr.bf16.mxu0 0
      %1231 = vmatpush1.bf16.msra.mxu0 %v618
      %1232 = vmatprep.subr.bf16.mxu0 0
      %1233 = vmatpush1.bf16.msra.mxu0 0
      %1234 = vmatprep.subr.bf16.mxu0 0
      %1235 = vmatpush1.bf16.msra.mxu0 0
      %1236 = vmatprep.subr.bf16.mxu0 0
      %1237 = vmatpush1.bf16.msra.mxu0 0
      %1238 = vmatprep.subr.bf16.mxu0 0
      %1239 = vmatpush1.bf16.msra.mxu0 0
      %1240 = vmatprep.subr.bf16.mxu0 0
      %1241 = vmatpush1.bf16.msra.mxu0 0
      %1242 = vmatprep.subr.bf16.mxu0 0
      %1243 = vmatpush1.bf16.msra.mxu0 0
      %1244 = vmatprep.subr.bf16.mxu0 0
      %1245 = vmatpush1.bf16.msra.mxu0 0
      %1246 = vmatprep.subr.bf16.mxu0 0
      %1247 = vmatpush1.bf16.msra.mxu0 0
      %1248 = vmatprep.subr.bf16.mxu0 0
      %1249 = vmatpush1.bf16.msra.mxu0 0
      %1250 = vmatprep.subr.bf16.mxu0 0
      %1251 = vmatpush1.bf16.msra.mxu0 0
      %1252 = vmatprep.subr.bf16.mxu0 0
      %1253 = vmatpush1.bf16.msra.mxu0 0
      %1254 = vmatprep.subr.bf16.mxu0 0
      %1255 = vmatpush1.bf16.msra.mxu0 0
      %1256 = vmatprep.mubr.bf16.mxu0 0
      %1257 = vmatmul.mubr.bf16.gmra.mrb[0].mxu0 %v1140
      %v1258 = vpop.f32.mrb[0].mxu0
      %v1259 = vadd.f32 %v1218, %v1258
      %v1260 = vpop.f32.mrb[0].mxu0
      %v1261 = vpop.f32.mrb[0].mxu0
      %v1262 = vadd.f32 %v1221, %v1261
      %v1263 = vpop.f32.mrb[0].mxu0
      %1264 = vdwg.mxu0
      %v1265 = vmax.f32 %v1259, 0.0
      %v1266 = vmax.f32 %v1262, 0.0
      %v1267 = vpack.c.bf16 %v1266, %v1265
      %s1268 = scalar_lea.vmem %s307, 160
      %v1269 = vld [vmem:[%s1268] sm:$0xff]
      %v1270 = vld [vmem:[%s1268 + $0x8] sm:$0xff]
      %v1271 = vld [vmem:[%s1268 + $0x10] sm:$0xf]
      %v1272 = vld [vmem:[%s1268 + $0x14] sm:$0xff]
      %v1273 = vld [vmem:[%s1268 + $0x1c] sm:$0xff]
      %v1274 = vld [vmem:[%s1268 + $0x24] sm:$0xf]
      %v1281 = vunpack.c.l.b16 %v1269
      %v1282 = vunpack.c.h.b16 %v1269
      %v1283 = vunpack.c.l.b16 %v1270
      %v1284 = vunpack.c.h.b16 %v1270
      %v1285 = vunpack.c.l.b16 %v1271
      %v1286 = vunpack.c.l.b16 %v1272
      %v1287 = vunpack.c.h.b16 %v1272
      %v1288 = vunpack.c.l.b16 %v1273
      %v1289 = vunpack.c.h.b16 %v1273
      %v1290 = vunpack.c.l.b16 %v1274
      %v1291 = vpack.c.b16 %v1286, %v1281
      %v1292 = vpack.c.b16 %v1287, %v1282
      %v1293 = vpack.c.b16 %v1288, %v1283
      %v1294 = vpack.c.b16 %v1289, %v1284
      %v1295 = vpack.c.b16 %v1290, %v1285
      %v1301 = vsel %vm655, %v1295, 0
      %1303 = vmatprep.subr.bf16.mxu0 0
      %1304 = vmatpush1.bf16.msra.mxu0 %v583
      %1305 = vmatprep.subr.bf16.mxu0 0
      %1306 = vmatpush1.bf16.msra.mxu0 %v584
      %1307 = vmatprep.subr.bf16.mxu0 0
      %1308 = vmatpush1.bf16.msra.mxu0 %v585
      %1309 = vmatprep.subr.bf16.mxu0 0
      %1310 = vmatpush1.bf16.msra.mxu0 %v586
      %1311 = vmatprep.subr.bf16.mxu0 0
      %1312 = vmatpush1.bf16.msra.mxu0 %v587
      %1313 = vmatprep.subr.bf16.mxu0 0
      %1314 = vmatpush1.bf16.msra.mxu0 %v588
      %1315 = vmatprep.subr.bf16.mxu0 0
      %1316 = vmatpush1.bf16.msra.mxu0 %v589
      %1317 = vmatprep.subr.bf16.mxu0 0
      %1318 = vmatpush1.bf16.msra.mxu0 %v590
      %1319 = vmatprep.subr.bf16.mxu0 0
      %1320 = vmatpush1.bf16.msra.mxu0 %v591
      %1321 = vmatprep.subr.bf16.mxu0 0
      %1322 = vmatpush1.bf16.msra.mxu0 %v592
      %1323 = vmatprep.subr.bf16.mxu0 0
      %1324 = vmatpush1.bf16.msra.mxu0 %v593
      %1325 = vmatprep.subr.bf16.mxu0 0
      %1326 = vmatpush1.bf16.msra.mxu0 %v594
      %1327 = vmatprep.subr.bf16.mxu0 0
      %1328 = vmatpush1.bf16.msra.mxu0 %v595
      %1329 = vmatprep.subr.bf16.mxu0 0
      %1330 = vmatpush1.bf16.msra.mxu0 %v596
      %1331 = vmatprep.subr.bf16.mxu0 0
      %1332 = vmatpush1.bf16.msra.mxu0 %v597
      %1333 = vmatprep.subr.bf16.mxu0 0
      %1334 = vmatpush1.bf16.msra.mxu0 %v598
      %1335 = vmatprep.mubr.bf16.mxu0 %v1292
      %1336 = vmatmul.mubr.bf16.gmra.mrb[0].mxu0 %v1291
      %v1337 = vpop.f32.mrb[0].mxu0
      %v1338 = vadd.f32 %v412, %v1337
      %v1339 = vpop.f32.mrb[0].mxu0
      %v1340 = vpop.f32.mrb[0].mxu0
      %v1341 = vadd.f32 %v412, %v1340
      %v1342 = vpop.f32.mrb[0].mxu0
      %1343 = vdwg.mxu0
      %1344 = vmatprep.subr.bf16.mxu0 0
      %1345 = vmatpush1.bf16.msra.mxu0 %v599
      %1346 = vmatprep.subr.bf16.mxu0 0
      %1347 = vmatpush1.bf16.msra.mxu0 %v600
      %1348 = vmatprep.subr.bf16.mxu0 0
      %1349 = vmatpush1.bf16.msra.mxu0 %v601
      %1350 = vmatprep.subr.bf16.mxu0 0
      %1351 = vmatpush1.bf16.msra.mxu0 %v602
      %1352 = vmatprep.subr.bf16.mxu0 0
      %1353 = vmatpush1.bf16.msra.mxu0 %v603
      %1354 = vmatprep.subr.bf16.mxu0 0
      %1355 = vmatpush1.bf16.msra.mxu0 %v604
      %1356 = vmatprep.subr.bf16.mxu0 0
      %1357 = vmatpush1.bf16.msra.mxu0 %v605
      %1358 = vmatprep.subr.bf16.mxu0 0
      %1359 = vmatpush1.bf16.msra.mxu0 %v606
      %1360 = vmatprep.subr.bf16.mxu0 0
      %1361 = vmatpush1.bf16.msra.mxu0 %v607
      %1362 = vmatprep.subr.bf16.mxu0 0
      %1363 = vmatpush1.bf16.msra.mxu0 %v608
      %1364 = vmatprep.subr.bf16.mxu0 0
      %1365 = vmatpush1.bf16.msra.mxu0 %v609
      %1366 = vmatprep.subr.bf16.mxu0 0
      %1367 = vmatpush1.bf16.msra.mxu0 %v610
      %1368 = vmatprep.subr.bf16.mxu0 0
      %1369 = vmatpush1.bf16.msra.mxu0 %v611
      %1370 = vmatprep.subr.bf16.mxu0 0
      %1371 = vmatpush1.bf16.msra.mxu0 %v612
      %1372 = vmatprep.subr.bf16.mxu0 0
      %1373 = vmatpush1.bf16.msra.mxu0 %v613
      %1374 = vmatprep.subr.bf16.mxu0 0
      %1375 = vmatpush1.bf16.msra.mxu0 %v614
      %1376 = vmatprep.mubr.bf16.mxu0 %v1294
      %1377 = vmatmul.mubr.bf16.gmra.mrb[0].mxu0 %v1293
      %v1378 = vpop.f32.mrb[0].mxu0
      %v1379 = vadd.f32 %v1338, %v1378
      %v1380 = vpop.f32.mrb[0].mxu0
      %v1381 = vpop.f32.mrb[0].mxu0
      %v1382 = vadd.f32 %v1341, %v1381
      %v1383 = vpop.f32.mrb[0].mxu0
      %1384 = vdwg.mxu0
      %1385 = vmatprep.subr.bf16.mxu0 0
      %1386 = vmatpush1.bf16.msra.mxu0 %v615
      %1387 = vmatprep.subr.bf16.mxu0 0
      %1388 = vmatpush1.bf16.msra.mxu0 %v616
      %1389 = vmatprep.subr.bf16.mxu0 0
      %1390 = vmatpush1.bf16.msra.mxu0 %v617
      %1391 = vmatprep.subr.bf16.mxu0 0
      %1392 = vmatpush1.bf16.msra.mxu0 %v618
      %1393 = vmatprep.subr.bf16.mxu0 0
      %1394 = vmatpush1.bf16.msra.mxu0 0
      %1395 = vmatprep.subr.bf16.mxu0 0
      %1396 = vmatpush1.bf16.msra.mxu0 0
      %1397 = vmatprep.subr.bf16.mxu0 0
      %1398 = vmatpush1.bf16.msra.mxu0 0
      %1399 = vmatprep.subr.bf16.mxu0 0
      %1400 = vmatpush1.bf16.msra.mxu0 0
      %1401 = vmatprep.subr.bf16.mxu0 0
      %1402 = vmatpush1.bf16.msra.mxu0 0
      %1403 = vmatprep.subr.bf16.mxu0 0
      %1404 = vmatpush1.bf16.msra.mxu0 0
      %1405 = vmatprep.subr.bf16.mxu0 0
      %1406 = vmatpush1.bf16.msra.mxu0 0
      %1407 = vmatprep.subr.bf16.mxu0 0
      %1408 = vmatpush1.bf16.msra.mxu0 0
      %1409 = vmatprep.subr.bf16.mxu0 0
      %1410 = vmatpush1.bf16.msra.mxu0 0
      %1411 = vmatprep.subr.bf16.mxu0 0
      %1412 = vmatpush1.bf16.msra.mxu0 0
      %1413 = vmatprep.subr.bf16.mxu0 0
      %1414 = vmatpush1.bf16.msra.mxu0 0
      %1415 = vmatprep.subr.bf16.mxu0 0
      %1416 = vmatpush1.bf16.msra.mxu0 0
      %1417 = vmatprep.mubr.bf16.mxu0 0
      %1418 = vmatmul.mubr.bf16.gmra.mrb[0].mxu0 %v1301
      %v1419 = vpop.f32.mrb[0].mxu0
      %v1420 = vadd.f32 %v1379, %v1419
      %v1421 = vpop.f32.mrb[0].mxu0
      %v1422 = vpop.f32.mrb[0].mxu0
      %v1423 = vadd.f32 %v1382, %v1422
      %v1424 = vpop.f32.mrb[0].mxu0
      %1425 = vdwg.mxu0
      %v1426 = vmax.f32 %v1420, 0.0
      %v1427 = vmax.f32 %v1423, 0.0
      %v1428 = vpack.c.bf16 %v1427, %v1426
      %s1429 = scalar_lea.vmem %s307, 200
      %v1430 = vld [vmem:[%s1429] sm:$0xff]
      %v1431 = vld [vmem:[%s1429 + $0x8] sm:$0xff]
      %v1432 = vld [vmem:[%s1429 + $0x10] sm:$0xf]
      %v1433 = vld [vmem:[%s1429 + $0x14] sm:$0xff]
      %v1434 = vld [vmem:[%s1429 + $0x1c] sm:$0xff]
      %v1435 = vld [vmem:[%s1429 + $0x24] sm:$0xf]
      %v1442 = vunpack.c.l.b16 %v1430
      %v1443 = vunpack.c.h.b16 %v1430
      %v1444 = vunpack.c.l.b16 %v1431
      %v1445 = vunpack.c.h.b16 %v1431
      %v1446 = vunpack.c.l.b16 %v1432
      %v1447 = vunpack.c.l.b16 %v1433
      %v1448 = vunpack.c.h.b16 %v1433
      %v1449 = vunpack.c.l.b16 %v1434
      %v1450 = vunpack.c.h.b16 %v1434
      %v1451 = vunpack.c.l.b16 %v1435
      %v1452 = vpack.c.b16 %v1447, %v1442
      %v1453 = vpack.c.b16 %v1448, %v1443
      %v1454 = vpack.c.b16 %v1449, %v1444
      %v1455 = vpack.c.b16 %v1450, %v1445
      %v1456 = vpack.c.b16 %v1451, %v1446
      %v1462 = vsel %vm655, %v1456, 0
      %1464 = vmatprep.subr.bf16.mxu0 0
      %1465 = vmatpush1.bf16.msra.mxu0 %v583
      %1466 = vmatprep.subr.bf16.mxu0 0
      %1467 = vmatpush1.bf16.msra.mxu0 %v584
      %1468 = vmatprep.subr.bf16.mxu0 0
      %1469 = vmatpush1.bf16.msra.mxu0 %v585
      %1470 = vmatprep.subr.bf16.mxu0 0
      %1471 = vmatpush1.bf16.msra.mxu0 %v586
      %1472 = vmatprep.subr.bf16.mxu0 0
      %1473 = vmatpush1.bf16.msra.mxu0 %v587
      %1474 = vmatprep.subr.bf16.mxu0 0
      %1475 = vmatpush1.bf16.msra.mxu0 %v588
      %1476 = vmatprep.subr.bf16.mxu0 0
      %1477 = vmatpush1.bf16.msra.mxu0 %v589
      %1478 = vmatprep.subr.bf16.mxu0 0
      %1479 = vmatpush1.bf16.msra.mxu0 %v590
      %1480 = vmatprep.subr.bf16.mxu0 0
      %1481 = vmatpush1.bf16.msra.mxu0 %v591
      %1482 = vmatprep.subr.bf16.mxu0 0
      %1483 = vmatpush1.bf16.msra.mxu0 %v592
      %1484 = vmatprep.subr.bf16.mxu0 0
      %1485 = vmatpush1.bf16.msra.mxu0 %v593
      %1486 = vmatprep.subr.bf16.mxu0 0
      %1487 = vmatpush1.bf16.msra.mxu0 %v594
      %1488 = vmatprep.subr.bf16.mxu0 0
      %1489 = vmatpush1.bf16.msra.mxu0 %v595
      %1490 = vmatprep.subr.bf16.mxu0 0
      %1491 = vmatpush1.bf16.msra.mxu0 %v596
      %1492 = vmatprep.subr.bf16.mxu0 0
      %1493 = vmatpush1.bf16.msra.mxu0 %v597
      %1494 = vmatprep.subr.bf16.mxu0 0
      %1495 = vmatpush1.bf16.msra.mxu0 %v598
      %1496 = vmatprep.mubr.bf16.mxu0 %v1453
      %1497 = vmatmul.mubr.bf16.gmra.mrb[0].mxu0 %v1452
      %v1498 = vpop.f32.mrb[0].mxu0
      %v1499 = vadd.f32 %v412, %v1498
      %v1500 = vpop.f32.mrb[0].mxu0
      %v1501 = vpop.f32.mrb[0].mxu0
      %v1502 = vadd.f32 %v412, %v1501
      %v1503 = vpop.f32.mrb[0].mxu0
      %1504 = vdwg.mxu0
      %1505 = vmatprep.subr.bf16.mxu0 0
      %1506 = vmatpush1.bf16.msra.mxu0 %v599
      %1507 = vmatprep.subr.bf16.mxu0 0
      %1508 = vmatpush1.bf16.msra.mxu0 %v600
      %1509 = vmatprep.subr.bf16.mxu0 0
      %1510 = vmatpush1.bf16.msra.mxu0 %v601
      %1511 = vmatprep.subr.bf16.mxu0 0
      %1512 = vmatpush1.bf16.msra.mxu0 %v602
      %1513 = vmatprep.subr.bf16.mxu0 0
      %1514 = vmatpush1.bf16.msra.mxu0 %v603
      %1515 = vmatprep.subr.bf16.mxu0 0
      %1516 = vmatpush1.bf16.msra.mxu0 %v604
      %1517 = vmatprep.subr.bf16.mxu0 0
      %1518 = vmatpush1.bf16.msra.mxu0 %v605
      %1519 = vmatprep.subr.bf16.mxu0 0
      %1520 = vmatpush1.bf16.msra.mxu0 %v606
      %1521 = vmatprep.subr.bf16.mxu0 0
      %1522 = vmatpush1.bf16.msra.mxu0 %v607
      %1523 = vmatprep.subr.bf16.mxu0 0
      %1524 = vmatpush1.bf16.msra.mxu0 %v608
      %1525 = vmatprep.subr.bf16.mxu0 0
      %1526 = vmatpush1.bf16.msra.mxu0 %v609
      %1527 = vmatprep.subr.bf16.mxu0 0
      %1528 = vmatpush1.bf16.msra.mxu0 %v610
      %1529 = vmatprep.subr.bf16.mxu0 0
      %1530 = vmatpush1.bf16.msra.mxu0 %v611
      %1531 = vmatprep.subr.bf16.mxu0 0
      %1532 = vmatpush1.bf16.msra.mxu0 %v612
      %1533 = vmatprep.subr.bf16.mxu0 0
      %1534 = vmatpush1.bf16.msra.mxu0 %v613
      %1535 = vmatprep.subr.bf16.mxu0 0
      %1536 = vmatpush1.bf16.msra.mxu0 %v614
      %1537 = vmatprep.mubr.bf16.mxu0 %v1455
      %1538 = vmatmul.mubr.bf16.gmra.mrb[0].mxu0 %v1454
      %v1539 = vpop.f32.mrb[0].mxu0
      %v1540 = vadd.f32 %v1499, %v1539
      %v1541 = vpop.f32.mrb[0].mxu0
      %v1542 = vpop.f32.mrb[0].mxu0
      %v1543 = vadd.f32 %v1502, %v1542
      %v1544 = vpop.f32.mrb[0].mxu0
      %1545 = vdwg.mxu0
      %1546 = vmatprep.subr.bf16.mxu0 0
      %1547 = vmatpush1.bf16.msra.mxu0 %v615
      %1548 = vmatprep.subr.bf16.mxu0 0
      %1549 = vmatpush1.bf16.msra.mxu0 %v616
      %1550 = vmatprep.subr.bf16.mxu0 0
      %1551 = vmatpush1.bf16.msra.mxu0 %v617
      %1552 = vmatprep.subr.bf16.mxu0 0
      %1553 = vmatpush1.bf16.msra.mxu0 %v618
      %1554 = vmatprep.subr.bf16.mxu0 0
      %1555 = vmatpush1.bf16.msra.mxu0 0
      %1556 = vmatprep.subr.bf16.mxu0 0
      %1557 = vmatpush1.bf16.msra.mxu0 0
      %1558 = vmatprep.subr.bf16.mxu0 0
      %1559 = vmatpush1.bf16.msra.mxu0 0
      %1560 = vmatprep.subr.bf16.mxu0 0
      %1561 = vmatpush1.bf16.msra.mxu0 0
      %1562 = vmatprep.subr.bf16.mxu0 0
      %1563 = vmatpush1.bf16.msra.mxu0 0
      %1564 = vmatprep.subr.bf16.mxu0 0
      %1565 = vmatpush1.bf16.msra.mxu0 0
      %1566 = vmatprep.subr.bf16.mxu0 0
      %1567 = vmatpush1.bf16.msra.mxu0 0
      %1568 = vmatprep.subr.bf16.mxu0 0
      %1569 = vmatpush1.bf16.msra.mxu0 0
      %1570 = vmatprep.subr.bf16.mxu0 0
      %1571 = vmatpush1.bf16.msra.mxu0 0
      %1572 = vmatprep.subr.bf16.mxu0 0
      %1573 = vmatpush1.bf16.msra.mxu0 0
      %1574 = vmatprep.subr.bf16.mxu0 0
      %1575 = vmatpush1.bf16.msra.mxu0 0
      %1576 = vmatprep.subr.bf16.mxu0 0
      %1577 = vmatpush1.bf16.msra.mxu0 0
      %1578 = vmatprep.mubr.bf16.mxu0 0
      %1579 = vmatmul.mubr.bf16.gmra.mrb[0].mxu0 %v1462
      %v1580 = vpop.f32.mrb[0].mxu0
      %v1581 = vadd.f32 %v1540, %v1580
      %v1582 = vpop.f32.mrb[0].mxu0
      %v1583 = vpop.f32.mrb[0].mxu0
      %v1584 = vadd.f32 %v1543, %v1583
      %v1585 = vpop.f32.mrb[0].mxu0
      %1586 = vdwg.mxu0
      %v1587 = vmax.f32 %v1581, 0.0
      %v1588 = vmax.f32 %v1584, 0.0
      %v1589 = vpack.c.bf16 %v1588, %v1587
      %s1590 = scalar_lea.vmem %s307, 240
      %v1591 = vld [vmem:[%s1590] sm:$0xff]
      %v1592 = vld [vmem:[%s1590 + $0x8] sm:$0xff]
      %v1593 = vld [vmem:[%s1590 + $0x10] sm:$0xf]
      %v1594 = vld [vmem:[%s1590 + $0x14] sm:$0xff]
      %v1595 = vld [vmem:[%s1590 + $0x1c] sm:$0xff]
      %v1596 = vld [vmem:[%s1590 + $0x24] sm:$0xf]
      %v1603 = vunpack.c.l.b16 %v1591
      %v1604 = vunpack.c.h.b16 %v1591
      %v1605 = vunpack.c.l.b16 %v1592
      %v1606 = vunpack.c.h.b16 %v1592
      %v1607 = vunpack.c.l.b16 %v1593
      %v1608 = vunpack.c.l.b16 %v1594
      %v1609 = vunpack.c.h.b16 %v1594
      %v1610 = vunpack.c.l.b16 %v1595
      %v1611 = vunpack.c.h.b16 %v1595
      %v1612 = vunpack.c.l.b16 %v1596
      %v1613 = vpack.c.b16 %v1608, %v1603
      %v1614 = vpack.c.b16 %v1609, %v1604
      %v1615 = vpack.c.b16 %v1610, %v1605
      %v1616 = vpack.c.b16 %v1611, %v1606
      %v1617 = vpack.c.b16 %v1612, %v1607
      %v1623 = vsel %vm655, %v1617, 0
      %1625 = vmatprep.subr.bf16.mxu0 0
      %1626 = vmatpush1.bf16.msra.mxu0 %v583
      %1627 = vmatprep.subr.bf16.mxu0 0
      %1628 = vmatpush1.bf16.msra.mxu0 %v584
      %1629 = vmatprep.subr.bf16.mxu0 0
      %1630 = vmatpush1.bf16.msra.mxu0 %v585
      %1631 = vmatprep.subr.bf16.mxu0 0
      %1632 = vmatpush1.bf16.msra.mxu0 %v586
      %1633 = vmatprep.subr.bf16.mxu0 0
      %1634 = vmatpush1.bf16.msra.mxu0 %v587
      %1635 = vmatprep.subr.bf16.mxu0 0
      %1636 = vmatpush1.bf16.msra.mxu0 %v588
      %1637 = vmatprep.subr.bf16.mxu0 0
      %1638 = vmatpush1.bf16.msra.mxu0 %v589
      %1639 = vmatprep.subr.bf16.mxu0 0
      %1640 = vmatpush1.bf16.msra.mxu0 %v590
      %1641 = vmatprep.subr.bf16.mxu0 0
      %1642 = vmatpush1.bf16.msra.mxu0 %v591
      %1643 = vmatprep.subr.bf16.mxu0 0
      %1644 = vmatpush1.bf16.msra.mxu0 %v592
      %1645 = vmatprep.subr.bf16.mxu0 0
      %1646 = vmatpush1.bf16.msra.mxu0 %v593
      %1647 = vmatprep.subr.bf16.mxu0 0
      %1648 = vmatpush1.bf16.msra.mxu0 %v594
      %1649 = vmatprep.subr.bf16.mxu0 0
      %1650 = vmatpush1.bf16.msra.mxu0 %v595
      %1651 = vmatprep.subr.bf16.mxu0 0
      %1652 = vmatpush1.bf16.msra.mxu0 %v596
      %1653 = vmatprep.subr.bf16.mxu0 0
      %1654 = vmatpush1.bf16.msra.mxu0 %v597
      %1655 = vmatprep.subr.bf16.mxu0 0
      %1656 = vmatpush1.bf16.msra.mxu0 %v598
      %1657 = vmatprep.mubr.bf16.mxu0 %v1614
      %1658 = vmatmul.mubr.bf16.gmra.mrb[0].mxu0 %v1613
      %v1659 = vpop.f32.mrb[0].mxu0
      %v1660 = vadd.f32 %v412, %v1659
      %v1661 = vpop.f32.mrb[0].mxu0
      %v1662 = vpop.f32.mrb[0].mxu0
      %v1663 = vadd.f32 %v412, %v1662
      %v1664 = vpop.f32.mrb[0].mxu0
      %1665 = vdwg.mxu0
      %1666 = vmatprep.subr.bf16.mxu0 0
      %1667 = vmatpush1.bf16.msra.mxu0 %v599
      %1668 = vmatprep.subr.bf16.mxu0 0
      %1669 = vmatpush1.bf16.msra.mxu0 %v600
      %1670 = vmatprep.subr.bf16.mxu0 0
      %1671 = vmatpush1.bf16.msra.mxu0 %v601
      %1672 = vmatprep.subr.bf16.mxu0 0
      %1673 = vmatpush1.bf16.msra.mxu0 %v602
      %1674 = vmatprep.subr.bf16.mxu0 0
      %1675 = vmatpush1.bf16.msra.mxu0 %v603
      %1676 = vmatprep.subr.bf16.mxu0 0
      %1677 = vmatpush1.bf16.msra.mxu0 %v604
      %1678 = vmatprep.subr.bf16.mxu0 0
      %1679 = vmatpush1.bf16.msra.mxu0 %v605
      %1680 = vmatprep.subr.bf16.mxu0 0
      %1681 = vmatpush1.bf16.msra.mxu0 %v606
      %1682 = vmatprep.subr.bf16.mxu0 0
      %1683 = vmatpush1.bf16.msra.mxu0 %v607
      %1684 = vmatprep.subr.bf16.mxu0 0
      %1685 = vmatpush1.bf16.msra.mxu0 %v608
      %1686 = vmatprep.subr.bf16.mxu0 0
      %1687 = vmatpush1.bf16.msra.mxu0 %v609
      %1688 = vmatprep.subr.bf16.mxu0 0
      %1689 = vmatpush1.bf16.msra.mxu0 %v610
      %1690 = vmatprep.subr.bf16.mxu0 0
      %1691 = vmatpush1.bf16.msra.mxu0 %v611
      %1692 = vmatprep.subr.bf16.mxu0 0
      %1693 = vmatpush1.bf16.msra.mxu0 %v612
      %1694 = vmatprep.subr.bf16.mxu0 0
      %1695 = vmatpush1.bf16.msra.mxu0 %v613
      %1696 = vmatprep.subr.bf16.mxu0 0
      %1697 = vmatpush1.bf16.msra.mxu0 %v614
      %1698 = vmatprep.mubr.bf16.mxu0 %v1616
      %1699 = vmatmul.mubr.bf16.gmra.mrb[0].mxu0 %v1615
      %v1700 = vpop.f32.mrb[0].mxu0
      %v1701 = vadd.f32 %v1660, %v1700
      %v1702 = vpop.f32.mrb[0].mxu0
      %v1703 = vpop.f32.mrb[0].mxu0
      %v1704 = vadd.f32 %v1663, %v1703
      %v1705 = vpop.f32.mrb[0].mxu0
      %1706 = vdwg.mxu0
      %1707 = vmatprep.subr.bf16.mxu0 0
      %1708 = vmatpush1.bf16.msra.mxu0 %v615
      %1709 = vmatprep.subr.bf16.mxu0 0
      %1710 = vmatpush1.bf16.msra.mxu0 %v616
      %1711 = vmatprep.subr.bf16.mxu0 0
      %1712 = vmatpush1.bf16.msra.mxu0 %v617
      %1713 = vmatprep.subr.bf16.mxu0 0
      %1714 = vmatpush1.bf16.msra.mxu0 %v618
      %1715 = vmatprep.subr.bf16.mxu0 0
      %1716 = vmatpush1.bf16.msra.mxu0 0
      %1717 = vmatprep.subr.bf16.mxu0 0
      %1718 = vmatpush1.bf16.msra.mxu0 0
      %1719 = vmatprep.subr.bf16.mxu0 0
      %1720 = vmatpush1.bf16.msra.mxu0 0
      %1721 = vmatprep.subr.bf16.mxu0 0
      %1722 = vmatpush1.bf16.msra.mxu0 0
      %1723 = vmatprep.subr.bf16.mxu0 0
      %1724 = vmatpush1.bf16.msra.mxu0 0
      %1725 = vmatprep.subr.bf16.mxu0 0
      %1726 = vmatpush1.bf16.msra.mxu0 0
      %1727 = vmatprep.subr.bf16.mxu0 0
      %1728 = vmatpush1.bf16.msra.mxu0 0
      %1729 = vmatprep.subr.bf16.mxu0 0
      %1730 = vmatpush1.bf16.msra.mxu0 0
      %1731 = vmatprep.subr.bf16.mxu0 0
      %1732 = vmatpush1.bf16.msra.mxu0 0
      %1733 = vmatprep.subr.bf16.mxu0 0
      %1734 = vmatpush1.bf16.msra.mxu0 0
      %1735 = vmatprep.subr.bf16.mxu0 0
      %1736 = vmatpush1.bf16.msra.mxu0 0
      %1737 = vmatprep.subr.bf16.mxu0 0
      %1738 = vmatpush1.bf16.msra.mxu0 0
      %1739 = vmatprep.mubr.bf16.mxu0 0
      %1740 = vmatmul.mubr.bf16.gmra.mrb[0].mxu0 %v1623
      %v1741 = vpop.f32.mrb[0].mxu0
      %v1742 = vadd.f32 %v1701, %v1741
      %v1743 = vpop.f32.mrb[0].mxu0
      %v1744 = vpop.f32.mrb[0].mxu0
      %v1745 = vadd.f32 %v1704, %v1744
      %v1746 = vpop.f32.mrb[0].mxu0
      %1747 = vdwg.mxu0
      %v1748 = vmax.f32 %v1742, 0.0
      %v1749 = vmax.f32 %v1745, 0.0
      %v1750 = vpack.c.bf16 %v1749, %v1748
      %1752 = vrot.lane.b32.xlu0 %v945, 64
      %v1753 = vpop.permute.xlu0 %1752
      %1755 = vrot.lane.b32.xlu0 %v1267, 64
      %v1756 = vpop.permute.xlu0 %1755
      %1758 = vrot.lane.b32.xlu0 %v1589, 64
      %v1759 = vpop.permute.xlu0 %1758
      %v1762 = vsel %vm655, %v784, %v1753
      %v1766 = vsel %vm655, %v1106, %v1756
      %v1770 = vsel %vm655, %v1428, %v1759
      %v1772 = vld [vmem:[#allocation2] sm:$0xff]
      %v1773 = vld [vmem:[#allocation2 + $0x8] sm:$0xff]
      %v1774 = vld [vmem:[#allocation2 + $0x10] sm:$0xff]
      %v1775 = vld [vmem:[#allocation2 + $0x18] sm:$0xff]
      %v1776 = vld [vmem:[#allocation2 + $0x20] sm:$0xff]
      %v1777 = vld [vmem:[#allocation2 + $0x28] sm:$0xff]
      %v1778 = vld [vmem:[#allocation2 + $0x30] sm:$0xff]
      %v1779 = vld [vmem:[#allocation2 + $0x38] sm:$0xff]
      %s1780 = smul.u32 %s23, 224
      %s1781 = smul.addr %s1780, 4
      %s1782 = scalar_lea.vmem %s3, %s1781
      %v1783 = vld [vmem:[%s1782] sm:$0xff]
      %v1784 = vld [vmem:[%s1782 + $0x8] sm:$0xff]
      %v1785 = vld [vmem:[%s1782 + $0x10] sm:$0xff]
      %v1786 = vld [vmem:[%s1782 + $0x18] sm:$0xff]
      %v1787 = vld [vmem:[%s1782 + $0x20] sm:$0xff]
      %v1788 = vld [vmem:[%s1782 + $0x28] sm:$0xff]
      %v1789 = vld [vmem:[%s1782 + $0x30] sm:$0xff]
      %v1790 = vld [vmem:[%s1782 + $0x38] sm:$0xff]
      %v1791 = vld [vmem:[%s1782 + $0x40] sm:$0xff]
      %v1792 = vld [vmem:[%s1782 + $0x48] sm:$0xff]
      %v1793 = vld [vmem:[%s1782 + $0x50] sm:$0xff]
      %v1794 = vld [vmem:[%s1782 + $0x58] sm:$0xff]
      %v1795 = vld [vmem:[%s1782 + $0x60] sm:$0xff]
      %v1796 = vld [vmem:[%s1782 + $0x68] sm:$0xff]
      %v1797 = vld [vmem:[%s1782 + $0x70] sm:$0xff]
      %v1798 = vld [vmem:[%s1782 + $0x78] sm:$0xff]
      %v1799 = vld [vmem:[%s1782 + $0x80] sm:$0xff]
      %v1800 = vld [vmem:[%s1782 + $0x88] sm:$0xff]
      %v1801 = vld [vmem:[%s1782 + $0x90] sm:$0xff]
      %v1802 = vld [vmem:[%s1782 + $0x98] sm:$0xff]
      %v1803 = vld [vmem:[%s1782 + $0xa0] sm:$0xff]
      %v1804 = vld [vmem:[%s1782 + $0xa8] sm:$0xff]
      %v1805 = vld [vmem:[%s1782 + $0xb0] sm:$0xff]
      %v1806 = vld [vmem:[%s1782 + $0xb8] sm:$0xff]
      %v1807 = vld [vmem:[%s1782 + $0xc0] sm:$0xff]
      %v1808 = vld [vmem:[%s1782 + $0xc8] sm:$0xff]
      %v1809 = vld [vmem:[%s1782 + $0xd0] sm:$0xff]
      %v1810 = vld [vmem:[%s1782 + $0xd8] sm:$0xff]
      %v1811 = vld [vmem:[%s1782 + $0xe0] sm:$0xff]
      %v1812 = vld [vmem:[%s1782 + $0xe8] sm:$0xff]
      %v1813 = vld [vmem:[%s1782 + $0xf0] sm:$0xff]
      %v1814 = vld [vmem:[%s1782 + $0xf8] sm:$0xff]
      %v1815 = vld [vmem:[%s1782 + $0x100] sm:$0xff]
      %v1816 = vld [vmem:[%s1782 + $0x108] sm:$0xff]
      %v1817 = vld [vmem:[%s1782 + $0x110] sm:$0xff]
      %v1818 = vld [vmem:[%s1782 + $0x118] sm:$0xff]
      %v1819 = vld [vmem:[%s1782 + $0x120] sm:$0xff]
      %v1820 = vld [vmem:[%s1782 + $0x128] sm:$0xff]
      %v1821 = vld [vmem:[%s1782 + $0x130] sm:$0xff]
      %v1822 = vld [vmem:[%s1782 + $0x138] sm:$0xff]
      %v1823 = vld [vmem:[%s1782 + $0x140] sm:$0xff]
      %v1824 = vld [vmem:[%s1782 + $0x148] sm:$0xff]
      %v1825 = vld [vmem:[%s1782 + $0x150] sm:$0xff]
      %v1826 = vld [vmem:[%s1782 + $0x158] sm:$0xff]
      %v1827 = vld [vmem:[%s1782 + $0x160] sm:$0xff]
      %v1828 = vld [vmem:[%s1782 + $0x168] sm:$0xff]
      %v1829 = vld [vmem:[%s1782 + $0x170] sm:$0xff]
      %v1830 = vld [vmem:[%s1782 + $0x178] sm:$0xff]
      %v1831 = vld [vmem:[%s1782 + $0x180] sm:$0xff]
      %v1832 = vld [vmem:[%s1782 + $0x188] sm:$0xff]
      %v1833 = vld [vmem:[%s1782 + $0x190] sm:$0xff]
      %v1834 = vld [vmem:[%s1782 + $0x198] sm:$0xff]
      %v1835 = vld [vmem:[%s1782 + $0x1a0] sm:$0xff]
      %v1836 = vld [vmem:[%s1782 + $0x1a8] sm:$0xff]
      %v1837 = vld [vmem:[%s1782 + $0x1b0] sm:$0xff]
      %v1838 = vld [vmem:[%s1782 + $0x1b8] sm:$0xff]
      %v1839 = vld [vmem:[%s1782 + $0x1c0] sm:$0xff]
      %v1840 = vld [vmem:[%s1782 + $0x1c8] sm:$0xff]
      %v1841 = vld [vmem:[%s1782 + $0x1d0] sm:$0xff]
      %v1842 = vld [vmem:[%s1782 + $0x1d8] sm:$0xff]
      %v1843 = vld [vmem:[%s1782 + $0x1e0] sm:$0xff]
      %v1844 = vld [vmem:[%s1782 + $0x1e8] sm:$0xff]
      %v1845 = vld [vmem:[%s1782 + $0x1f0] sm:$0xff]
      %v1846 = vld [vmem:[%s1782 + $0x1f8] sm:$0xff]
      %v1847 = vld [vmem:[%s1782 + $0x200] sm:$0xff]
      %v1848 = vld [vmem:[%s1782 + $0x208] sm:$0xff]
      %v1849 = vld [vmem:[%s1782 + $0x210] sm:$0xff]
      %v1850 = vld [vmem:[%s1782 + $0x218] sm:$0xff]
      %v1851 = vld [vmem:[%s1782 + $0x220] sm:$0xff]
      %v1852 = vld [vmem:[%s1782 + $0x228] sm:$0xff]
      %v1853 = vld [vmem:[%s1782 + $0x230] sm:$0xff]
      %v1854 = vld [vmem:[%s1782 + $0x238] sm:$0xff]
      %v1855 = vld [vmem:[%s1782 + $0x240] sm:$0xff]
      %v1856 = vld [vmem:[%s1782 + $0x248] sm:$0xff]
      %v1857 = vld [vmem:[%s1782 + $0x250] sm:$0xff]
      %v1858 = vld [vmem:[%s1782 + $0x258] sm:$0xff]
      %v1859 = vld [vmem:[%s1782 + $0x260] sm:$0xff]
      %v1860 = vld [vmem:[%s1782 + $0x268] sm:$0xff]
      %v1861 = vld [vmem:[%s1782 + $0x270] sm:$0xff]
      %v1862 = vld [vmem:[%s1782 + $0x278] sm:$0xff]
      %v1863 = vld [vmem:[%s1782 + $0x280] sm:$0xff]
      %v1864 = vld [vmem:[%s1782 + $0x288] sm:$0xff]
      %v1865 = vld [vmem:[%s1782 + $0x290] sm:$0xff]
      %v1866 = vld [vmem:[%s1782 + $0x298] sm:$0xff]
      %v1867 = vld [vmem:[%s1782 + $0x2a0] sm:$0xff]
      %v1868 = vld [vmem:[%s1782 + $0x2a8] sm:$0xff]
      %v1869 = vld [vmem:[%s1782 + $0x2b0] sm:$0xff]
      %v1870 = vld [vmem:[%s1782 + $0x2b8] sm:$0xff]
      %v1871 = vld [vmem:[%s1782 + $0x2c0] sm:$0xff]
      %v1872 = vld [vmem:[%s1782 + $0x2c8] sm:$0xff]
      %v1873 = vld [vmem:[%s1782 + $0x2d0] sm:$0xff]
      %v1874 = vld [vmem:[%s1782 + $0x2d8] sm:$0xff]
      %v1875 = vld [vmem:[%s1782 + $0x2e0] sm:$0xff]
      %v1876 = vld [vmem:[%s1782 + $0x2e8] sm:$0xff]
      %v1877 = vld [vmem:[%s1782 + $0x2f0] sm:$0xff]
      %v1878 = vld [vmem:[%s1782 + $0x2f8] sm:$0xff]
      %v1879 = vld [vmem:[%s1782 + $0x300] sm:$0xff]
      %v1880 = vld [vmem:[%s1782 + $0x308] sm:$0xff]
      %v1881 = vld [vmem:[%s1782 + $0x310] sm:$0xff]
      %v1882 = vld [vmem:[%s1782 + $0x318] sm:$0xff]
      %v1883 = vld [vmem:[%s1782 + $0x320] sm:$0xff]
      %v1884 = vld [vmem:[%s1782 + $0x328] sm:$0xff]
      %v1885 = vld [vmem:[%s1782 + $0x330] sm:$0xff]
      %v1886 = vld [vmem:[%s1782 + $0x338] sm:$0xff]
      %v1887 = vld [vmem:[%s1782 + $0x340] sm:$0xff]
      %v1888 = vld [vmem:[%s1782 + $0x348] sm:$0xff]
      %v1889 = vld [vmem:[%s1782 + $0x350] sm:$0xff]
      %v1890 = vld [vmem:[%s1782 + $0x358] sm:$0xff]
      %v1891 = vld [vmem:[%s1782 + $0x360] sm:$0xff]
      %v1892 = vld [vmem:[%s1782 + $0x368] sm:$0xff]
      %v1893 = vld [vmem:[%s1782 + $0x370] sm:$0xff]
      %v1894 = vld [vmem:[%s1782 + $0x378] sm:$0xff]
      %v2007 = vunpack.c.l.b16 %v1783
      %v2008 = vunpack.c.h.b16 %v1783
      %v2009 = vunpack.c.l.b16 %v1784
      %v2010 = vunpack.c.h.b16 %v1784
      %v2011 = vunpack.c.l.b16 %v1785
      %v2012 = vunpack.c.h.b16 %v1785
      %v2013 = vunpack.c.l.b16 %v1786
      %v2014 = vunpack.c.h.b16 %v1786
      %v2015 = vunpack.c.l.b16 %v1787
      %v2016 = vunpack.c.h.b16 %v1787
      %v2017 = vunpack.c.l.b16 %v1788
      %v2018 = vunpack.c.h.b16 %v1788
      %v2019 = vunpack.c.l.b16 %v1789
      %v2020 = vunpack.c.h.b16 %v1789
      %v2021 = vunpack.c.l.b16 %v1790
      %v2022 = vunpack.c.h.b16 %v1790
      %v2023 = vunpack.c.l.b16 %v1791
      %v2024 = vunpack.c.h.b16 %v1791
      %v2025 = vunpack.c.l.b16 %v1792
      %v2026 = vunpack.c.h.b16 %v1792
      %v2027 = vunpack.c.l.b16 %v1793
      %v2028 = vunpack.c.h.b16 %v1793
      %v2029 = vunpack.c.l.b16 %v1794
      %v2030 = vunpack.c.h.b16 %v1794
      %v2031 = vunpack.c.l.b16 %v1795
      %v2032 = vunpack.c.h.b16 %v1795
      %v2033 = vunpack.c.l.b16 %v1796
      %v2034 = vunpack.c.h.b16 %v1796
      %v2035 = vunpack.c.l.b16 %v1797
      %v2036 = vunpack.c.h.b16 %v1797
      %v2037 = vunpack.c.l.b16 %v1798
      %v2038 = vunpack.c.h.b16 %v1798
      %v2039 = vunpack.c.l.b16 %v1799
      %v2040 = vunpack.c.h.b16 %v1799
      %v2041 = vunpack.c.l.b16 %v1800
      %v2042 = vunpack.c.h.b16 %v1800
      %v2043 = vunpack.c.l.b16 %v1801
      %v2044 = vunpack.c.h.b16 %v1801
      %v2045 = vunpack.c.l.b16 %v1802
      %v2046 = vunpack.c.h.b16 %v1802
      %v2047 = vunpack.c.l.b16 %v1803
      %v2048 = vunpack.c.h.b16 %v1803
      %v2049 = vunpack.c.l.b16 %v1804
      %v2050 = vunpack.c.h.b16 %v1804
      %v2051 = vunpack.c.l.b16 %v1805
      %v2052 = vunpack.c.h.b16 %v1805
      %v2053 = vunpack.c.l.b16 %v1806
      %v2054 = vunpack.c.h.b16 %v1806
      %v2055 = vunpack.c.l.b16 %v1807
      %v2056 = vunpack.c.h.b16 %v1807
      %v2057 = vunpack.c.l.b16 %v1808
      %v2058 = vunpack.c.h.b16 %v1808
      %v2059 = vunpack.c.l.b16 %v1809
      %v2060 = vunpack.c.h.b16 %v1809
      %v2061 = vunpack.c.l.b16 %v1810
      %v2062 = vunpack.c.h.b16 %v1810
      %v2063 = vunpack.c.l.b16 %v1811
      %v2064 = vunpack.c.h.b16 %v1811
      %v2065 = vunpack.c.l.b16 %v1812
      %v2066 = vunpack.c.h.b16 %v1812
      %v2067 = vunpack.c.l.b16 %v1813
      %v2068 = vunpack.c.h.b16 %v1813
      %v2069 = vunpack.c.l.b16 %v1814
      %v2070 = vunpack.c.h.b16 %v1814
      %v2071 = vunpack.c.l.b16 %v1815
      %v2072 = vunpack.c.h.b16 %v1815
      %v2073 = vunpack.c.l.b16 %v1816
      %v2074 = vunpack.c.h.b16 %v1816
      %v2075 = vunpack.c.l.b16 %v1817
      %v2076 = vunpack.c.h.b16 %v1817
      %v2077 = vunpack.c.l.b16 %v1818
      %v2078 = vunpack.c.h.b16 %v1818
      %v2079 = vunpack.c.l.b16 %v1819
      %v2080 = vunpack.c.h.b16 %v1819
      %v2081 = vunpack.c.l.b16 %v1820
      %v2082 = vunpack.c.h.b16 %v1820
      %v2083 = vunpack.c.l.b16 %v1821
      %v2084 = vunpack.c.h.b16 %v1821
      %v2085 = vunpack.c.l.b16 %v1822
      %v2086 = vunpack.c.h.b16 %v1822
      %v2087 = vunpack.c.l.b16 %v1823
      %v2088 = vunpack.c.h.b16 %v1823
      %v2089 = vunpack.c.l.b16 %v1824
      %v2090 = vunpack.c.h.b16 %v1824
      %v2091 = vunpack.c.l.b16 %v1825
      %v2092 = vunpack.c.h.b16 %v1825
      %v2093 = vunpack.c.l.b16 %v1826
      %v2094 = vunpack.c.h.b16 %v1826
      %v2095 = vunpack.c.l.b16 %v1827
      %v2096 = vunpack.c.h.b16 %v1827
      %v2097 = vunpack.c.l.b16 %v1828
      %v2098 = vunpack.c.h.b16 %v1828
      %v2099 = vunpack.c.l.b16 %v1829
      %v2100 = vunpack.c.h.b16 %v1829
      %v2101 = vunpack.c.l.b16 %v1830
      %v2102 = vunpack.c.h.b16 %v1830
      %v2103 = vunpack.c.l.b16 %v1831
      %v2104 = vunpack.c.h.b16 %v1831
      %v2105 = vunpack.c.l.b16 %v1832
      %v2106 = vunpack.c.h.b16 %v1832
      %v2107 = vunpack.c.l.b16 %v1833
      %v2108 = vunpack.c.h.b16 %v1833
      %v2109 = vunpack.c.l.b16 %v1834
      %v2110 = vunpack.c.h.b16 %v1834
      %v2111 = vunpack.c.l.b16 %v1835
      %v2112 = vunpack.c.h.b16 %v1835
      %v2113 = vunpack.c.l.b16 %v1836
      %v2114 = vunpack.c.h.b16 %v1836
      %v2115 = vunpack.c.l.b16 %v1837
      %v2116 = vunpack.c.h.b16 %v1837
      %v2117 = vunpack.c.l.b16 %v1838
      %v2118 = vunpack.c.h.b16 %v1838
      %v2119 = vunpack.c.l.b16 %v1839
      %v2120 = vunpack.c.h.b16 %v1839
      %v2121 = vunpack.c.l.b16 %v1840
      %v2122 = vunpack.c.h.b16 %v1840
      %v2123 = vunpack.c.l.b16 %v1841
      %v2124 = vunpack.c.h.b16 %v1841
      %v2125 = vunpack.c.l.b16 %v1842
      %v2126 = vunpack.c.h.b16 %v1842
      %v2127 = vunpack.c.l.b16 %v1843
      %v2128 = vunpack.c.h.b16 %v1843
      %v2129 = vunpack.c.l.b16 %v1844
      %v2130 = vunpack.c.h.b16 %v1844
      %v2131 = vunpack.c.l.b16 %v1845
      %v2132 = vunpack.c.h.b16 %v1845
      %v2133 = vunpack.c.l.b16 %v1846
      %v2134 = vunpack.c.h.b16 %v1846
      %v2135 = vunpack.c.l.b16 %v1847
      %v2136 = vunpack.c.h.b16 %v1847
      %v2137 = vunpack.c.l.b16 %v1848
      %v2138 = vunpack.c.h.b16 %v1848
      %v2139 = vunpack.c.l.b16 %v1849
      %v2140 = vunpack.c.h.b16 %v1849
      %v2141 = vunpack.c.l.b16 %v1850
      %v2142 = vunpack.c.h.b16 %v1850
      %v2143 = vunpack.c.l.b16 %v1851
      %v2144 = vunpack.c.h.b16 %v1851
      %v2145 = vunpack.c.l.b16 %v1852
      %v2146 = vunpack.c.h.b16 %v1852
      %v2147 = vunpack.c.l.b16 %v1853
      %v2148 = vunpack.c.h.b16 %v1853
      %v2149 = vunpack.c.l.b16 %v1854
      %v2150 = vunpack.c.h.b16 %v1854
      %v2151 = vunpack.c.l.b16 %v1855
      %v2152 = vunpack.c.h.b16 %v1855
      %v2153 = vunpack.c.l.b16 %v1856
      %v2154 = vunpack.c.h.b16 %v1856
      %v2155 = vunpack.c.l.b16 %v1857
      %v2156 = vunpack.c.h.b16 %v1857
      %v2157 = vunpack.c.l.b16 %v1858
      %v2158 = vunpack.c.h.b16 %v1858
      %v2159 = vunpack.c.l.b16 %v1859
      %v2160 = vunpack.c.h.b16 %v1859
      %v2161 = vunpack.c.l.b16 %v1860
      %v2162 = vunpack.c.h.b16 %v1860
      %v2163 = vunpack.c.l.b16 %v1861
      %v2164 = vunpack.c.h.b16 %v1861
      %v2165 = vunpack.c.l.b16 %v1862
      %v2166 = vunpack.c.h.b16 %v1862
      %v2167 = vunpack.c.l.b16 %v1863
      %v2168 = vunpack.c.h.b16 %v1863
      %v2169 = vunpack.c.l.b16 %v1864
      %v2170 = vunpack.c.h.b16 %v1864
      %v2171 = vunpack.c.l.b16 %v1865
      %v2172 = vunpack.c.h.b16 %v1865
      %v2173 = vunpack.c.l.b16 %v1866
      %v2174 = vunpack.c.h.b16 %v1866
      %v2175 = vunpack.c.l.b16 %v1867
      %v2176 = vunpack.c.h.b16 %v1867
      %v2177 = vunpack.c.l.b16 %v1868
      %v2178 = vunpack.c.h.b16 %v1868
      %v2179 = vunpack.c.l.b16 %v1869
      %v2180 = vunpack.c.h.b16 %v1869
      %v2181 = vunpack.c.l.b16 %v1870
      %v2182 = vunpack.c.h.b16 %v1870
      %v2183 = vunpack.c.l.b16 %v1871
      %v2184 = vunpack.c.h.b16 %v1871
      %v2185 = vunpack.c.l.b16 %v1872
      %v2186 = vunpack.c.h.b16 %v1872
      %v2187 = vunpack.c.l.b16 %v1873
      %v2188 = vunpack.c.h.b16 %v1873
      %v2189 = vunpack.c.l.b16 %v1874
      %v2190 = vunpack.c.h.b16 %v1874
      %v2191 = vunpack.c.l.b16 %v1875
      %v2192 = vunpack.c.h.b16 %v1875
      %v2193 = vunpack.c.l.b16 %v1876
      %v2194 = vunpack.c.h.b16 %v1876
      %v2195 = vunpack.c.l.b16 %v1877
      %v2196 = vunpack.c.h.b16 %v1877
      %v2197 = vunpack.c.l.b16 %v1878
      %v2198 = vunpack.c.h.b16 %v1878
      %v2199 = vunpack.c.l.b16 %v1879
      %v2200 = vunpack.c.h.b16 %v1879
      %v2201 = vunpack.c.l.b16 %v1880
      %v2202 = vunpack.c.h.b16 %v1880
      %v2203 = vunpack.c.l.b16 %v1881
      %v2204 = vunpack.c.h.b16 %v1881
      %v2205 = vunpack.c.l.b16 %v1882
      %v2206 = vunpack.c.h.b16 %v1882
      %v2207 = vunpack.c.l.b16 %v1883
      %v2208 = vunpack.c.h.b16 %v1883
      %v2209 = vunpack.c.l.b16 %v1884
      %v2210 = vunpack.c.h.b16 %v1884
      %v2211 = vunpack.c.l.b16 %v1885
      %v2212 = vunpack.c.h.b16 %v1885
      %v2213 = vunpack.c.l.b16 %v1886
      %v2214 = vunpack.c.h.b16 %v1886
      %v2215 = vunpack.c.l.b16 %v1887
      %v2216 = vunpack.c.h.b16 %v1887
      %v2217 = vunpack.c.l.b16 %v1888
      %v2218 = vunpack.c.h.b16 %v1888
      %v2219 = vunpack.c.l.b16 %v1889
      %v2220 = vunpack.c.h.b16 %v1889
      %v2221 = vunpack.c.l.b16 %v1890
      %v2222 = vunpack.c.h.b16 %v1890
      %v2223 = vunpack.c.l.b16 %v1891
      %v2224 = vunpack.c.h.b16 %v1891
      %v2225 = vunpack.c.l.b16 %v1892
      %v2226 = vunpack.c.h.b16 %v1892
      %v2227 = vunpack.c.l.b16 %v1893
      %v2228 = vunpack.c.h.b16 %v1893
      %v2229 = vunpack.c.l.b16 %v1894
      %v2230 = vunpack.c.h.b16 %v1894
      %v2231 = vpack.c.b16 %v2011, %v2007
      %v2232 = vpack.c.b16 %v2012, %v2008
      %v2233 = vpack.c.b16 %v2013, %v2009
      %v2234 = vpack.c.b16 %v2014, %v2010
      %v2235 = vpack.c.b16 %v2019, %v2015
      %v2236 = vpack.c.b16 %v2020, %v2016
      %v2237 = vpack.c.b16 %v2021, %v2017
      %v2238 = vpack.c.b16 %v2022, %v2018
      %v2239 = vpack.c.b16 %v2027, %v2023
      %v2240 = vpack.c.b16 %v2028, %v2024
      %v2241 = vpack.c.b16 %v2029, %v2025
      %v2242 = vpack.c.b16 %v2030, %v2026
      %v2243 = vpack.c.b16 %v2035, %v2031
      %v2244 = vpack.c.b16 %v2036, %v2032
      %v2245 = vpack.c.b16 %v2037, %v2033
      %v2246 = vpack.c.b16 %v2038, %v2034
      %v2247 = vpack.c.b16 %v2043, %v2039
      %v2248 = vpack.c.b16 %v2044, %v2040
      %v2249 = vpack.c.b16 %v2045, %v2041
      %v2250 = vpack.c.b16 %v2046, %v2042
      %v2251 = vpack.c.b16 %v2051, %v2047
      %v2252 = vpack.c.b16 %v2052, %v2048
      %v2253 = vpack.c.b16 %v2053, %v2049
      %v2254 = vpack.c.b16 %v2054, %v2050
      %v2255 = vpack.c.b16 %v2059, %v2055
      %v2256 = vpack.c.b16 %v2060, %v2056
      %v2257 = vpack.c.b16 %v2061, %v2057
      %v2258 = vpack.c.b16 %v2062, %v2058
      %v2259 = vpack.c.b16 %v2067, %v2063
      %v2260 = vpack.c.b16 %v2068, %v2064
      %v2261 = vpack.c.b16 %v2069, %v2065
      %v2262 = vpack.c.b16 %v2070, %v2066
      %v2263 = vpack.c.b16 %v2075, %v2071
      %v2264 = vpack.c.b16 %v2076, %v2072
      %v2265 = vpack.c.b16 %v2077, %v2073
      %v2266 = vpack.c.b16 %v2078, %v2074
      %v2267 = vpack.c.b16 %v2083, %v2079
      %v2268 = vpack.c.b16 %v2084, %v2080
      %v2269 = vpack.c.b16 %v2085, %v2081
      %v2270 = vpack.c.b16 %v2086, %v2082
      %v2271 = vpack.c.b16 %v2091, %v2087
      %v2272 = vpack.c.b16 %v2092, %v2088
      %v2273 = vpack.c.b16 %v2093, %v2089
      %v2274 = vpack.c.b16 %v2094, %v2090
      %v2275 = vpack.c.b16 %v2099, %v2095
      %v2276 = vpack.c.b16 %v2100, %v2096
      %v2277 = vpack.c.b16 %v2101, %v2097
      %v2278 = vpack.c.b16 %v2102, %v2098
      %v2279 = vpack.c.b16 %v2107, %v2103
      %v2280 = vpack.c.b16 %v2108, %v2104
      %v2281 = vpack.c.b16 %v2109, %v2105
      %v2282 = vpack.c.b16 %v2110, %v2106
      %v2283 = vpack.c.b16 %v2115, %v2111
      %v2284 = vpack.c.b16 %v2116, %v2112
      %v2285 = vpack.c.b16 %v2117, %v2113
      %v2286 = vpack.c.b16 %v2118, %v2114
      %v2287 = vpack.c.b16 %v2123, %v2119
      %v2288 = vpack.c.b16 %v2124, %v2120
      %v2289 = vpack.c.b16 %v2125, %v2121
      %v2290 = vpack.c.b16 %v2126, %v2122
      %v2291 = vpack.c.b16 %v2131, %v2127
      %v2292 = vpack.c.b16 %v2132, %v2128
      %v2293 = vpack.c.b16 %v2133, %v2129
      %v2294 = vpack.c.b16 %v2134, %v2130
      %v2295 = vpack.c.b16 %v2139, %v2135
      %v2296 = vpack.c.b16 %v2140, %v2136
      %v2297 = vpack.c.b16 %v2141, %v2137
      %v2298 = vpack.c.b16 %v2142, %v2138
      %v2299 = vpack.c.b16 %v2147, %v2143
      %v2300 = vpack.c.b16 %v2148, %v2144
      %v2301 = vpack.c.b16 %v2149, %v2145
      %v2302 = vpack.c.b16 %v2150, %v2146
      %v2303 = vpack.c.b16 %v2155, %v2151
      %v2304 = vpack.c.b16 %v2156, %v2152
      %v2305 = vpack.c.b16 %v2157, %v2153
      %v2306 = vpack.c.b16 %v2158, %v2154
      %v2307 = vpack.c.b16 %v2163, %v2159
      %v2308 = vpack.c.b16 %v2164, %v2160
      %v2309 = vpack.c.b16 %v2165, %v2161
      %v2310 = vpack.c.b16 %v2166, %v2162
      %v2311 = vpack.c.b16 %v2171, %v2167
      %v2312 = vpack.c.b16 %v2172, %v2168
      %v2313 = vpack.c.b16 %v2173, %v2169
      %v2314 = vpack.c.b16 %v2174, %v2170
      %v2315 = vpack.c.b16 %v2179, %v2175
      %v2316 = vpack.c.b16 %v2180, %v2176
      %v2317 = vpack.c.b16 %v2181, %v2177
      %v2318 = vpack.c.b16 %v2182, %v2178
      %v2319 = vpack.c.b16 %v2187, %v2183
      %v2320 = vpack.c.b16 %v2188, %v2184
      %v2321 = vpack.c.b16 %v2189, %v2185
      %v2322 = vpack.c.b16 %v2190, %v2186
      %v2323 = vpack.c.b16 %v2195, %v2191
      %v2324 = vpack.c.b16 %v2196, %v2192
      %v2325 = vpack.c.b16 %v2197, %v2193
      %v2326 = vpack.c.b16 %v2198, %v2194
      %v2327 = vpack.c.b16 %v2203, %v2199
      %v2328 = vpack.c.b16 %v2204, %v2200
      %v2329 = vpack.c.b16 %v2205, %v2201
      %v2330 = vpack.c.b16 %v2206, %v2202
      %v2331 = vpack.c.b16 %v2211, %v2207
      %v2332 = vpack.c.b16 %v2212, %v2208
      %v2333 = vpack.c.b16 %v2213, %v2209
      %v2334 = vpack.c.b16 %v2214, %v2210
      %v2335 = vpack.c.b16 %v2219, %v2215
      %v2336 = vpack.c.b16 %v2220, %v2216
      %v2337 = vpack.c.b16 %v2221, %v2217
      %v2338 = vpack.c.b16 %v2222, %v2218
      %v2339 = vpack.c.b16 %v2227, %v2223
      %v2340 = vpack.c.b16 %v2228, %v2224
      %v2341 = vpack.c.b16 %v2229, %v2225
      %v2342 = vpack.c.b16 %v2230, %v2226
      %v2456 = vsel %vm655, %v1750, 0
      %2458 = vmatprep.subr.bf16.mxu0 %v2232
      %2459 = vmatpush1.bf16.msra.mxu0 %v2231
      %2460 = vmatprep.subr.bf16.mxu0 %v2236
      %2461 = vmatpush1.bf16.msra.mxu0 %v2235
      %2462 = vmatprep.subr.bf16.mxu0 %v2240
      %2463 = vmatpush1.bf16.msra.mxu0 %v2239
      %2464 = vmatprep.subr.bf16.mxu0 %v2244
      %2465 = vmatpush1.bf16.msra.mxu0 %v2243
      %2466 = vmatprep.subr.bf16.mxu0 %v2248
      %2467 = vmatpush1.bf16.msra.mxu0 %v2247
      %2468 = vmatprep.subr.bf16.mxu0 %v2252
      %2469 = vmatpush1.bf16.msra.mxu0 %v2251
      %2470 = vmatprep.subr.bf16.mxu0 %v2256
      %2471 = vmatpush1.bf16.msra.mxu0 %v2255
      %2472 = vmatprep.subr.bf16.mxu0 %v2260
      %2473 = vmatpush1.bf16.msra.mxu0 %v2259
      %2474 = vmatprep.subr.bf16.mxu0 %v2264
      %2475 = vmatpush1.bf16.msra.mxu0 %v2263
      %2476 = vmatprep.subr.bf16.mxu0 %v2268
      %2477 = vmatpush1.bf16.msra.mxu0 %v2267
      %2478 = vmatprep.subr.bf16.mxu0 %v2272
      %2479 = vmatpush1.bf16.msra.mxu0 %v2271
      %2480 = vmatprep.subr.bf16.mxu0 %v2276
      %2481 = vmatpush1.bf16.msra.mxu0 %v2275
      %2482 = vmatprep.subr.bf16.mxu0 %v2280
      %2483 = vmatpush1.bf16.msra.mxu0 %v2279
      %2484 = vmatprep.subr.bf16.mxu0 %v2284
      %2485 = vmatpush1.bf16.msra.mxu0 %v2283
      %2486 = vmatprep.subr.bf16.mxu0 %v2288
      %2487 = vmatpush1.bf16.msra.mxu0 %v2287
      %2488 = vmatprep.subr.bf16.mxu0 %v2292
      %2489 = vmatpush1.bf16.msra.mxu0 %v2291
      %2490 = vmatprep.mubr.bf16.mxu0 %v1766
      %2491 = vmatmul.mubr.bf16.gmra.mrb[0].mxu0 %v1762
      %v2492 = vpop.f32.mrb[0].mxu0
      %v2493 = vadd.f32 0.0, %v2492
      %v2494 = vpop.f32.mrb[0].mxu0
      %v2495 = vadd.f32 0.0, %v2494
      %v2496 = vpop.f32.mrb[0].mxu0
      %v2497 = vadd.f32 0.0, %v2496
      %v2498 = vpop.f32.mrb[0].mxu0
      %v2499 = vadd.f32 0.0, %v2498
      %2500 = vdwg.mxu0
      %2501 = vmatprep.subr.bf16.mxu0 %v2296
      %2502 = vmatpush1.bf16.msra.mxu0 %v2295
      %2503 = vmatprep.subr.bf16.mxu0 %v2300
      %2504 = vmatpush1.bf16.msra.mxu0 %v2299
      %2505 = vmatprep.subr.bf16.mxu0 %v2304
      %2506 = vmatpush1.bf16.msra.mxu0 %v2303
      %2507 = vmatprep.subr.bf16.mxu0 %v2308
      %2508 = vmatpush1.bf16.msra.mxu0 %v2307
      %2509 = vmatprep.subr.bf16.mxu0 %v2312
      %2510 = vmatpush1.bf16.msra.mxu0 %v2311
      %2511 = vmatprep.subr.bf16.mxu0 %v2316
      %2512 = vmatpush1.bf16.msra.mxu0 %v2315
      %2513 = vmatprep.subr.bf16.mxu0 %v2320
      %2514 = vmatpush1.bf16.msra.mxu0 %v2319
      %2515 = vmatprep.subr.bf16.mxu0 %v2324
      %2516 = vmatpush1.bf16.msra.mxu0 %v2323
      %2517 = vmatprep.subr.bf16.mxu0 %v2328
      %2518 = vmatpush1.bf16.msra.mxu0 %v2327
      %2519 = vmatprep.subr.bf16.mxu0 %v2332
      %2520 = vmatpush1.bf16.msra.mxu0 %v2331
      %2521 = vmatprep.subr.bf16.mxu0 %v2336
      %2522 = vmatpush1.bf16.msra.mxu0 %v2335
      %2523 = vmatprep.subr.bf16.mxu0 %v2340
      %2524 = vmatpush1.bf16.msra.mxu0 %v2339
      %2525 = vmatprep.subr.bf16.mxu0 0
      %2526 = vmatpush1.bf16.msra.mxu0 0
      %2527 = vmatprep.subr.bf16.mxu0 0
      %2528 = vmatpush1.bf16.msra.mxu0 0
      %2529 = vmatprep.subr.bf16.mxu0 0
      %2530 = vmatpush1.bf16.msra.mxu0 0
      %2531 = vmatprep.subr.bf16.mxu0 0
      %2532 = vmatpush1.bf16.msra.mxu0 0
      %2533 = vmatprep.mubr.bf16.mxu0 %v2456
      %2534 = vmatmul.mubr.bf16.gmra.mrb[0].mxu0 %v1770
      %v2535 = vpop.f32.mrb[0].mxu0
      %v2536 = vadd.f32 %v2493, %v2535
      %v2537 = vpop.f32.mrb[0].mxu0
      %v2538 = vadd.f32 %v2495, %v2537
      %v2539 = vpop.f32.mrb[0].mxu0
      %v2540 = vadd.f32 %v2497, %v2539
      %v2541 = vpop.f32.mrb[0].mxu0
      %v2542 = vadd.f32 %v2499, %v2541
      %2543 = vdwg.mxu0
      %2544 = vmatprep.subr.bf16.mxu0 %v2234
      %2545 = vmatpush1.bf16.msra.mxu0 %v2233
      %2546 = vmatprep.subr.bf16.mxu0 %v2238
      %2547 = vmatpush1.bf16.msra.mxu0 %v2237
      %2548 = vmatprep.subr.bf16.mxu0 %v2242
      %2549 = vmatpush1.bf16.msra.mxu0 %v2241
      %2550 = vmatprep.subr.bf16.mxu0 %v2246
      %2551 = vmatpush1.bf16.msra.mxu0 %v2245
      %2552 = vmatprep.subr.bf16.mxu0 %v2250
      %2553 = vmatpush1.bf16.msra.mxu0 %v2249
      %2554 = vmatprep.subr.bf16.mxu0 %v2254
      %2555 = vmatpush1.bf16.msra.mxu0 %v2253
      %2556 = vmatprep.subr.bf16.mxu0 %v2258
      %2557 = vmatpush1.bf16.msra.mxu0 %v2257
      %2558 = vmatprep.subr.bf16.mxu0 %v2262
      %2559 = vmatpush1.bf16.msra.mxu0 %v2261
      %2560 = vmatprep.subr.bf16.mxu0 %v2266
      %2561 = vmatpush1.bf16.msra.mxu0 %v2265
      %2562 = vmatprep.subr.bf16.mxu0 %v2270
      %2563 = vmatpush1.bf16.msra.mxu0 %v2269
      %2564 = vmatprep.subr.bf16.mxu0 %v2274
      %2565 = vmatpush1.bf16.msra.mxu0 %v2273
      %2566 = vmatprep.subr.bf16.mxu0 %v2278
      %2567 = vmatpush1.bf16.msra.mxu0 %v2277
      %2568 = vmatprep.subr.bf16.mxu0 %v2282
      %2569 = vmatpush1.bf16.msra.mxu0 %v2281
      %2570 = vmatprep.subr.bf16.mxu0 %v2286
      %2571 = vmatpush1.bf16.msra.mxu0 %v2285
      %2572 = vmatprep.subr.bf16.mxu0 %v2290
      %2573 = vmatpush1.bf16.msra.mxu0 %v2289
      %2574 = vmatprep.subr.bf16.mxu0 %v2294
      %2575 = vmatpush1.bf16.msra.mxu0 %v2293
      %2576 = vmatprep.mubr.bf16.mxu0 %v1766
      %2577 = vmatmul.mubr.bf16.gmra.mrb[0].mxu0 %v1762
      %v2578 = vpop.f32.mrb[0].mxu0
      %v2579 = vadd.f32 0.0, %v2578
      %v2580 = vpop.f32.mrb[0].mxu0
      %v2581 = vadd.f32 0.0, %v2580
      %v2582 = vpop.f32.mrb[0].mxu0
      %v2583 = vadd.f32 0.0, %v2582
      %v2584 = vpop.f32.mrb[0].mxu0
      %v2585 = vadd.f32 0.0, %v2584
      %2586 = vdwg.mxu0
      %2587 = vmatprep.subr.bf16.mxu0 %v2298
      %2588 = vmatpush1.bf16.msra.mxu0 %v2297
      %2589 = vmatprep.subr.bf16.mxu0 %v2302
      %2590 = vmatpush1.bf16.msra.mxu0 %v2301
      %2591 = vmatprep.subr.bf16.mxu0 %v2306
      %2592 = vmatpush1.bf16.msra.mxu0 %v2305
      %2593 = vmatprep.subr.bf16.mxu0 %v2310
      %2594 = vmatpush1.bf16.msra.mxu0 %v2309
      %2595 = vmatprep.subr.bf16.mxu0 %v2314
      %2596 = vmatpush1.bf16.msra.mxu0 %v2313
      %2597 = vmatprep.subr.bf16.mxu0 %v2318
      %2598 = vmatpush1.bf16.msra.mxu0 %v2317
      %2599 = vmatprep.subr.bf16.mxu0 %v2322
      %2600 = vmatpush1.bf16.msra.mxu0 %v2321
      %2601 = vmatprep.subr.bf16.mxu0 %v2326
      %2602 = vmatpush1.bf16.msra.mxu0 %v2325
      %2603 = vmatprep.subr.bf16.mxu0 %v2330
      %2604 = vmatpush1.bf16.msra.mxu0 %v2329
      %2605 = vmatprep.subr.bf16.mxu0 %v2334
      %2606 = vmatpush1.bf16.msra.mxu0 %v2333
      %2607 = vmatprep.subr.bf16.mxu0 %v2338
      %2608 = vmatpush1.bf16.msra.mxu0 %v2337
      %2609 = vmatprep.subr.bf16.mxu0 %v2342
      %2610 = vmatpush1.bf16.msra.mxu0 %v2341
      %2611 = vmatprep.subr.bf16.mxu0 0
      %2612 = vmatpush1.bf16.msra.mxu0 0
      %2613 = vmatprep.subr.bf16.mxu0 0
      %2614 = vmatpush1.bf16.msra.mxu0 0
      %2615 = vmatprep.subr.bf16.mxu0 0
      %2616 = vmatpush1.bf16.msra.mxu0 0
      %2617 = vmatprep.subr.bf16.mxu0 0
      %2618 = vmatpush1.bf16.msra.mxu0 0
      %2619 = vmatprep.mubr.bf16.mxu0 %v2456
      %2620 = vmatmul.mubr.bf16.gmra.mrb[0].mxu0 %v1770
      %v2621 = vpop.f32.mrb[0].mxu0
      %v2622 = vadd.f32 %v2579, %v2621
      %v2623 = vpop.f32.mrb[0].mxu0
      %v2624 = vadd.f32 %v2581, %v2623
      %v2625 = vpop.f32.mrb[0].mxu0
      %v2626 = vadd.f32 %v2583, %v2625
      %v2627 = vpop.f32.mrb[0].mxu0
      %v2628 = vadd.f32 %v2585, %v2627
      %2629 = vdwg.mxu0
      %v2630 = vadd.f32 %v1772, %v2536
      %v2631 = vadd.f32 %v1773, %v2538
      %v2632 = vadd.f32 %v1774, %v2622
      %v2633 = vadd.f32 %v1775, %v2624
      %v2634 = vadd.f32 %v1776, %v2540
      %v2635 = vadd.f32 %v1777, %v2542
      %v2636 = vadd.f32 %v1778, %v2626
      %v2637 = vadd.f32 %v1779, %v2628
      %2638 = vst [vmem:[#allocation2] sm:$0xff] %v2630
      %2639 = vst [vmem:[#allocation2 + $0x8] sm:$0xff] %v2631
      %2640 = vst [vmem:[#allocation2 + $0x10] sm:$0xff] %v2632
      %2641 = vst [vmem:[#allocation2 + $0x18] sm:$0xff] %v2633
      %2642 = vst [vmem:[#allocation2 + $0x20] sm:$0xff] %v2634
      %2643 = vst [vmem:[#allocation2 + $0x28] sm:$0xff] %v2635
      %2644 = vst [vmem:[#allocation2 + $0x30] sm:$0xff] %v2636
      %2645 = vst [vmem:[#allocation2 + $0x38] sm:$0xff] %v2637
      %p2646 = scmp.eq.s32.totalorder %s23, 6
      // Predicated region
      $region53: #{qnetwork_forward.5} parent=47 // pred_check
        %p2647 = pneg %p2646
      $region54: #{qnetwork_forward.5} parent=47 // pred_check_branch
        %2649 = sbr.rel (%p2647) target = $region56
      $region55: #{qnetwork_forward.5} parent=47 // pred_region
        %v2650 = vld [vmem:[#allocation2] sm:$0xff]
        %v2651 = vld [vmem:[#allocation2 + $0x8] sm:$0xff]
        %v2652 = vld [vmem:[#allocation2 + $0x10] sm:$0xff]
        %v2653 = vld [vmem:[#allocation2 + $0x18] sm:$0xff]
        %v2654 = vld [vmem:[#allocation2 + $0x20] sm:$0xff]
        %v2655 = vld [vmem:[#allocation2 + $0x28] sm:$0xff]
        %v2656 = vld [vmem:[#allocation2 + $0x30] sm:$0xff]
        %v2657 = vld [vmem:[#allocation2 + $0x38] sm:$0xff]
        %v2658 = vld [vmem:[%s4] sm:$0xf]
        %v2660 = vlaneseq
        %v2661 = vshrl.u32 %v2660, 7
        %v2662 = vsub.s32 0, %v2661
        %v2663 = vrot.slane %v2658, %v2662
        %v2664 = vlaneseq
        %v2665 = vshrl.u32 %v2664, 7
        %v2666 = vsub.s32 1, %v2665
        %v2667 = vrot.slane %v2658, %v2666
        %v2668 = vlaneseq
        %v2669 = vshrl.u32 %v2668, 7
        %v2670 = vsub.s32 2, %v2669
        %v2671 = vrot.slane %v2658, %v2670
        %v2672 = vlaneseq
        %v2673 = vshrl.u32 %v2672, 7
        %v2674 = vsub.s32 3, %v2673
        %v2675 = vrot.slane %v2658, %v2674
        %v2680 = vadd.f32 %v2650, %v2663
        %v2681 = vadd.f32 %v2651, %v2667
        %v2682 = vadd.f32 %v2652, %v2671
        %v2683 = vadd.f32 %v2653, %v2675
        %v2684 = vadd.f32 %v2654, %v2663
        %v2685 = vadd.f32 %v2655, %v2667
        %v2686 = vadd.f32 %v2656, %v2671
        %v2687 = vadd.f32 %v2657, %v2675
        %v2688 = vmax.f32 %v2680, 0.0
        %v2689 = vmax.f32 %v2681, 0.0
        %v2690 = vmax.f32 %v2682, 0.0
        %v2691 = vmax.f32 %v2683, 0.0
        %v2692 = vmax.f32 %v2684, 0.0
        %v2693 = vmax.f32 %v2685, 0.0
        %v2694 = vmax.f32 %v2686, 0.0
        %v2695 = vmax.f32 %v2687, 0.0
        %v2696 = vpack.c.bf16 %v2692, %v2688
        %v2697 = vpack.c.bf16 %v2693, %v2689
        %v2698 = vpack.c.bf16 %v2694, %v2690
        %v2699 = vpack.c.bf16 %v2695, %v2691
        %v2700 = vld [vmem:[%s5] sm:$0xf]
        %v2701 = vld [vmem:[%s5 + $0x4] sm:$0xf]
        %v2702 = vld [vmem:[%s5 + $0x8] sm:$0xf]
        %v2703 = vld [vmem:[%s5 + $0xc] sm:$0xf]
        %v2704 = vld [vmem:[%s5 + $0x10] sm:$0xf]
        %v2705 = vld [vmem:[%s5 + $0x14] sm:$0xf]
        %v2706 = vld [vmem:[%s5 + $0x18] sm:$0xf]
        %v2707 = vld [vmem:[%s5 + $0x1c] sm:$0xf]
        %v2708 = vld [vmem:[%s5 + $0x20] sm:$0xf]
        %v2709 = vld [vmem:[%s5 + $0x24] sm:$0xf]
        %v2710 = vld [vmem:[%s5 + $0x28] sm:$0xf]
        %v2711 = vld [vmem:[%s5 + $0x2c] sm:$0xf]
        %v2712 = vld [vmem:[%s5 + $0x30] sm:$0xf]
        %v2713 = vld [vmem:[%s5 + $0x34] sm:$0xf]
        %v2714 = vld [vmem:[%s5 + $0x38] sm:$0xf]
        %v2715 = vld [vmem:[%s5 + $0x3c] sm:$0xf]
        %v2716 = vld [vmem:[%s5 + $0x40] sm:$0xf]
        %v2717 = vld [vmem:[%s5 + $0x44] sm:$0xf]
        %v2718 = vld [vmem:[%s5 + $0x48] sm:$0xf]
        %v2719 = vld [vmem:[%s5 + $0x4c] sm:$0xf]
        %v2720 = vld [vmem:[%s5 + $0x50] sm:$0xf]
        %v2721 = vld [vmem:[%s5 + $0x54] sm:$0xf]
        %v2722 = vld [vmem:[%s5 + $0x58] sm:$0xf]
        %v2723 = vld [vmem:[%s5 + $0x5c] sm:$0xf]
        %v2724 = vld [vmem:[%s5 + $0x60] sm:$0xf]
        %v2725 = vld [vmem:[%s5 + $0x64] sm:$0xf]
        %v2726 = vld [vmem:[%s5 + $0x68] sm:$0xf]
        %v2727 = vld [vmem:[%s5 + $0x6c] sm:$0xf]
        %v2728 = vld [vmem:[%s5 + $0x70] sm:$0xf]
        %v2729 = vld [vmem:[%s5 + $0x74] sm:$0xf]
        %v2730 = vld [vmem:[%s5 + $0x78] sm:$0xf]
        %v2731 = vld [vmem:[%s5 + $0x7c] sm:$0xf]
        %v2732 = vld [vmem:[%s5 + $0x80] sm:$0xf]
        %v2733 = vld [vmem:[%s5 + $0x84] sm:$0xf]
        %v2734 = vld [vmem:[%s5 + $0x88] sm:$0xf]
        %v2735 = vld [vmem:[%s5 + $0x8c] sm:$0xf]
        %v2736 = vld [vmem:[%s5 + $0x90] sm:$0xf]
        %v2737 = vld [vmem:[%s5 + $0x94] sm:$0xf]
        %v2738 = vld [vmem:[%s5 + $0x98] sm:$0xf]
        %v2739 = vld [vmem:[%s5 + $0x9c] sm:$0xf]
        %v2740 = vld [vmem:[%s5 + $0xa0] sm:$0xf]
        %v2741 = vld [vmem:[%s5 + $0xa4] sm:$0xf]
        %v2742 = vld [vmem:[%s5 + $0xa8] sm:$0xf]
        %v2743 = vld [vmem:[%s5 + $0xac] sm:$0xf]
        %v2744 = vld [vmem:[%s5 + $0xb0] sm:$0xf]
        %v2745 = vld [vmem:[%s5 + $0xb4] sm:$0xf]
        %v2746 = vld [vmem:[%s5 + $0xb8] sm:$0xf]
        %v2747 = vld [vmem:[%s5 + $0xbc] sm:$0xf]
        %v2748 = vld [vmem:[%s5 + $0xc0] sm:$0xf]
        %v2749 = vld [vmem:[%s5 + $0xc4] sm:$0xf]
        %v2750 = vld [vmem:[%s5 + $0xc8] sm:$0xf]
        %v2751 = vld [vmem:[%s5 + $0xcc] sm:$0xf]
        %v2752 = vld [vmem:[%s5 + $0xd0] sm:$0xf]
        %v2753 = vld [vmem:[%s5 + $0xd4] sm:$0xf]
        %v2754 = vld [vmem:[%s5 + $0xd8] sm:$0xf]
        %v2755 = vld [vmem:[%s5 + $0xdc] sm:$0xf]
        %v2756 = vld [vmem:[%s5 + $0xe0] sm:$0xf]
        %v2757 = vld [vmem:[%s5 + $0xe4] sm:$0xf]
        %v2758 = vld [vmem:[%s5 + $0xe8] sm:$0xf]
        %v2759 = vld [vmem:[%s5 + $0xec] sm:$0xf]
        %v2760 = vld [vmem:[%s5 + $0xf0] sm:$0xf]
        %v2761 = vld [vmem:[%s5 + $0xf4] sm:$0xf]
        %v2762 = vld [vmem:[%s5 + $0xf8] sm:$0xf]
        %v2763 = vld [vmem:[%s5 + $0xfc] sm:$0xf]
        %v2764 = vld [vmem:[%s6] sm:$0x1]
        %v2766 = vlaneseq
        %v2767 = vshrl.u32 %v2766, 7
        %v2768 = vsub.s32 0, %v2767
        %v2769 = vrot.slane %v2764, %v2768
        %v2835 = vunpack.c.l.b16 %v2700
        %v2836 = vunpack.c.l.b16 %v2701
        %v2837 = vunpack.c.l.b16 %v2702
        %v2838 = vunpack.c.l.b16 %v2703
        %v2839 = vunpack.c.l.b16 %v2704
        %v2840 = vunpack.c.l.b16 %v2705
        %v2841 = vunpack.c.l.b16 %v2706
        %v2842 = vunpack.c.l.b16 %v2707
        %v2843 = vunpack.c.l.b16 %v2708
        %v2844 = vunpack.c.l.b16 %v2709
        %v2845 = vunpack.c.l.b16 %v2710
        %v2846 = vunpack.c.l.b16 %v2711
        %v2847 = vunpack.c.l.b16 %v2712
        %v2848 = vunpack.c.l.b16 %v2713
        %v2849 = vunpack.c.l.b16 %v2714
        %v2850 = vunpack.c.l.b16 %v2715
        %v2851 = vunpack.c.l.b16 %v2716
        %v2852 = vunpack.c.l.b16 %v2717
        %v2853 = vunpack.c.l.b16 %v2718
        %v2854 = vunpack.c.l.b16 %v2719
        %v2855 = vunpack.c.l.b16 %v2720
        %v2856 = vunpack.c.l.b16 %v2721
        %v2857 = vunpack.c.l.b16 %v2722
        %v2858 = vunpack.c.l.b16 %v2723
        %v2859 = vunpack.c.l.b16 %v2724
        %v2860 = vunpack.c.l.b16 %v2725
        %v2861 = vunpack.c.l.b16 %v2726
        %v2862 = vunpack.c.l.b16 %v2727
        %v2863 = vunpack.c.l.b16 %v2728
        %v2864 = vunpack.c.l.b16 %v2729
        %v2865 = vunpack.c.l.b16 %v2730
        %v2866 = vunpack.c.l.b16 %v2731
        %v2867 = vunpack.c.l.b16 %v2732
        %v2868 = vunpack.c.l.b16 %v2733
        %v2869 = vunpack.c.l.b16 %v2734
        %v2870 = vunpack.c.l.b16 %v2735
        %v2871 = vunpack.c.l.b16 %v2736
        %v2872 = vunpack.c.l.b16 %v2737
        %v2873 = vunpack.c.l.b16 %v2738
        %v2874 = vunpack.c.l.b16 %v2739
        %v2875 = vunpack.c.l.b16 %v2740
        %v2876 = vunpack.c.l.b16 %v2741
        %v2877 = vunpack.c.l.b16 %v2742
        %v2878 = vunpack.c.l.b16 %v2743
        %v2879 = vunpack.c.l.b16 %v2744
        %v2880 = vunpack.c.l.b16 %v2745
        %v2881 = vunpack.c.l.b16 %v2746
        %v2882 = vunpack.c.l.b16 %v2747
        %v2883 = vunpack.c.l.b16 %v2748
        %v2884 = vunpack.c.l.b16 %v2749
        %v2885 = vunpack.c.l.b16 %v2750
        %v2886 = vunpack.c.l.b16 %v2751
        %v2887 = vunpack.c.l.b16 %v2752
        %v2888 = vunpack.c.l.b16 %v2753
        %v2889 = vunpack.c.l.b16 %v2754
        %v2890 = vunpack.c.l.b16 %v2755
        %v2891 = vunpack.c.l.b16 %v2756
        %v2892 = vunpack.c.l.b16 %v2757
        %v2893 = vunpack.c.l.b16 %v2758
        %v2894 = vunpack.c.l.b16 %v2759
        %v2895 = vunpack.c.l.b16 %v2760
        %v2896 = vunpack.c.l.b16 %v2761
        %v2897 = vunpack.c.l.b16 %v2762
        %v2898 = vunpack.c.l.b16 %v2763
        %v2899 = vpack.c.b16 %v2836, %v2835
        %v2900 = vpack.c.b16 %v2838, %v2837
        %v2901 = vpack.c.b16 %v2840, %v2839
        %v2902 = vpack.c.b16 %v2842, %v2841
        %v2903 = vpack.c.b16 %v2844, %v2843
        %v2904 = vpack.c.b16 %v2846, %v2845
        %v2905 = vpack.c.b16 %v2848, %v2847
        %v2906 = vpack.c.b16 %v2850, %v2849
        %v2907 = vpack.c.b16 %v2852, %v2851
        %v2908 = vpack.c.b16 %v2854, %v2853
        %v2909 = vpack.c.b16 %v2856, %v2855
        %v2910 = vpack.c.b16 %v2858, %v2857
        %v2911 = vpack.c.b16 %v2860, %v2859
        %v2912 = vpack.c.b16 %v2862, %v2861
        %v2913 = vpack.c.b16 %v2864, %v2863
        %v2914 = vpack.c.b16 %v2866, %v2865
        %v2915 = vpack.c.b16 %v2868, %v2867
        %v2916 = vpack.c.b16 %v2870, %v2869
        %v2917 = vpack.c.b16 %v2872, %v2871
        %v2918 = vpack.c.b16 %v2874, %v2873
        %v2919 = vpack.c.b16 %v2876, %v2875
        %v2920 = vpack.c.b16 %v2878, %v2877
        %v2921 = vpack.c.b16 %v2880, %v2879
        %v2922 = vpack.c.b16 %v2882, %v2881
        %v2923 = vpack.c.b16 %v2884, %v2883
        %v2924 = vpack.c.b16 %v2886, %v2885
        %v2925 = vpack.c.b16 %v2888, %v2887
        %v2926 = vpack.c.b16 %v2890, %v2889
        %v2927 = vpack.c.b16 %v2892, %v2891
        %v2928 = vpack.c.b16 %v2894, %v2893
        %v2929 = vpack.c.b16 %v2896, %v2895
        %v2930 = vpack.c.b16 %v2898, %v2897
        %2963 = vmatprep.subr.bf16.mxu0 0
        %2964 = vmatpush1.bf16.msra.mxu0 %v2899
        %2965 = vmatprep.subr.bf16.mxu0 0
        %2966 = vmatpush1.bf16.msra.mxu0 %v2900
        %2967 = vmatprep.subr.bf16.mxu0 0
        %2968 = vmatpush1.bf16.msra.mxu0 %v2901
        %2969 = vmatprep.subr.bf16.mxu0 0
        %2970 = vmatpush1.bf16.msra.mxu0 %v2902
        %2971 = vmatprep.subr.bf16.mxu0 0
        %2972 = vmatpush1.bf16.msra.mxu0 %v2903
        %2973 = vmatprep.subr.bf16.mxu0 0
        %2974 = vmatpush1.bf16.msra.mxu0 %v2904
        %2975 = vmatprep.subr.bf16.mxu0 0
        %2976 = vmatpush1.bf16.msra.mxu0 %v2905
        %2977 = vmatprep.subr.bf16.mxu0 0
        %2978 = vmatpush1.bf16.msra.mxu0 %v2906
        %2979 = vmatprep.subr.bf16.mxu0 0
        %2980 = vmatpush1.bf16.msra.mxu0 %v2907
        %2981 = vmatprep.subr.bf16.mxu0 0
        %2982 = vmatpush1.bf16.msra.mxu0 %v2908
        %2983 = vmatprep.subr.bf16.mxu0 0
        %2984 = vmatpush1.bf16.msra.mxu0 %v2909
        %2985 = vmatprep.subr.bf16.mxu0 0
        %2986 = vmatpush1.bf16.msra.mxu0 %v2910
        %2987 = vmatprep.subr.bf16.mxu0 0
        %2988 = vmatpush1.bf16.msra.mxu0 %v2911
        %2989 = vmatprep.subr.bf16.mxu0 0
        %2990 = vmatpush1.bf16.msra.mxu0 %v2912
        %2991 = vmatprep.subr.bf16.mxu0 0
        %2992 = vmatpush1.bf16.msra.mxu0 %v2913
        %2993 = vmatprep.subr.bf16.mxu0 0
        %2994 = vmatpush1.bf16.msra.mxu0 %v2914
        %2995 = vmatprep.mubr.bf16.mxu0 %v2697
        %2996 = vmatmul.mubr.bf16.gmra.mrb[0].mxu0 %v2696
        %v2997 = vpop.f32.mrb[0].mxu0
        %v2998 = vadd.f32 %v2769, %v2997
        %v2999 = vpop.f32.mrb[0].mxu0
        %v3000 = vpop.f32.mrb[0].mxu0
        %v3001 = vadd.f32 %v2769, %v3000
        %v3002 = vpop.f32.mrb[0].mxu0
        %3003 = vdwg.mxu0
        %3004 = vmatprep.subr.bf16.mxu0 0
        %3005 = vmatpush1.bf16.msra.mxu0 %v2915
        %3006 = vmatprep.subr.bf16.mxu0 0
        %3007 = vmatpush1.bf16.msra.mxu0 %v2916
        %3008 = vmatprep.subr.bf16.mxu0 0
        %3009 = vmatpush1.bf16.msra.mxu0 %v2917
        %3010 = vmatprep.subr.bf16.mxu0 0
        %3011 = vmatpush1.bf16.msra.mxu0 %v2918
        %3012 = vmatprep.subr.bf16.mxu0 0
        %3013 = vmatpush1.bf16.msra.mxu0 %v2919
        %3014 = vmatprep.subr.bf16.mxu0 0
        %3015 = vmatpush1.bf16.msra.mxu0 %v2920
        %3016 = vmatprep.subr.bf16.mxu0 0
        %3017 = vmatpush1.bf16.msra.mxu0 %v2921
        %3018 = vmatprep.subr.bf16.mxu0 0
        %3019 = vmatpush1.bf16.msra.mxu0 %v2922
        %3020 = vmatprep.subr.bf16.mxu0 0
        %3021 = vmatpush1.bf16.msra.mxu0 %v2923
        %3022 = vmatprep.subr.bf16.mxu0 0
        %3023 = vmatpush1.bf16.msra.mxu0 %v2924
        %3024 = vmatprep.subr.bf16.mxu0 0
        %3025 = vmatpush1.bf16.msra.mxu0 %v2925
        %3026 = vmatprep.subr.bf16.mxu0 0
        %3027 = vmatpush1.bf16.msra.mxu0 %v2926
        %3028 = vmatprep.subr.bf16.mxu0 0
        %3029 = vmatpush1.bf16.msra.mxu0 %v2927
        %3030 = vmatprep.subr.bf16.mxu0 0
        %3031 = vmatpush1.bf16.msra.mxu0 %v2928
        %3032 = vmatprep.subr.bf16.mxu0 0
        %3033 = vmatpush1.bf16.msra.mxu0 %v2929
        %3034 = vmatprep.subr.bf16.mxu0 0
        %3035 = vmatpush1.bf16.msra.mxu0 %v2930
        %3036 = vmatprep.mubr.bf16.mxu0 %v2699
        %3037 = vmatmul.mubr.bf16.gmra.mrb[0].mxu0 %v2698
        %v3038 = vpop.f32.mrb[0].mxu0
        %v3039 = vadd.f32 %v2998, %v3038
        %v3040 = vpop.f32.mrb[0].mxu0
        %v3041 = vpop.f32.mrb[0].mxu0
        %v3042 = vadd.f32 %v3001, %v3041
        %v3043 = vpop.f32.mrb[0].mxu0
        %3044 = vdwg.mxu0
        %3045 = vst [vmem:[%s314] sm:$0xff] %v3039
        %3046 = vst [vmem:[%s314 + $0x8] sm:$0xff] %v3042
      $region56: #{qnetwork_forward.5} parent=47 // pred_fallthru
        _
      %s3047 = smul.u32 2, %s22
      %p3048 = scmp.lt.s32.totalorder %s3047, 1
      %s3049 = scalar_select %p3048, %s3047, 1
      %s3050 = smul.addr %s3049, 8
      %s3051 = scalar_lea.vmem %s7, %s3050
      // Predicated region
      $region57: #{qnetwork_forward.5} parent=47 // pred_check
        %p3052 = pneg %p202
      $region58: #{qnetwork_forward.5} parent=47 // pred_check_branch
        %3054 = sbr.rel (%p3052) target = $region60
      $region59: #{qnetwork_forward.5} parent=47 // pred_region
        %s3055 = smul.u32 2, %s22
      $region60: #{qnetwork_forward.5} parent=47 // pred_fallthru
        _
      // Predicated region
      $region61: #{qnetwork_forward.5} parent=47 // pred_check
        %p3056 = pneg %p202
      $region62: #{qnetwork_forward.5} parent=47 // pred_check_branch
        %3058 = sbr.rel (%p3056) target = $region64
      $region63: #{qnetwork_forward.5} parent=47 // pred_region
        %s3059 = smul.u32 2, %s22
        %p3060 = scmp.lt.s32.totalorder %s3059, 1
        %s3061 = scalar_select %p3060, %s3059, 1
        %s3062 = smul.addr %s3061, 8
        %s3063 = scalar_lea.vmem %s7, %s3062
      $region64: #{qnetwork_forward.5} parent=47 // pred_fallthru
        _
    $region48: #{qnetwork_forward.5} parent=5 // pred_fallthru
      _
    %p3064 = scmp.le.s32.totalorder 2, %s13
    // Predicated region
    $region65: #{qnetwork_forward.5} parent=5 // pred_check
      %p3065 = pneg %p3064
    $region66: #{qnetwork_forward.5} parent=5 // pred_check_branch
      %3067 = sbr.rel (%p3065) target = $region68
    $region67: #{qnetwork_forward.5} parent=5 // pred_region
      %s3068 = ssub.s32 %s13, 2
    $region68: #{qnetwork_forward.5} parent=5 // pred_fallthru
      _
  $region6: #{qnetwork_forward.5} parent=0 // loop_footer
    %s17 = sadd.s32 1, %s13
  $region7: #{qnetwork_forward.5} parent=0 // loop_footer_branch
    %12 = sbr.rel target = $region3
  $region8: #{qnetwork_forward.5} parent=0 // loop_exit
    _

</llo_original>
